<compile_context>
chip_gen: v7x
topology: tpu7x:2x2x1
jax: 0.10.0
libtpu: 0.0.40
codegen_flags: <defaults>
</compile_context>

<pallas_src>
import jax
import jax.numpy as jnp
import numpy as np
from jax import lax
from jax.experimental import pallas as pl
from jax.experimental.pallas import tpu as pltpu


def _round_up(n, m):
    return ((n + m - 1) // m) * m


def lstm_seq_kernel(x_ref, h0_ref, c0_ref, w_ref, b_ref,
                    hs_ref, fs_ref, h_sc, c_sc, xh_sc):
    """Run TT LSTM steps per grid iteration; (h, c) carried in f32 VMEM scratch.

    Grid = (batch_blocks, time_chunks); the time axis is the recurrence.

    x_ref:   [TT, BB, Vp]   this chunk's inputs (lane-padded)
    h0_ref:  [BB, H]        initial hidden state (read only at first chunk)
    c0_ref:  [BB, H]        initial cell state   (read only at first chunk)
    w_ref:   [Vp + H, 4H]   fused input+recurrent weights (VMEM-resident)
    b_ref:   [1, 4H]        fused bias
    hs_ref:  [TT, BB, H]    per-step hidden outputs (h only)
    fs_ref:  [BB, 2H] f32   final [h | c], written only on the last chunk
    h_sc/c_sc: [BB, H] f32  recurrent-state scratch (persists across chunks)
    xh_sc:   [BB, Vp + H]   staging buffer for the fused contraction (w dtype)
    """
    t_chunk = pl.program_id(1)
    H = h0_ref.shape[-1]
    TT, BB, Vp = x_ref.shape

    @pl.when(t_chunk == 0)
    def _():
        h_sc[...] = h0_ref[...].astype(jnp.float32)
        c_sc[...] = c0_ref[...].astype(jnp.float32)

    # Hoisted out of the per-step loop (JAX does not CSE broadcast_in_dim).
    b_f32 = jnp.broadcast_to(b_ref[...].astype(jnp.float32), (BB, 4 * H))

    def step(s, carry):
        # Stage [x_s | h] into persistent VMEM scratch (w dtype): no concat
        # materialization, one fused K = Vp + H MXU contraction per step.
        xh_sc[:, :Vp] = x_ref[s].astype(xh_sc.dtype)
        xh_sc[:, Vp:] = h_sc[...].astype(xh_sc.dtype)
        gates = jnp.dot(xh_sc[...], w_ref[...],
                        preferred_element_type=jnp.float32) + b_f32

        # PyTorch LSTMCell gate order: input, forget, cell(g), output.
        i = jax.nn.sigmoid(gates[:, 0 * H:1 * H])
        f = jax.nn.sigmoid(gates[:, 1 * H:2 * H])
        g = jnp.tanh(gates[:, 2 * H:3 * H])
        o = jax.nn.sigmoid(gates[:, 3 * H:4 * H])

        c_new = f * c_sc[...] + i * g
        h_new = o * jnp.tanh(c_new)

        h_sc[...] = h_new
        c_sc[...] = c_new
        hs_ref[s] = h_new.astype(hs_ref.dtype)   # lane-dense H store, h only
        return carry

    lax.fori_loop(0, TT, step, 0, unroll=True)

    # Final (h, c) written once per batch block -> no per-step c HBM writeback.
    @pl.when(t_chunk == pl.num_programs(1) - 1)
    def _():
        fs_ref[:, :H] = h_sc[...]
        fs_ref[:, H:] = c_sc[...]


def controller_forward_sequence(xs, state, params, *, time_chunk=8,
                                batch_block=None):
    """Run the controller over a whole sequence in a single pallas_call.

    Args:
        xs:     [T, B, V] inputs.
        state:  (h0, c0), each [B, H].
        params: (W [Vp + H, 4H], b [1, 4H]) with Vp = round_up(V, 128);
                rows V..Vp of W are zero padding.
        time_chunk:  max LSTM steps per grid iteration (amortizes grid/DMA
                overhead); the largest divisor of T that is <= time_chunk is
                actually used so no padded steps ever touch the recurrence.
        batch_block: rows per batch block (default: all of B). With more than
                one block, the leading 'parallel' grid axis lets v7x's two
                TensorCores run independent batch shards of the recurrence.

    Returns:
        (outputs [T, B, H], (h_T, c_T))  -- final state is float32 so the cell
        state keeps full precision even when stepping one call at a time.
    """
    h0, c0 = state
    w, b = params
    T, B, V = xs.shape
    H = h0.shape[-1]
    Vp = w.shape[0] - H
    if Vp != V:
        xs = jnp.pad(xs, ((0, 0), (0, 0), (0, Vp - V)))

    # Largest chunk <= time_chunk that divides T.
    tt = 1
    for d in range(1, min(time_chunk, T) + 1):
        if T % d == 0:
            tt = d
    bb = B if batch_block is None else batch_block
    assert B % bb == 0, "batch_block must divide batch size"
    nb, nt = B // bb, T // tt

    hs, fs = pl.pallas_call(
        lstm_seq_kernel,
        out_shape=(
            jax.ShapeDtypeStruct((T, B, H), h0.dtype),       # per-step h
            jax.ShapeDtypeStruct((B, 2 * H), jnp.float32),   # final [h | c]
        ),
        grid_spec=pltpu.PrefetchScalarGridSpec(
            num_scalar_prefetch=0,
            grid=(nb, nt),
            in_specs=[
                # Per-chunk input block, streamed along the time axis.
                pl.BlockSpec((tt, bb, Vp), lambda bi, ti: (ti, bi, 0)),
                # Initial state: constant over time -> DMA'd once per batch blk.
                pl.BlockSpec((bb, H), lambda bi, ti: (bi, 0)),
                pl.BlockSpec((bb, H), lambda bi, ti: (bi, 0)),
                # Weights / bias: constant block index -> VMEM-resident.
                pl.BlockSpec((Vp + H, 4 * H), lambda bi, ti: (0, 0)),
                pl.BlockSpec((1, 4 * H), lambda bi, ti: (0, 0)),
            ],
            out_specs=[
                pl.BlockSpec((tt, bb, H), lambda bi, ti: (ti, bi, 0)),
                # Final state: constant over time -> written back once per
                # batch block, after the last chunk wrote it.
                pl.BlockSpec((bb, 2 * H), lambda bi, ti: (bi, 0)),
            ],
            scratch_shapes=[
                pltpu.VMEM((bb, H), jnp.float32),        # h carry
                pltpu.VMEM((bb, H), jnp.float32),        # c carry (always f32)
                pltpu.VMEM((bb, Vp + H), w.dtype),       # [x | h] staging
            ],
        ),
        compiler_params=pltpu.CompilerParams(
            # batch blocks are independent (megacore-shardable); the time axis
            # carries the recurrence and must stay serial.
            dimension_semantics=("parallel", "arbitrary")),
    )(xs, h0, c0, w, b)

    h_last = fs[:, :H]
    c_last = fs[:, H:]
    return hs, (h_last, c_last)


def controller_forward(x, state, params):
    """Single-step API matching Controller.forward(x, state) -> (out, state)."""
    hs, new_state = controller_forward_sequence(x[None], state, params)
    return hs[0], new_state


def init_controller_params(key, vector_length, hidden_size, dtype=jnp.float32):
    """Xavier-like init matching Controller._initialize_parameters.

    Returns a single fused weight [Vp + H, 4H] (rows V..Vp are zero padding so
    the lane-padded input contributes nothing) and a zero bias [1, 4H].
    Pass dtype=jnp.bfloat16 to halve the weight DMA and use the bf16-native
    MXU path; accumulation stays f32.
    """
    V, H = vector_length, hidden_size
    Vp = _round_up(V, 128)
    stdev = 5.0 / np.sqrt(V + H)
    k1, k2 = jax.random.split(key)
    w_ih = jax.random.uniform(k1, (V, 4 * H), minval=-stdev, maxval=stdev,
                              dtype=jnp.float32)
    w_hh = jax.random.uniform(k2, (H, 4 * H), minval=-stdev, maxval=stdev,
                              dtype=jnp.float32)
    w = jnp.zeros((Vp + H, 4 * H), jnp.float32)
    w = w.at[:V].set(w_ih).at[Vp:].set(w_hh)
    b = jnp.zeros((1, 4 * H), jnp.float32)      # biases (dim==1) -> 0
    return w.astype(dtype), b.astype(dtype)


def get_initial_state(batch_size, hidden_size, dtype=jnp.float32):
    """Initial (h, c): learned-bias params are dim==1 -> initialized to 0."""
    h0 = jnp.zeros((batch_size, hidden_size), dtype=dtype)
    c0 = jnp.zeros((batch_size, hidden_size), dtype=dtype)
    return h0, c0


def _reference_sequence(xs, state, params, vector_length):
    """Plain-JAX f32 reference for correctness checking."""
    h, c = state
    w, b = params
    w = w.astype(jnp.float32)
    b = b.astype(jnp.float32)
    H = h.shape[-1]
    V = vector_length
    Vp = w.shape[0] - H
    w_ih, w_hh = w[:V], w[Vp:]
    h = h.astype(jnp.float32)
    c = c.astype(jnp.float32)
    outs = []
    for t in range(xs.shape[0]):
        gates = xs[t].astype(jnp.float32) @ w_ih + h @ w_hh + b
        i = jax.nn.sigmoid(gates[:, 0 * H:1 * H])
        f = jax.nn.sigmoid(gates[:, 1 * H:2 * H])
        g = jnp.tanh(gates[:, 2 * H:3 * H])
        o = jax.nn.sigmoid(gates[:, 3 * H:4 * H])
        c = f * c + i * g
        h = o * jnp.tanh(c)
        outs.append(h)
    return jnp.stack(outs), (h, c)


if __name__ == "__main__":
    B = 8        # batch
    V = 64       # vector_length
    H = 128      # hidden_size (multiple of 128 -> lane-aligned gate slices)
    T = 16       # sequence length (2 time-chunks of 8)

    key = jax.random.PRNGKey(0)
    k_param, k_x, k_h, k_c = jax.random.split(key, 4)

    params = init_controller_params(k_param, V, H)           # f32 weights
    xs = jax.random.normal(k_x, (T, B, V), dtype=jnp.float32)
    # Non-trivial state (as if mid-sequence) to exercise the full path.
    state0 = (jax.random.normal(k_h, (B, H), dtype=jnp.float32) * 0.1,
              jax.random.normal(k_c, (B, H), dtype=jnp.float32) * 0.1)

    # --- fused T-step kernel (time-chunked), f32 weights -------------------
    hs, (h_T, c_T) = controller_forward_sequence(xs, state0, params,
                                                 time_chunk=8)
    jax.block_until_ready((hs, h_T, c_T))

    hs_ref, (h_T_ref, c_T_ref) = _reference_sequence(xs, state0, params, V)
    np.testing.assert_allclose(np.asarray(hs), np.asarray(hs_ref),
                               rtol=1e-5, atol=1e-5)
    np.testing.assert_allclose(np.asarray(h_T), np.asarray(h_T_ref),
                               rtol=1e-5, atol=1e-5)
    np.testing.assert_allclose(np.asarray(c_T), np.asarray(c_T_ref),
                               rtol=1e-5, atol=1e-5)
    assert hs.shape == (T, B, H) and h_T.shape == (B, H) and c_T.shape == (B, H)

    # --- batch-blocked path (exercises the 'parallel' batch grid axis) -----
    hs_bb, (h_Tbb, c_Tbb) = controller_forward_sequence(
        xs, state0, params, time_chunk=8, batch_block=B // 2)
    jax.block_until_ready(hs_bb)
    np.testing.assert_allclose(np.asarray(hs_bb), np.asarray(hs_ref),
                               rtol=1e-5, atol=1e-5)
    np.testing.assert_allclose(np.asarray(c_Tbb), np.asarray(c_T_ref),
                               rtol=1e-5, atol=1e-5)

    # --- single-step API (matches Controller.forward signature) ------------
    out1, (h1, c1) = controller_forward(xs[0], state0, params)
    jax.block_until_ready((out1, h1, c1))
    np.testing.assert_allclose(np.asarray(out1), np.asarray(hs_ref[0]),
                               rtol=1e-5, atol=1e-5)

    # --- bf16 weight path (halved weight DMA; f32 accumulation & carries) --
    params_bf16 = tuple(p.astype(jnp.bfloat16) for p in params)
    hs_b, (h_Tb, c_Tb) = controller_forward_sequence(xs, state0, params_bf16,
                                                     time_chunk=8)
    jax.block_until_ready(hs_b)
    hs_bref, _ = _reference_sequence(xs, state0, params_bf16, V)
    np.testing.assert_allclose(np.asarray(hs_b), np.asarray(hs_bref),
                               rtol=5e-2, atol=5e-2)

    print("KERNEL_OK")
</pallas_src>

<mosaic_0001>
module attributes {stable_mosaic.version = 11 : i64} {
  func.func @lstm_seq_kernel(%arg0: i32, %arg1: i32, %arg2: memref<8x8x128xf32, #tpu.memory_space<vmem>>, %arg3: memref<8x128xf32, #tpu.memory_space<vmem>>, %arg4: memref<8x128xf32, #tpu.memory_space<vmem>>, %arg5: memref<256x512xf32, #tpu.memory_space<vmem>>, %arg6: memref<1x512xf32, #tpu.memory_space<vmem>>, %arg7: memref<8x8x128xf32, #tpu.memory_space<vmem>>, %arg8: memref<8x256xf32, #tpu.memory_space<vmem>>, %arg9: memref<8x128xf32, #tpu.memory_space<vmem>>, %arg10: memref<8x128xf32, #tpu.memory_space<vmem>>, %arg11: memref<8x256xf32, #tpu.memory_space<vmem>>) attributes {dimension_semantics = [#tpu.dimension_semantics<parallel>, #tpu.dimension_semantics<arbitrary>], iteration_bounds = array<i64: 1, 2>, scalar_prefetch = 0 : i64, scratch_operands = 3 : i64, tpu.core_type = #tpu.core_type<tc>, window_params = [{transform_indices = @transform_0, window_bounds = array<i64: 8, 8, 128>}, {transform_indices = @transform_1, window_bounds = array<i64: 8, 128>}, {transform_indices = @transform_2, window_bounds = array<i64: 8, 128>}, {pipeline_mode = #tpu.pipeline_mode<synchronous>, transform_indices = @transform_3, window_bounds = array<i64: 256, 512>}, {pipeline_mode = #tpu.pipeline_mode<synchronous>, transform_indices = @transform_4, window_bounds = array<i64: 1, 512>}, {transform_indices = @transform_5, window_bounds = array<i64: 8, 8, 128>}, {transform_indices = @transform_6, window_bounds = array<i64: 8, 256>}]} {
    %c0_i32 = arith.constant 0 : i32
    %0 = arith.cmpi eq, %arg1, %c0_i32 : i32
    %1 = arith.extui %0 : i1 to i32
    %c0_i32_0 = arith.constant 0 : i32
    %2 = arith.cmpi ne, %1, %c0_i32_0 : i32
    scf.if %2 {
      %c0_195 = arith.constant 0 : index
      %c0_196 = arith.constant 0 : index
      %345 = vector.load %arg3[%c0_195, %c0_196] : memref<8x128xf32, #tpu.memory_space<vmem>>, vector<8x128xf32>
      %c0_197 = arith.constant 0 : index
      %c0_198 = arith.constant 0 : index
      %346 = vector.load %arg9[%c0_197, %c0_198] : memref<8x128xf32, #tpu.memory_space<vmem>>, vector<8x128xf32>
      tpu.vector_store %arg9[%c0_197, %c0_198], %345 {strides = array<i32>} : memref<8x128xf32, #tpu.memory_space<vmem>>, vector<8x128xf32>,
      %c0_199 = arith.constant 0 : index
      %c0_200 = arith.constant 0 : index
      %347 = vector.load %arg4[%c0_199, %c0_200] : memref<8x128xf32, #tpu.memory_space<vmem>>, vector<8x128xf32>
      %c0_201 = arith.constant 0 : index
      %c0_202 = arith.constant 0 : index
      %348 = vector.load %arg10[%c0_201, %c0_202] : memref<8x128xf32, #tpu.memory_space<vmem>>, vector<8x128xf32>
      tpu.vector_store %arg10[%c0_201, %c0_202], %347 {strides = array<i32>} : memref<8x128xf32, #tpu.memory_space<vmem>>, vector<8x128xf32>,
    } else {
    }
    %c0 = arith.constant 0 : index
    %c0_1 = arith.constant 0 : index
    %3 = vector.load %arg6[%c0, %c0_1] : memref<1x512xf32, #tpu.memory_space<vmem>>, vector<1x512xf32>
    %4 = vector.shape_cast %3 : vector<1x512xf32> to vector<1x512xf32>
    %5 = vector.broadcast %4 : vector<1x512xf32> to vector<8x512xf32>
    %c0_i32_2 = arith.constant 0 : i32
    %6 = arith.index_cast %c0_i32_2 : i32 to index
    %c0_3 = arith.constant 0 : index
    %c0_4 = arith.constant 0 : index
    %7 = vector.load %arg2[%6, %c0_3, %c0_4] : memref<8x8x128xf32, #tpu.memory_space<vmem>>, vector<1x8x128xf32>
    %8 = vector.shape_cast %7 : vector<1x8x128xf32> to vector<8x128xf32>
    %c0_5 = arith.constant 0 : index
    %c0_6 = arith.constant 0 : index
    %9 = vector.load %arg11[%c0_5, %c0_6] : memref<8x256xf32, #tpu.memory_space<vmem>>, vector<8x128xf32>
    tpu.vector_store %arg11[%c0_5, %c0_6], %8 {strides = array<i32>} : memref<8x256xf32, #tpu.memory_space<vmem>>, vector<8x128xf32>,
    %c0_7 = arith.constant 0 : index
    %c0_8 = arith.constant 0 : index
    %10 = vector.load %arg9[%c0_7, %c0_8] : memref<8x128xf32, #tpu.memory_space<vmem>>, vector<8x128xf32>
    %c0_9 = arith.constant 0 : index
    %c128 = arith.constant 128 : index
    %11 = vector.load %arg11[%c0_9, %c128] : memref<8x256xf32, #tpu.memory_space<vmem>>, vector<8x128xf32>
    tpu.vector_store %arg11[%c0_9, %c128], %10 {strides = array<i32>} : memref<8x256xf32, #tpu.memory_space<vmem>>, vector<8x128xf32>,
    %c0_10 = arith.constant 0 : index
    %c0_11 = arith.constant 0 : index
    %12 = vector.load %arg11[%c0_10, %c0_11] : memref<8x256xf32, #tpu.memory_space<vmem>>, vector<8x256xf32>
    %c0_12 = arith.constant 0 : index
    %c0_13 = arith.constant 0 : index
    %13 = vector.load %arg5[%c0_12, %c0_13] : memref<256x512xf32, #tpu.memory_space<vmem>>, vector<256x512xf32>
    %cst = arith.constant dense<0.000000e+00> : vector<8x512xf32>
    %14 = tpu.matmul %12, %13, %cst {dimension_numbers = #tpu.dot_dimension_numbers<[1], [0], [0], [1], [0, 0, 1, 1], [], []>} : vector<8x256xf32>, vector<256x512xf32>, vector<8x512xf32> -> vector<8x512xf32>
    %15 = arith.addf %14, %5 : vector<8x512xf32>
    %16 = vector.extract_strided_slice %15 {offsets = [0, 0], sizes = [8, 128], strides = [1, 1]} : vector<8x512xf32> to vector<8x128xf32>
    %17 = arith.negf %16 : vector<8x128xf32>
    %18 = math.exp %17 : vector<8x128xf32>
    %cst_14 = arith.constant 1.000000e+00 : f32
    %19 = vector.broadcast %cst_14 : f32 to vector<8x128xf32>
    %20 = arith.addf %19, %18 : vector<8x128xf32>
    %21 = arith.divf %19, %20 : vector<8x128xf32>
    %22 = vector.extract_strided_slice %15 {offsets = [0, 128], sizes = [8, 128], strides = [1, 1]} : vector<8x512xf32> to vector<8x128xf32>
    %23 = arith.negf %22 : vector<8x128xf32>
    %24 = math.exp %23 : vector<8x128xf32>
    %cst_15 = arith.constant 1.000000e+00 : f32
    %25 = vector.broadcast %cst_15 : f32 to vector<8x128xf32>
    %26 = arith.addf %25, %24 : vector<8x128xf32>
    %27 = arith.divf %25, %26 : vector<8x128xf32>
    %28 = vector.extract_strided_slice %15 {offsets = [0, 256], sizes = [8, 128], strides = [1, 1]} : vector<8x512xf32> to vector<8x128xf32>
    %29 = math.tanh %28 : vector<8x128xf32>
    %30 = vector.extract_strided_slice %15 {offsets = [0, 384], sizes = [8, 128], strides = [1, 1]} : vector<8x512xf32> to vector<8x128xf32>
    %31 = arith.negf %30 : vector<8x128xf32>
    %32 = math.exp %31 : vector<8x128xf32>
    %cst_16 = arith.constant 1.000000e+00 : f32
    %33 = vector.broadcast %cst_16 : f32 to vector<8x128xf32>
    %34 = arith.addf %33, %32 : vector<8x128xf32>
    %35 = arith.divf %33, %34 : vector<8x128xf32>
    %c0_17 = arith.constant 0 : index
    %c0_18 = arith.constant 0 : index
    %36 = vector.load %arg10[%c0_17, %c0_18] : memref<8x128xf32, #tpu.memory_space<vmem>>, vector<8x128xf32>
    %37 = arith.mulf %27, %36 : vector<8x128xf32>
    %38 = arith.mulf %21, %29 : vector<8x128xf32>
    %39 = arith.addf %37, %38 : vector<8x128xf32>
    %40 = math.tanh %39 : vector<8x128xf32>
    %41 = arith.mulf %35, %40 : vector<8x128xf32>
    %c0_19 = arith.constant 0 : index
    %c0_20 = arith.constant 0 : index
    %42 = vector.load %arg9[%c0_19, %c0_20] : memref<8x128xf32, #tpu.memory_space<vmem>>, vector<8x128xf32>
    tpu.vector_store %arg9[%c0_19, %c0_20], %41 {strides = array<i32>} : memref<8x128xf32, #tpu.memory_space<vmem>>, vector<8x128xf32>,
    %c0_21 = arith.constant 0 : index
    %c0_22 = arith.constant 0 : index
    %43 = vector.load %arg10[%c0_21, %c0_22] : memref<8x128xf32, #tpu.memory_space<vmem>>, vector<8x128xf32>
    tpu.vector_store %arg10[%c0_21, %c0_22], %39 {strides = array<i32>} : memref<8x128xf32, #tpu.memory_space<vmem>>, vector<8x128xf32>,
    %44 = arith.index_cast %c0_i32_2 : i32 to index
    %c0_23 = arith.constant 0 : index
    %c0_24 = arith.constant 0 : index
    %45 = vector.load %arg7[%44, %c0_23, %c0_24] : memref<8x8x128xf32, #tpu.memory_space<vmem>>, vector<1x8x128xf32>
    %46 = vector.shape_cast %45 : vector<1x8x128xf32> to vector<8x128xf32>
    %47 = vector.shape_cast %41 : vector<8x128xf32> to vector<1x8x128xf32>
    tpu.vector_store %arg7[%44, %c0_23, %c0_24], %47 {strides = array<i32>} : memref<8x8x128xf32, #tpu.memory_space<vmem>>, vector<1x8x128xf32>,
    %c1_i32 = arith.constant 1 : i32
    %48 = arith.index_cast %c1_i32 : i32 to index
    %c0_25 = arith.constant 0 : index
    %c0_26 = arith.constant 0 : index
    %49 = vector.load %arg2[%48, %c0_25, %c0_26] : memref<8x8x128xf32, #tpu.memory_space<vmem>>, vector<1x8x128xf32>
    %50 = vector.shape_cast %49 : vector<1x8x128xf32> to vector<8x128xf32>
    %c0_27 = arith.constant 0 : index
    %c0_28 = arith.constant 0 : index
    %51 = vector.load %arg11[%c0_27, %c0_28] : memref<8x256xf32, #tpu.memory_space<vmem>>, vector<8x128xf32>
    tpu.vector_store %arg11[%c0_27, %c0_28], %50 {strides = array<i32>} : memref<8x256xf32, #tpu.memory_space<vmem>>, vector<8x128xf32>,
    %c0_29 = arith.constant 0 : index
    %c0_30 = arith.constant 0 : index
    %52 = vector.load %arg9[%c0_29, %c0_30] : memref<8x128xf32, #tpu.memory_space<vmem>>, vector<8x128xf32>
    %c0_31 = arith.constant 0 : index
    %c128_32 = arith.constant 128 : index
    %53 = vector.load %arg11[%c0_31, %c128_32] : memref<8x256xf32, #tpu.memory_space<vmem>>, vector<8x128xf32>
    tpu.vector_store %arg11[%c0_31, %c128_32], %52 {strides = array<i32>} : memref<8x256xf32, #tpu.memory_space<vmem>>, vector<8x128xf32>,
    %c0_33 = arith.constant 0 : index
    %c0_34 = arith.constant 0 : index
    %54 = vector.load %arg11[%c0_33, %c0_34] : memref<8x256xf32, #tpu.memory_space<vmem>>, vector<8x256xf32>
    %c0_35 = arith.constant 0 : index
    %c0_36 = arith.constant 0 : index
    %55 = vector.load %arg5[%c0_35, %c0_36] : memref<256x512xf32, #tpu.memory_space<vmem>>, vector<256x512xf32>
    %cst_37 = arith.constant dense<0.000000e+00> : vector<8x512xf32>
    %56 = tpu.matmul %54, %55, %cst_37 {dimension_numbers = #tpu.dot_dimension_numbers<[1], [0], [0], [1], [0, 0, 1, 1], [], []>} : vector<8x256xf32>, vector<256x512xf32>, vector<8x512xf32> -> vector<8x512xf32>
    %57 = arith.addf %56, %5 : vector<8x512xf32>
    %58 = vector.extract_strided_slice %57 {offsets = [0, 0], sizes = [8, 128], strides = [1, 1]} : vector<8x512xf32> to vector<8x128xf32>
    %59 = arith.negf %58 : vector<8x128xf32>
    %60 = math.exp %59 : vector<8x128xf32>
    %cst_38 = arith.constant 1.000000e+00 : f32
    %61 = vector.broadcast %cst_38 : f32 to vector<8x128xf32>
    %62 = arith.addf %61, %60 : vector<8x128xf32>
    %63 = arith.divf %61, %62 : vector<8x128xf32>
    %64 = vector.extract_strided_slice %57 {offsets = [0, 128], sizes = [8, 128], strides = [1, 1]} : vector<8x512xf32> to vector<8x128xf32>
    %65 = arith.negf %64 : vector<8x128xf32>
    %66 = math.exp %65 : vector<8x128xf32>
    %cst_39 = arith.constant 1.000000e+00 : f32
    %67 = vector.broadcast %cst_39 : f32 to vector<8x128xf32>
    %68 = arith.addf %67, %66 : vector<8x128xf32>
    %69 = arith.divf %67, %68 : vector<8x128xf32>
    %70 = vector.extract_strided_slice %57 {offsets = [0, 256], sizes = [8, 128], strides = [1, 1]} : vector<8x512xf32> to vector<8x128xf32>
    %71 = math.tanh %70 : vector<8x128xf32>
    %72 = vector.extract_strided_slice %57 {offsets = [0, 384], sizes = [8, 128], strides = [1, 1]} : vector<8x512xf32> to vector<8x128xf32>
    %73 = arith.negf %72 : vector<8x128xf32>
    %74 = math.exp %73 : vector<8x128xf32>
    %cst_40 = arith.constant 1.000000e+00 : f32
    %75 = vector.broadcast %cst_40 : f32 to vector<8x128xf32>
    %76 = arith.addf %75, %74 : vector<8x128xf32>
    %77 = arith.divf %75, %76 : vector<8x128xf32>
    %c0_41 = arith.constant 0 : index
    %c0_42 = arith.constant 0 : index
    %78 = vector.load %arg10[%c0_41, %c0_42] : memref<8x128xf32, #tpu.memory_space<vmem>>, vector<8x128xf32>
    %79 = arith.mulf %69, %78 : vector<8x128xf32>
    %80 = arith.mulf %63, %71 : vector<8x128xf32>
    %81 = arith.addf %79, %80 : vector<8x128xf32>
    %82 = math.tanh %81 : vector<8x128xf32>
    %83 = arith.mulf %77, %82 : vector<8x128xf32>
    %c0_43 = arith.constant 0 : index
    %c0_44 = arith.constant 0 : index
    %84 = vector.load %arg9[%c0_43, %c0_44] : memref<8x128xf32, #tpu.memory_space<vmem>>, vector<8x128xf32>
    tpu.vector_store %arg9[%c0_43, %c0_44], %83 {strides = array<i32>} : memref<8x128xf32, #tpu.memory_space<vmem>>, vector<8x128xf32>,
    %c0_45 = arith.constant 0 : index
    %c0_46 = arith.constant 0 : index
    %85 = vector.load %arg10[%c0_45, %c0_46] : memref<8x128xf32, #tpu.memory_space<vmem>>, vector<8x128xf32>
    tpu.vector_store %arg10[%c0_45, %c0_46], %81 {strides = array<i32>} : memref<8x128xf32, #tpu.memory_space<vmem>>, vector<8x128xf32>,
    %86 = arith.index_cast %c1_i32 : i32 to index
    %c0_47 = arith.constant 0 : index
    %c0_48 = arith.constant 0 : index
    %87 = vector.load %arg7[%86, %c0_47, %c0_48] : memref<8x8x128xf32, #tpu.memory_space<vmem>>, vector<1x8x128xf32>
    %88 = vector.shape_cast %87 : vector<1x8x128xf32> to vector<8x128xf32>
    %89 = vector.shape_cast %83 : vector<8x128xf32> to vector<1x8x128xf32>
    tpu.vector_store %arg7[%86, %c0_47, %c0_48], %89 {strides = array<i32>} : memref<8x8x128xf32, #tpu.memory_space<vmem>>, vector<1x8x128xf32>,
    %c2_i32 = arith.constant 2 : i32
    %90 = arith.index_cast %c2_i32 : i32 to index
    %c0_49 = arith.constant 0 : index
    %c0_50 = arith.constant 0 : index
    %91 = vector.load %arg2[%90, %c0_49, %c0_50] : memref<8x8x128xf32, #tpu.memory_space<vmem>>, vector<1x8x128xf32>
    %92 = vector.shape_cast %91 : vector<1x8x128xf32> to vector<8x128xf32>
    %c0_51 = arith.constant 0 : index
    %c0_52 = arith.constant 0 : index
    %93 = vector.load %arg11[%c0_51, %c0_52] : memref<8x256xf32, #tpu.memory_space<vmem>>, vector<8x128xf32>
    tpu.vector_store %arg11[%c0_51, %c0_52], %92 {strides = array<i32>} : memref<8x256xf32, #tpu.memory_space<vmem>>, vector<8x128xf32>,
    %c0_53 = arith.constant 0 : index
    %c0_54 = arith.constant 0 : index
    %94 = vector.load %arg9[%c0_53, %c0_54] : memref<8x128xf32, #tpu.memory_space<vmem>>, vector<8x128xf32>
    %c0_55 = arith.constant 0 : index
    %c128_56 = arith.constant 128 : index
    %95 = vector.load %arg11[%c0_55, %c128_56] : memref<8x256xf32, #tpu.memory_space<vmem>>, vector<8x128xf32>
    tpu.vector_store %arg11[%c0_55, %c128_56], %94 {strides = array<i32>} : memref<8x256xf32, #tpu.memory_space<vmem>>, vector<8x128xf32>,
    %c0_57 = arith.constant 0 : index
    %c0_58 = arith.constant 0 : index
    %96 = vector.load %arg11[%c0_57, %c0_58] : memref<8x256xf32, #tpu.memory_space<vmem>>, vector<8x256xf32>
    %c0_59 = arith.constant 0 : index
    %c0_60 = arith.constant 0 : index
    %97 = vector.load %arg5[%c0_59, %c0_60] : memref<256x512xf32, #tpu.memory_space<vmem>>, vector<256x512xf32>
    %cst_61 = arith.constant dense<0.000000e+00> : vector<8x512xf32>
    %98 = tpu.matmul %96, %97, %cst_61 {dimension_numbers = #tpu.dot_dimension_numbers<[1], [0], [0], [1], [0, 0, 1, 1], [], []>} : vector<8x256xf32>, vector<256x512xf32>, vector<8x512xf32> -> vector<8x512xf32>
    %99 = arith.addf %98, %5 : vector<8x512xf32>
    %100 = vector.extract_strided_slice %99 {offsets = [0, 0], sizes = [8, 128], strides = [1, 1]} : vector<8x512xf32> to vector<8x128xf32>
    %101 = arith.negf %100 : vector<8x128xf32>
    %102 = math.exp %101 : vector<8x128xf32>
    %cst_62 = arith.constant 1.000000e+00 : f32
    %103 = vector.broadcast %cst_62 : f32 to vector<8x128xf32>
    %104 = arith.addf %103, %102 : vector<8x128xf32>
    %105 = arith.divf %103, %104 : vector<8x128xf32>
    %106 = vector.extract_strided_slice %99 {offsets = [0, 128], sizes = [8, 128], strides = [1, 1]} : vector<8x512xf32> to vector<8x128xf32>
    %107 = arith.negf %106 : vector<8x128xf32>
    %108 = math.exp %107 : vector<8x128xf32>
    %cst_63 = arith.constant 1.000000e+00 : f32
    %109 = vector.broadcast %cst_63 : f32 to vector<8x128xf32>
    %110 = arith.addf %109, %108 : vector<8x128xf32>
    %111 = arith.divf %109, %110 : vector<8x128xf32>
    %112 = vector.extract_strided_slice %99 {offsets = [0, 256], sizes = [8, 128], strides = [1, 1]} : vector<8x512xf32> to vector<8x128xf32>
    %113 = math.tanh %112 : vector<8x128xf32>
    %114 = vector.extract_strided_slice %99 {offsets = [0, 384], sizes = [8, 128], strides = [1, 1]} : vector<8x512xf32> to vector<8x128xf32>
    %115 = arith.negf %114 : vector<8x128xf32>
    %116 = math.exp %115 : vector<8x128xf32>
    %cst_64 = arith.constant 1.000000e+00 : f32
    %117 = vector.broadcast %cst_64 : f32 to vector<8x128xf32>
    %118 = arith.addf %117, %116 : vector<8x128xf32>
    %119 = arith.divf %117, %118 : vector<8x128xf32>
    %c0_65 = arith.constant 0 : index
    %c0_66 = arith.constant 0 : index
    %120 = vector.load %arg10[%c0_65, %c0_66] : memref<8x128xf32, #tpu.memory_space<vmem>>, vector<8x128xf32>
    %121 = arith.mulf %111, %120 : vector<8x128xf32>
    %122 = arith.mulf %105, %113 : vector<8x128xf32>
    %123 = arith.addf %121, %122 : vector<8x128xf32>
    %124 = math.tanh %123 : vector<8x128xf32>
    %125 = arith.mulf %119, %124 : vector<8x128xf32>
    %c0_67 = arith.constant 0 : index
    %c0_68 = arith.constant 0 : index
    %126 = vector.load %arg9[%c0_67, %c0_68] : memref<8x128xf32, #tpu.memory_space<vmem>>, vector<8x128xf32>
    tpu.vector_store %arg9[%c0_67, %c0_68], %125 {strides = array<i32>} : memref<8x128xf32, #tpu.memory_space<vmem>>, vector<8x128xf32>,
    %c0_69 = arith.constant 0 : index
    %c0_70 = arith.constant 0 : index
    %127 = vector.load %arg10[%c0_69, %c0_70] : memref<8x128xf32, #tpu.memory_space<vmem>>, vector<8x128xf32>
    tpu.vector_store %arg10[%c0_69, %c0_70], %123 {strides = array<i32>} : memref<8x128xf32, #tpu.memory_space<vmem>>, vector<8x128xf32>,
    %128 = arith.index_cast %c2_i32 : i32 to index
    %c0_71 = arith.constant 0 : index
    %c0_72 = arith.constant 0 : index
    %129 = vector.load %arg7[%128, %c0_71, %c0_72] : memref<8x8x128xf32, #tpu.memory_space<vmem>>, vector<1x8x128xf32>
    %130 = vector.shape_cast %129 : vector<1x8x128xf32> to vector<8x128xf32>
    %131 = vector.shape_cast %125 : vector<8x128xf32> to vector<1x8x128xf32>
    tpu.vector_store %arg7[%128, %c0_71, %c0_72], %131 {strides = array<i32>} : memref<8x8x128xf32, #tpu.memory_space<vmem>>, vector<1x8x128xf32>,
    %c3_i32 = arith.constant 3 : i32
    %132 = arith.index_cast %c3_i32 : i32 to index
    %c0_73 = arith.constant 0 : index
    %c0_74 = arith.constant 0 : index
    %133 = vector.load %arg2[%132, %c0_73, %c0_74] : memref<8x8x128xf32, #tpu.memory_space<vmem>>, vector<1x8x128xf32>
    %134 = vector.shape_cast %133 : vector<1x8x128xf32> to vector<8x128xf32>
    %c0_75 = arith.constant 0 : index
    %c0_76 = arith.constant 0 : index
    %135 = vector.load %arg11[%c0_75, %c0_76] : memref<8x256xf32, #tpu.memory_space<vmem>>, vector<8x128xf32>
    tpu.vector_store %arg11[%c0_75, %c0_76], %134 {strides = array<i32>} : memref<8x256xf32, #tpu.memory_space<vmem>>, vector<8x128xf32>,
    %c0_77 = arith.constant 0 : index
    %c0_78 = arith.constant 0 : index
    %136 = vector.load %arg9[%c0_77, %c0_78] : memref<8x128xf32, #tpu.memory_space<vmem>>, vector<8x128xf32>
    %c0_79 = arith.constant 0 : index
    %c128_80 = arith.constant 128 : index
    %137 = vector.load %arg11[%c0_79, %c128_80] : memref<8x256xf32, #tpu.memory_space<vmem>>, vector<8x128xf32>
    tpu.vector_store %arg11[%c0_79, %c128_80], %136 {strides = array<i32>} : memref<8x256xf32, #tpu.memory_space<vmem>>, vector<8x128xf32>,
    %c0_81 = arith.constant 0 : index
    %c0_82 = arith.constant 0 : index
    %138 = vector.load %arg11[%c0_81, %c0_82] : memref<8x256xf32, #tpu.memory_space<vmem>>, vector<8x256xf32>
    %c0_83 = arith.constant 0 : index
    %c0_84 = arith.constant 0 : index
    %139 = vector.load %arg5[%c0_83, %c0_84] : memref<256x512xf32, #tpu.memory_space<vmem>>, vector<256x512xf32>
    %cst_85 = arith.constant dense<0.000000e+00> : vector<8x512xf32>
    %140 = tpu.matmul %138, %139, %cst_85 {dimension_numbers = #tpu.dot_dimension_numbers<[1], [0], [0], [1], [0, 0, 1, 1], [], []>} : vector<8x256xf32>, vector<256x512xf32>, vector<8x512xf32> -> vector<8x512xf32>
    %141 = arith.addf %140, %5 : vector<8x512xf32>
    %142 = vector.extract_strided_slice %141 {offsets = [0, 0], sizes = [8, 128], strides = [1, 1]} : vector<8x512xf32> to vector<8x128xf32>
    %143 = arith.negf %142 : vector<8x128xf32>
    %144 = math.exp %143 : vector<8x128xf32>
    %cst_86 = arith.constant 1.000000e+00 : f32
    %145 = vector.broadcast %cst_86 : f32 to vector<8x128xf32>
    %146 = arith.addf %145, %144 : vector<8x128xf32>
    %147 = arith.divf %145, %146 : vector<8x128xf32>
    %148 = vector.extract_strided_slice %141 {offsets = [0, 128], sizes = [8, 128], strides = [1, 1]} : vector<8x512xf32> to vector<8x128xf32>
    %149 = arith.negf %148 : vector<8x128xf32>
    %150 = math.exp %149 : vector<8x128xf32>
    %cst_87 = arith.constant 1.000000e+00 : f32
    %151 = vector.broadcast %cst_87 : f32 to vector<8x128xf32>
    %152 = arith.addf %151, %150 : vector<8x128xf32>
    %153 = arith.divf %151, %152 : vector<8x128xf32>
    %154 = vector.extract_strided_slice %141 {offsets = [0, 256], sizes = [8, 128], strides = [1, 1]} : vector<8x512xf32> to vector<8x128xf32>
    %155 = math.tanh %154 : vector<8x128xf32>
    %156 = vector.extract_strided_slice %141 {offsets = [0, 384], sizes = [8, 128], strides = [1, 1]} : vector<8x512xf32> to vector<8x128xf32>
    %157 = arith.negf %156 : vector<8x128xf32>
    %158 = math.exp %157 : vector<8x128xf32>
    %cst_88 = arith.constant 1.000000e+00 : f32
    %159 = vector.broadcast %cst_88 : f32 to vector<8x128xf32>
    %160 = arith.addf %159, %158 : vector<8x128xf32>
    %161 = arith.divf %159, %160 : vector<8x128xf32>
    %c0_89 = arith.constant 0 : index
    %c0_90 = arith.constant 0 : index
    %162 = vector.load %arg10[%c0_89, %c0_90] : memref<8x128xf32, #tpu.memory_space<vmem>>, vector<8x128xf32>
    %163 = arith.mulf %153, %162 : vector<8x128xf32>
    %164 = arith.mulf %147, %155 : vector<8x128xf32>
    %165 = arith.addf %163, %164 : vector<8x128xf32>
    %166 = math.tanh %165 : vector<8x128xf32>
    %167 = arith.mulf %161, %166 : vector<8x128xf32>
    %c0_91 = arith.constant 0 : index
    %c0_92 = arith.constant 0 : index
    %168 = vector.load %arg9[%c0_91, %c0_92] : memref<8x128xf32, #tpu.memory_space<vmem>>, vector<8x128xf32>
    tpu.vector_store %arg9[%c0_91, %c0_92], %167 {strides = array<i32>} : memref<8x128xf32, #tpu.memory_space<vmem>>, vector<8x128xf32>,
    %c0_93 = arith.constant 0 : index
    %c0_94 = arith.constant 0 : index
    %169 = vector.load %arg10[%c0_93, %c0_94] : memref<8x128xf32, #tpu.memory_space<vmem>>, vector<8x128xf32>
    tpu.vector_store %arg10[%c0_93, %c0_94], %165 {strides = array<i32>} : memref<8x128xf32, #tpu.memory_space<vmem>>, vector<8x128xf32>,
    %170 = arith.index_cast %c3_i32 : i32 to index
    %c0_95 = arith.constant 0 : index
    %c0_96 = arith.constant 0 : index
    %171 = vector.load %arg7[%170, %c0_95, %c0_96] : memref<8x8x128xf32, #tpu.memory_space<vmem>>, vector<1x8x128xf32>
    %172 = vector.shape_cast %171 : vector<1x8x128xf32> to vector<8x128xf32>
    %173 = vector.shape_cast %167 : vector<8x128xf32> to vector<1x8x128xf32>
    tpu.vector_store %arg7[%170, %c0_95, %c0_96], %173 {strides = array<i32>} : memref<8x8x128xf32, #tpu.memory_space<vmem>>, vector<1x8x128xf32>,
    %c4_i32 = arith.constant 4 : i32
    %174 = arith.index_cast %c4_i32 : i32 to index
    %c0_97 = arith.constant 0 : index
    %c0_98 = arith.constant 0 : index
    %175 = vector.load %arg2[%174, %c0_97, %c0_98] : memref<8x8x128xf32, #tpu.memory_space<vmem>>, vector<1x8x128xf32>
    %176 = vector.shape_cast %175 : vector<1x8x128xf32> to vector<8x128xf32>
    %c0_99 = arith.constant 0 : index
    %c0_100 = arith.constant 0 : index
    %177 = vector.load %arg11[%c0_99, %c0_100] : memref<8x256xf32, #tpu.memory_space<vmem>>, vector<8x128xf32>
    tpu.vector_store %arg11[%c0_99, %c0_100], %176 {strides = array<i32>} : memref<8x256xf32, #tpu.memory_space<vmem>>, vector<8x128xf32>,
    %c0_101 = arith.constant 0 : index
    %c0_102 = arith.constant 0 : index
    %178 = vector.load %arg9[%c0_101, %c0_102] : memref<8x128xf32, #tpu.memory_space<vmem>>, vector<8x128xf32>
    %c0_103 = arith.constant 0 : index
    %c128_104 = arith.constant 128 : index
    %179 = vector.load %arg11[%c0_103, %c128_104] : memref<8x256xf32, #tpu.memory_space<vmem>>, vector<8x128xf32>
    tpu.vector_store %arg11[%c0_103, %c128_104], %178 {strides = array<i32>} : memref<8x256xf32, #tpu.memory_space<vmem>>, vector<8x128xf32>,
    %c0_105 = arith.constant 0 : index
    %c0_106 = arith.constant 0 : index
    %180 = vector.load %arg11[%c0_105, %c0_106] : memref<8x256xf32, #tpu.memory_space<vmem>>, vector<8x256xf32>
    %c0_107 = arith.constant 0 : index
    %c0_108 = arith.constant 0 : index
    %181 = vector.load %arg5[%c0_107, %c0_108] : memref<256x512xf32, #tpu.memory_space<vmem>>, vector<256x512xf32>
    %cst_109 = arith.constant dense<0.000000e+00> : vector<8x512xf32>
    %182 = tpu.matmul %180, %181, %cst_109 {dimension_numbers = #tpu.dot_dimension_numbers<[1], [0], [0], [1], [0, 0, 1, 1], [], []>} : vector<8x256xf32>, vector<256x512xf32>, vector<8x512xf32> -> vector<8x512xf32>
    %183 = arith.addf %182, %5 : vector<8x512xf32>
    %184 = vector.extract_strided_slice %183 {offsets = [0, 0], sizes = [8, 128], strides = [1, 1]} : vector<8x512xf32> to vector<8x128xf32>
    %185 = arith.negf %184 : vector<8x128xf32>
    %186 = math.exp %185 : vector<8x128xf32>
    %cst_110 = arith.constant 1.000000e+00 : f32
    %187 = vector.broadcast %cst_110 : f32 to vector<8x128xf32>
    %188 = arith.addf %187, %186 : vector<8x128xf32>
    %189 = arith.divf %187, %188 : vector<8x128xf32>
    %190 = vector.extract_strided_slice %183 {offsets = [0, 128], sizes = [8, 128], strides = [1, 1]} : vector<8x512xf32> to vector<8x128xf32>
    %191 = arith.negf %190 : vector<8x128xf32>
    %192 = math.exp %191 : vector<8x128xf32>
    %cst_111 = arith.constant 1.000000e+00 : f32
    %193 = vector.broadcast %cst_111 : f32 to vector<8x128xf32>
    %194 = arith.addf %193, %192 : vector<8x128xf32>
    %195 = arith.divf %193, %194 : vector<8x128xf32>
    %196 = vector.extract_strided_slice %183 {offsets = [0, 256], sizes = [8, 128], strides = [1, 1]} : vector<8x512xf32> to vector<8x128xf32>
    %197 = math.tanh %196 : vector<8x128xf32>
    %198 = vector.extract_strided_slice %183 {offsets = [0, 384], sizes = [8, 128], strides = [1, 1]} : vector<8x512xf32> to vector<8x128xf32>
    %199 = arith.negf %198 : vector<8x128xf32>
    %200 = math.exp %199 : vector<8x128xf32>
    %cst_112 = arith.constant 1.000000e+00 : f32
    %201 = vector.broadcast %cst_112 : f32 to vector<8x128xf32>
    %202 = arith.addf %201, %200 : vector<8x128xf32>
    %203 = arith.divf %201, %202 : vector<8x128xf32>
    %c0_113 = arith.constant 0 : index
    %c0_114 = arith.constant 0 : index
    %204 = vector.load %arg10[%c0_113, %c0_114] : memref<8x128xf32, #tpu.memory_space<vmem>>, vector<8x128xf32>
    %205 = arith.mulf %195, %204 : vector<8x128xf32>
    %206 = arith.mulf %189, %197 : vector<8x128xf32>
    %207 = arith.addf %205, %206 : vector<8x128xf32>
    %208 = math.tanh %207 : vector<8x128xf32>
    %209 = arith.mulf %203, %208 : vector<8x128xf32>
    %c0_115 = arith.constant 0 : index
    %c0_116 = arith.constant 0 : index
    %210 = vector.load %arg9[%c0_115, %c0_116] : memref<8x128xf32, #tpu.memory_space<vmem>>, vector<8x128xf32>
    tpu.vector_store %arg9[%c0_115, %c0_116], %209 {strides = array<i32>} : memref<8x128xf32, #tpu.memory_space<vmem>>, vector<8x128xf32>,
    %c0_117 = arith.constant 0 : index
    %c0_118 = arith.constant 0 : index
    %211 = vector.load %arg10[%c0_117, %c0_118] : memref<8x128xf32, #tpu.memory_space<vmem>>, vector<8x128xf32>
    tpu.vector_store %arg10[%c0_117, %c0_118], %207 {strides = array<i32>} : memref<8x128xf32, #tpu.memory_space<vmem>>, vector<8x128xf32>,
    %212 = arith.index_cast %c4_i32 : i32 to index
    %c0_119 = arith.constant 0 : index
    %c0_120 = arith.constant 0 : index
    %213 = vector.load %arg7[%212, %c0_119, %c0_120] : memref<8x8x128xf32, #tpu.memory_space<vmem>>, vector<1x8x128xf32>
    %214 = vector.shape_cast %213 : vector<1x8x128xf32> to vector<8x128xf32>
    %215 = vector.shape_cast %209 : vector<8x128xf32> to vector<1x8x128xf32>
    tpu.vector_store %arg7[%212, %c0_119, %c0_120], %215 {strides = array<i32>} : memref<8x8x128xf32, #tpu.memory_space<vmem>>, vector<1x8x128xf32>,
    %c5_i32 = arith.constant 5 : i32
    %216 = arith.index_cast %c5_i32 : i32 to index
    %c0_121 = arith.constant 0 : index
    %c0_122 = arith.constant 0 : index
    %217 = vector.load %arg2[%216, %c0_121, %c0_122] : memref<8x8x128xf32, #tpu.memory_space<vmem>>, vector<1x8x128xf32>
    %218 = vector.shape_cast %217 : vector<1x8x128xf32> to vector<8x128xf32>
    %c0_123 = arith.constant 0 : index
    %c0_124 = arith.constant 0 : index
    %219 = vector.load %arg11[%c0_123, %c0_124] : memref<8x256xf32, #tpu.memory_space<vmem>>, vector<8x128xf32>
    tpu.vector_store %arg11[%c0_123, %c0_124], %218 {strides = array<i32>} : memref<8x256xf32, #tpu.memory_space<vmem>>, vector<8x128xf32>,
    %c0_125 = arith.constant 0 : index
    %c0_126 = arith.constant 0 : index
    %220 = vector.load %arg9[%c0_125, %c0_126] : memref<8x128xf32, #tpu.memory_space<vmem>>, vector<8x128xf32>
    %c0_127 = arith.constant 0 : index
    %c128_128 = arith.constant 128 : index
    %221 = vector.load %arg11[%c0_127, %c128_128] : memref<8x256xf32, #tpu.memory_space<vmem>>, vector<8x128xf32>
    tpu.vector_store %arg11[%c0_127, %c128_128], %220 {strides = array<i32>} : memref<8x256xf32, #tpu.memory_space<vmem>>, vector<8x128xf32>,
    %c0_129 = arith.constant 0 : index
    %c0_130 = arith.constant 0 : index
    %222 = vector.load %arg11[%c0_129, %c0_130] : memref<8x256xf32, #tpu.memory_space<vmem>>, vector<8x256xf32>
    %c0_131 = arith.constant 0 : index
    %c0_132 = arith.constant 0 : index
    %223 = vector.load %arg5[%c0_131, %c0_132] : memref<256x512xf32, #tpu.memory_space<vmem>>, vector<256x512xf32>
    %cst_133 = arith.constant dense<0.000000e+00> : vector<8x512xf32>
    %224 = tpu.matmul %222, %223, %cst_133 {dimension_numbers = #tpu.dot_dimension_numbers<[1], [0], [0], [1], [0, 0, 1, 1], [], []>} : vector<8x256xf32>, vector<256x512xf32>, vector<8x512xf32> -> vector<8x512xf32>
    %225 = arith.addf %224, %5 : vector<8x512xf32>
    %226 = vector.extract_strided_slice %225 {offsets = [0, 0], sizes = [8, 128], strides = [1, 1]} : vector<8x512xf32> to vector<8x128xf32>
    %227 = arith.negf %226 : vector<8x128xf32>
    %228 = math.exp %227 : vector<8x128xf32>
    %cst_134 = arith.constant 1.000000e+00 : f32
    %229 = vector.broadcast %cst_134 : f32 to vector<8x128xf32>
    %230 = arith.addf %229, %228 : vector<8x128xf32>
    %231 = arith.divf %229, %230 : vector<8x128xf32>
    %232 = vector.extract_strided_slice %225 {offsets = [0, 128], sizes = [8, 128], strides = [1, 1]} : vector<8x512xf32> to vector<8x128xf32>
    %233 = arith.negf %232 : vector<8x128xf32>
    %234 = math.exp %233 : vector<8x128xf32>
    %cst_135 = arith.constant 1.000000e+00 : f32
    %235 = vector.broadcast %cst_135 : f32 to vector<8x128xf32>
    %236 = arith.addf %235, %234 : vector<8x128xf32>
    %237 = arith.divf %235, %236 : vector<8x128xf32>
    %238 = vector.extract_strided_slice %225 {offsets = [0, 256], sizes = [8, 128], strides = [1, 1]} : vector<8x512xf32> to vector<8x128xf32>
    %239 = math.tanh %238 : vector<8x128xf32>
    %240 = vector.extract_strided_slice %225 {offsets = [0, 384], sizes = [8, 128], strides = [1, 1]} : vector<8x512xf32> to vector<8x128xf32>
    %241 = arith.negf %240 : vector<8x128xf32>
    %242 = math.exp %241 : vector<8x128xf32>
    %cst_136 = arith.constant 1.000000e+00 : f32
    %243 = vector.broadcast %cst_136 : f32 to vector<8x128xf32>
    %244 = arith.addf %243, %242 : vector<8x128xf32>
    %245 = arith.divf %243, %244 : vector<8x128xf32>
    %c0_137 = arith.constant 0 : index
    %c0_138 = arith.constant 0 : index
    %246 = vector.load %arg10[%c0_137, %c0_138] : memref<8x128xf32, #tpu.memory_space<vmem>>, vector<8x128xf32>
    %247 = arith.mulf %237, %246 : vector<8x128xf32>
    %248 = arith.mulf %231, %239 : vector<8x128xf32>
    %249 = arith.addf %247, %248 : vector<8x128xf32>
    %250 = math.tanh %249 : vector<8x128xf32>
    %251 = arith.mulf %245, %250 : vector<8x128xf32>
    %c0_139 = arith.constant 0 : index
    %c0_140 = arith.constant 0 : index
    %252 = vector.load %arg9[%c0_139, %c0_140] : memref<8x128xf32, #tpu.memory_space<vmem>>, vector<8x128xf32>
    tpu.vector_store %arg9[%c0_139, %c0_140], %251 {strides = array<i32>} : memref<8x128xf32, #tpu.memory_space<vmem>>, vector<8x128xf32>,
    %c0_141 = arith.constant 0 : index
    %c0_142 = arith.constant 0 : index
    %253 = vector.load %arg10[%c0_141, %c0_142] : memref<8x128xf32, #tpu.memory_space<vmem>>, vector<8x128xf32>
    tpu.vector_store %arg10[%c0_141, %c0_142], %249 {strides = array<i32>} : memref<8x128xf32, #tpu.memory_space<vmem>>, vector<8x128xf32>,
    %254 = arith.index_cast %c5_i32 : i32 to index
    %c0_143 = arith.constant 0 : index
    %c0_144 = arith.constant 0 : index
    %255 = vector.load %arg7[%254, %c0_143, %c0_144] : memref<8x8x128xf32, #tpu.memory_space<vmem>>, vector<1x8x128xf32>
    %256 = vector.shape_cast %255 : vector<1x8x128xf32> to vector<8x128xf32>
    %257 = vector.shape_cast %251 : vector<8x128xf32> to vector<1x8x128xf32>
    tpu.vector_store %arg7[%254, %c0_143, %c0_144], %257 {strides = array<i32>} : memref<8x8x128xf32, #tpu.memory_space<vmem>>, vector<1x8x128xf32>,
    %c6_i32 = arith.constant 6 : i32
    %258 = arith.index_cast %c6_i32 : i32 to index
    %c0_145 = arith.constant 0 : index
    %c0_146 = arith.constant 0 : index
    %259 = vector.load %arg2[%258, %c0_145, %c0_146] : memref<8x8x128xf32, #tpu.memory_space<vmem>>, vector<1x8x128xf32>
    %260 = vector.shape_cast %259 : vector<1x8x128xf32> to vector<8x128xf32>
    %c0_147 = arith.constant 0 : index
    %c0_148 = arith.constant 0 : index
    %261 = vector.load %arg11[%c0_147, %c0_148] : memref<8x256xf32, #tpu.memory_space<vmem>>, vector<8x128xf32>
    tpu.vector_store %arg11[%c0_147, %c0_148], %260 {strides = array<i32>} : memref<8x256xf32, #tpu.memory_space<vmem>>, vector<8x128xf32>,
    %c0_149 = arith.constant 0 : index
    %c0_150 = arith.constant 0 : index
    %262 = vector.load %arg9[%c0_149, %c0_150] : memref<8x128xf32, #tpu.memory_space<vmem>>, vector<8x128xf32>
    %c0_151 = arith.constant 0 : index
    %c128_152 = arith.constant 128 : index
    %263 = vector.load %arg11[%c0_151, %c128_152] : memref<8x256xf32, #tpu.memory_space<vmem>>, vector<8x128xf32>
    tpu.vector_store %arg11[%c0_151, %c128_152], %262 {strides = array<i32>} : memref<8x256xf32, #tpu.memory_space<vmem>>, vector<8x128xf32>,
    %c0_153 = arith.constant 0 : index
    %c0_154 = arith.constant 0 : index
    %264 = vector.load %arg11[%c0_153, %c0_154] : memref<8x256xf32, #tpu.memory_space<vmem>>, vector<8x256xf32>
    %c0_155 = arith.constant 0 : index
    %c0_156 = arith.constant 0 : index
    %265 = vector.load %arg5[%c0_155, %c0_156] : memref<256x512xf32, #tpu.memory_space<vmem>>, vector<256x512xf32>
    %cst_157 = arith.constant dense<0.000000e+00> : vector<8x512xf32>
    %266 = tpu.matmul %264, %265, %cst_157 {dimension_numbers = #tpu.dot_dimension_numbers<[1], [0], [0], [1], [0, 0, 1, 1], [], []>} : vector<8x256xf32>, vector<256x512xf32>, vector<8x512xf32> -> vector<8x512xf32>
    %267 = arith.addf %266, %5 : vector<8x512xf32>
    %268 = vector.extract_strided_slice %267 {offsets = [0, 0], sizes = [8, 128], strides = [1, 1]} : vector<8x512xf32> to vector<8x128xf32>
    %269 = arith.negf %268 : vector<8x128xf32>
    %270 = math.exp %269 : vector<8x128xf32>
    %cst_158 = arith.constant 1.000000e+00 : f32
    %271 = vector.broadcast %cst_158 : f32 to vector<8x128xf32>
    %272 = arith.addf %271, %270 : vector<8x128xf32>
    %273 = arith.divf %271, %272 : vector<8x128xf32>
    %274 = vector.extract_strided_slice %267 {offsets = [0, 128], sizes = [8, 128], strides = [1, 1]} : vector<8x512xf32> to vector<8x128xf32>
    %275 = arith.negf %274 : vector<8x128xf32>
    %276 = math.exp %275 : vector<8x128xf32>
    %cst_159 = arith.constant 1.000000e+00 : f32
    %277 = vector.broadcast %cst_159 : f32 to vector<8x128xf32>
    %278 = arith.addf %277, %276 : vector<8x128xf32>
    %279 = arith.divf %277, %278 : vector<8x128xf32>
    %280 = vector.extract_strided_slice %267 {offsets = [0, 256], sizes = [8, 128], strides = [1, 1]} : vector<8x512xf32> to vector<8x128xf32>
    %281 = math.tanh %280 : vector<8x128xf32>
    %282 = vector.extract_strided_slice %267 {offsets = [0, 384], sizes = [8, 128], strides = [1, 1]} : vector<8x512xf32> to vector<8x128xf32>
    %283 = arith.negf %282 : vector<8x128xf32>
    %284 = math.exp %283 : vector<8x128xf32>
    %cst_160 = arith.constant 1.000000e+00 : f32
    %285 = vector.broadcast %cst_160 : f32 to vector<8x128xf32>
    %286 = arith.addf %285, %284 : vector<8x128xf32>
    %287 = arith.divf %285, %286 : vector<8x128xf32>
    %c0_161 = arith.constant 0 : index
    %c0_162 = arith.constant 0 : index
    %288 = vector.load %arg10[%c0_161, %c0_162] : memref<8x128xf32, #tpu.memory_space<vmem>>, vector<8x128xf32>
    %289 = arith.mulf %279, %288 : vector<8x128xf32>
    %290 = arith.mulf %273, %281 : vector<8x128xf32>
    %291 = arith.addf %289, %290 : vector<8x128xf32>
    %292 = math.tanh %291 : vector<8x128xf32>
    %293 = arith.mulf %287, %292 : vector<8x128xf32>
    %c0_163 = arith.constant 0 : index
    %c0_164 = arith.constant 0 : index
    %294 = vector.load %arg9[%c0_163, %c0_164] : memref<8x128xf32, #tpu.memory_space<vmem>>, vector<8x128xf32>
    tpu.vector_store %arg9[%c0_163, %c0_164], %293 {strides = array<i32>} : memref<8x128xf32, #tpu.memory_space<vmem>>, vector<8x128xf32>,
    %c0_165 = arith.constant 0 : index
    %c0_166 = arith.constant 0 : index
    %295 = vector.load %arg10[%c0_165, %c0_166] : memref<8x128xf32, #tpu.memory_space<vmem>>, vector<8x128xf32>
    tpu.vector_store %arg10[%c0_165, %c0_166], %291 {strides = array<i32>} : memref<8x128xf32, #tpu.memory_space<vmem>>, vector<8x128xf32>,
    %296 = arith.index_cast %c6_i32 : i32 to index
    %c0_167 = arith.constant 0 : index
    %c0_168 = arith.constant 0 : index
    %297 = vector.load %arg7[%296, %c0_167, %c0_168] : memref<8x8x128xf32, #tpu.memory_space<vmem>>, vector<1x8x128xf32>
    %298 = vector.shape_cast %297 : vector<1x8x128xf32> to vector<8x128xf32>
    %299 = vector.shape_cast %293 : vector<8x128xf32> to vector<1x8x128xf32>
    tpu.vector_store %arg7[%296, %c0_167, %c0_168], %299 {strides = array<i32>} : memref<8x8x128xf32, #tpu.memory_space<vmem>>, vector<1x8x128xf32>,
    %c7_i32 = arith.constant 7 : i32
    %300 = arith.index_cast %c7_i32 : i32 to index
    %c0_169 = arith.constant 0 : index
    %c0_170 = arith.constant 0 : index
    %301 = vector.load %arg2[%300, %c0_169, %c0_170] : memref<8x8x128xf32, #tpu.memory_space<vmem>>, vector<1x8x128xf32>
    %302 = vector.shape_cast %301 : vector<1x8x128xf32> to vector<8x128xf32>
    %c0_171 = arith.constant 0 : index
    %c0_172 = arith.constant 0 : index
    %303 = vector.load %arg11[%c0_171, %c0_172] : memref<8x256xf32, #tpu.memory_space<vmem>>, vector<8x128xf32>
    tpu.vector_store %arg11[%c0_171, %c0_172], %302 {strides = array<i32>} : memref<8x256xf32, #tpu.memory_space<vmem>>, vector<8x128xf32>,
    %c0_173 = arith.constant 0 : index
    %c0_174 = arith.constant 0 : index
    %304 = vector.load %arg9[%c0_173, %c0_174] : memref<8x128xf32, #tpu.memory_space<vmem>>, vector<8x128xf32>
    %c0_175 = arith.constant 0 : index
    %c128_176 = arith.constant 128 : index
    %305 = vector.load %arg11[%c0_175, %c128_176] : memref<8x256xf32, #tpu.memory_space<vmem>>, vector<8x128xf32>
    tpu.vector_store %arg11[%c0_175, %c128_176], %304 {strides = array<i32>} : memref<8x256xf32, #tpu.memory_space<vmem>>, vector<8x128xf32>,
    %c0_177 = arith.constant 0 : index
    %c0_178 = arith.constant 0 : index
    %306 = vector.load %arg11[%c0_177, %c0_178] : memref<8x256xf32, #tpu.memory_space<vmem>>, vector<8x256xf32>
    %c0_179 = arith.constant 0 : index
    %c0_180 = arith.constant 0 : index
    %307 = vector.load %arg5[%c0_179, %c0_180] : memref<256x512xf32, #tpu.memory_space<vmem>>, vector<256x512xf32>
    %cst_181 = arith.constant dense<0.000000e+00> : vector<8x512xf32>
    %308 = tpu.matmul %306, %307, %cst_181 {dimension_numbers = #tpu.dot_dimension_numbers<[1], [0], [0], [1], [0, 0, 1, 1], [], []>} : vector<8x256xf32>, vector<256x512xf32>, vector<8x512xf32> -> vector<8x512xf32>
    %309 = arith.addf %308, %5 : vector<8x512xf32>
    %310 = vector.extract_strided_slice %309 {offsets = [0, 0], sizes = [8, 128], strides = [1, 1]} : vector<8x512xf32> to vector<8x128xf32>
    %311 = arith.negf %310 : vector<8x128xf32>
    %312 = math.exp %311 : vector<8x128xf32>
    %cst_182 = arith.constant 1.000000e+00 : f32
    %313 = vector.broadcast %cst_182 : f32 to vector<8x128xf32>
    %314 = arith.addf %313, %312 : vector<8x128xf32>
    %315 = arith.divf %313, %314 : vector<8x128xf32>
    %316 = vector.extract_strided_slice %309 {offsets = [0, 128], sizes = [8, 128], strides = [1, 1]} : vector<8x512xf32> to vector<8x128xf32>
    %317 = arith.negf %316 : vector<8x128xf32>
    %318 = math.exp %317 : vector<8x128xf32>
    %cst_183 = arith.constant 1.000000e+00 : f32
    %319 = vector.broadcast %cst_183 : f32 to vector<8x128xf32>
    %320 = arith.addf %319, %318 : vector<8x128xf32>
    %321 = arith.divf %319, %320 : vector<8x128xf32>
    %322 = vector.extract_strided_slice %309 {offsets = [0, 256], sizes = [8, 128], strides = [1, 1]} : vector<8x512xf32> to vector<8x128xf32>
    %323 = math.tanh %322 : vector<8x128xf32>
    %324 = vector.extract_strided_slice %309 {offsets = [0, 384], sizes = [8, 128], strides = [1, 1]} : vector<8x512xf32> to vector<8x128xf32>
    %325 = arith.negf %324 : vector<8x128xf32>
    %326 = math.exp %325 : vector<8x128xf32>
    %cst_184 = arith.constant 1.000000e+00 : f32
    %327 = vector.broadcast %cst_184 : f32 to vector<8x128xf32>
    %328 = arith.addf %327, %326 : vector<8x128xf32>
    %329 = arith.divf %327, %328 : vector<8x128xf32>
    %c0_185 = arith.constant 0 : index
    %c0_186 = arith.constant 0 : index
    %330 = vector.load %arg10[%c0_185, %c0_186] : memref<8x128xf32, #tpu.memory_space<vmem>>, vector<8x128xf32>
    %331 = arith.mulf %321, %330 : vector<8x128xf32>
    %332 = arith.mulf %315, %323 : vector<8x128xf32>
    %333 = arith.addf %331, %332 : vector<8x128xf32>
    %334 = math.tanh %333 : vector<8x128xf32>
    %335 = arith.mulf %329, %334 : vector<8x128xf32>
    %c0_187 = arith.constant 0 : index
    %c0_188 = arith.constant 0 : index
    %336 = vector.load %arg9[%c0_187, %c0_188] : memref<8x128xf32, #tpu.memory_space<vmem>>, vector<8x128xf32>
    tpu.vector_store %arg9[%c0_187, %c0_188], %335 {strides = array<i32>} : memref<8x128xf32, #tpu.memory_space<vmem>>, vector<8x128xf32>,
    %c0_189 = arith.constant 0 : index
    %c0_190 = arith.constant 0 : index
    %337 = vector.load %arg10[%c0_189, %c0_190] : memref<8x128xf32, #tpu.memory_space<vmem>>, vector<8x128xf32>
    tpu.vector_store %arg10[%c0_189, %c0_190], %333 {strides = array<i32>} : memref<8x128xf32, #tpu.memory_space<vmem>>, vector<8x128xf32>,
    %338 = arith.index_cast %c7_i32 : i32 to index
    %c0_191 = arith.constant 0 : index
    %c0_192 = arith.constant 0 : index
    %339 = vector.load %arg7[%338, %c0_191, %c0_192] : memref<8x8x128xf32, #tpu.memory_space<vmem>>, vector<1x8x128xf32>
    %340 = vector.shape_cast %339 : vector<1x8x128xf32> to vector<8x128xf32>
    %341 = vector.shape_cast %335 : vector<8x128xf32> to vector<1x8x128xf32>
    tpu.vector_store %arg7[%338, %c0_191, %c0_192], %341 {strides = array<i32>} : memref<8x8x128xf32, #tpu.memory_space<vmem>>, vector<1x8x128xf32>,
    %c8_i32 = arith.constant 8 : i32
    %c1_i32_193 = arith.constant 1 : i32
    %342 = arith.cmpi eq, %arg1, %c1_i32_193 : i32
    %343 = arith.extui %342 : i1 to i32
    %c0_i32_194 = arith.constant 0 : i32
    %344 = arith.cmpi ne, %343, %c0_i32_194 : i32
    scf.if %344 {
      %c0_195 = arith.constant 0 : index
      %c0_196 = arith.constant 0 : index
      %345 = vector.load %arg9[%c0_195, %c0_196] : memref<8x128xf32, #tpu.memory_space<vmem>>, vector<8x128xf32>
      %c0_197 = arith.constant 0 : index
      %c0_198 = arith.constant 0 : index
      %346 = vector.load %arg8[%c0_197, %c0_198] : memref<8x256xf32, #tpu.memory_space<vmem>>, vector<8x128xf32>
      tpu.vector_store %arg8[%c0_197, %c0_198], %345 {strides = array<i32>} : memref<8x256xf32, #tpu.memory_space<vmem>>, vector<8x128xf32>,
      %c0_199 = arith.constant 0 : index
      %c0_200 = arith.constant 0 : index
      %347 = vector.load %arg10[%c0_199, %c0_200] : memref<8x128xf32, #tpu.memory_space<vmem>>, vector<8x128xf32>
      %c0_201 = arith.constant 0 : index
      %c128_202 = arith.constant 128 : index
      %348 = vector.load %arg8[%c0_201, %c128_202] : memref<8x256xf32, #tpu.memory_space<vmem>>, vector<8x128xf32>
      tpu.vector_store %arg8[%c0_201, %c128_202], %347 {strides = array<i32>} : memref<8x256xf32, #tpu.memory_space<vmem>>, vector<8x128xf32>,
    } else {
    }
    return
  }
  func.func @transform_0(%arg0: i32, %arg1: i32) -> (i32, i32, i32) {
    %c0_i32 = arith.constant 0 : i32
    %c0_i32_0 = arith.constant 0 : i32
    return %arg1, %arg0, %c0_i32 : i32, i32, i32
  }
  func.func @transform_1(%arg0: i32, %arg1: i32) -> (i32, i32) {
    %c0_i32 = arith.constant 0 : i32
    %c0_i32_0 = arith.constant 0 : i32
    return %arg0, %c0_i32 : i32, i32
  }
  func.func @transform_2(%arg0: i32, %arg1: i32) -> (i32, i32) {
    %c0_i32 = arith.constant 0 : i32
    %c0_i32_0 = arith.constant 0 : i32
    return %arg0, %c0_i32 : i32, i32
  }
  func.func @transform_3(%arg0: i32, %arg1: i32) -> (i32, i32) {
    %c0_i32 = arith.constant 0 : i32
    %c0_i32_0 = arith.constant 0 : i32
    %c0_i32_1 = arith.constant 0 : i32
    return %c0_i32, %c0_i32_0 : i32, i32
  }
  func.func @transform_4(%arg0: i32, %arg1: i32) -> (i32, i32) {
    %c0_i32 = arith.constant 0 : i32
    %c0_i32_0 = arith.constant 0 : i32
    %c0_i32_1 = arith.constant 0 : i32
    return %c0_i32, %c0_i32_0 : i32, i32
  }
  func.func @transform_5(%arg0: i32, %arg1: i32) -> (i32, i32, i32) {
    %c0_i32 = arith.constant 0 : i32
    %c0_i32_0 = arith.constant 0 : i32
    return %arg1, %arg0, %c0_i32 : i32, i32, i32
  }
  func.func @transform_6(%arg0: i32, %arg1: i32) -> (i32, i32) {
    %c0_i32 = arith.constant 0 : i32
    %c0_i32_0 = arith.constant 0 : i32
    return %arg0, %c0_i32 : i32, i32
  }
}

</mosaic_0001>

<llo_original>
// kernel: tpu_custom_call.1
$region0: #{tpu_custom_call.1}
  #allocation0 [shape = 'u32[]', space=smem, size = 0x4, offset = 0x4, fixed_abs, tag = 'smem constant byte address 0x4 - core index']
  #allocation1 [shape = 'u32[144,128]{1,0:T(1,128)}', space=vmem, size = 0x12000, scoped, tag = 'internal scratch']
  #allocation2 [shape = 'f32[8,128]{1,0:T(8,128)}', space=vmem, size = 0x1000, scoped, tag = 'scratch operand']
  #allocation3 [shape = 'f32[8,128]{1,0:T(8,128)}', space=vmem, size = 0x1000, scoped, tag = 'scratch operand']
  #allocation4 [shape = 'f32[8,256]{1,0:T(8,128)}', space=vmem, size = 0x2000, scoped, tag = 'scratch operand']
  %s0 = inlined_call_operand.hbm [shape: f32[16,8,128], index: 0, kind: input, shape index: {}]
  %s1 = inlined_call_operand.hbm [shape: f32[8,128], index: 1, kind: input, shape index: {}]
  %s2 = inlined_call_operand.hbm [shape: f32[8,128], index: 2, kind: input, shape index: {}]
  %s3 = inlined_call_operand.hbm [shape: f32[256,512], index: 3, kind: input, shape index: {}]
  %s4 = inlined_call_operand.vmem [shape: f32[1,512], index: 4, kind: input, shape index: {}]
  %s5 = inlined_call_operand.hbm [shape: f32[16,8,128], index: 5, kind: output, shape index: {0}]
  %s6 = inlined_call_operand.hbm [shape: f32[8,256], index: 6, kind: output, shape index: {1}]
  %7 = xla_tuple %s5, %s6
  %s8 = sld [smem:[#allocation0]]
  $region85: #{tpu_custom_call.1} parent=0
    _
  %s10 = ssub.s32 1, %s8
  %s11 = scalar_select 0, %s10, %s8
  $region1: #{tpu_custom_call.1} parent=0
    #allocation5 [shape = 'u8[65536]{0}', space=vmem, size = 0x10000, scoped, tag = 'input window, operand 0']
    #allocation6 [shape = 's32[2]{0}', space=sflag, size = 0x8, scoped, tag = 'scoped memory for tpu_custom_call.1']
    #allocation7 [shape = 's32[2]{0}', space=sflag, size = 0x8, scoped, tag = 'scoped memory for tpu_custom_call.1']
    #allocation8 [shape = 'u8[4096]{0}', space=vmem, size = 0x1000, scoped, tag = 'input window, operand 1, single buffered']
    #allocation9 [shape = 's32[1]{0}', space=sflag, size = 0x4, scoped, tag = 'scoped memory for tpu_custom_call.1']
    #allocation10 [shape = 'u8[4096]{0}', space=vmem, size = 0x1000, scoped, tag = 'input window, operand 2, single buffered']
    #allocation11 [shape = 'u8[524288]{0}', space=vmem, size = 0x80000, scoped, tag = 'input window, operand 3, single buffered']
    #allocation12 [shape = 's32[1]{0}', space=sflag, size = 0x4, scoped, tag = 'scoped memory for tpu_custom_call.1']
    #allocation13 [shape = 'u8[65536]{0}', space=vmem, size = 0x10000, scoped, tag = 'output window, operand 0']
    #allocation14 [shape = 'u8[8192]{0}', space=vmem, size = 0x2000, scoped, tag = 'output window, operand 1, single buffered']
    #allocation15 [shape = 's32[1]{0}', space=sflag, size = 0x4, scoped, tag = 'scoped memory for tpu_custom_call.1']
    %12 = vsyncpa [#allocation6], 0
    %s13 = scalar_lea.sflag [#allocation6], 1
    %14 = vsyncpa %s13, 0
    %15 = vsyncpa [#allocation9], 0
    %16 = vsyncpa [#allocation12], 0
    %17 = vsyncpa [#allocation7], 0
    %s18 = scalar_lea.sflag [#allocation7], 1
    %19 = vsyncpa %s18, 0
    %20 = vsyncpa [#allocation15], 0
    loop: start=0, step=1, limit=4
    $region2: #{tpu_custom_call.1} parent=1 // loop_pre_header
      _
    $region3: #{tpu_custom_call.1} parent=1 // loop_header
      %s22 = sphi 0, %s26
      %p23 = scmp.ge.s32.totalorder %s22, 4
      %s29 = sphi 0, %s41
      %s30 = sphi 0, %s37
      %s31 = sphi 0, %s29
      %s32 = sphi 0, %s30
      %s33 = sphi 0, %s31
      %s34 = sphi 0, %s32
      %s46 = sphi 0, %s48
      %s49 = sphi 0, %s46
      %s50 = sphi 0, %s49
      %s66 = sphi 0, %s50
      %s72 = sphi 0, %s74
      %s75 = sphi 0, %s72
      %s76 = sphi 0, %s75
      %s92 = sphi 0, %s76
      %s98 = sphi 0, %s100
      %s101 = sphi 0, %s98
      %s102 = sphi 0, %s101
      %s118 = sphi 0, %s102
      %s122 = sphi 0, %s122
      %s124 = sphi 0, %s122
      %s125 = sphi 0, %s124
      %s139 = sphi 0, %s125
      %s143 = sphi 0, %s143
      %s145 = sphi 0, %s143
      %s146 = sphi 0, %s145
      %s160 = sphi 0, %s146
      %s168 = sphi 0, %s170
      %s171 = sphi 0, %s168
      %s172 = sphi 0, %s171
      %s188 = sphi 0, %s172
      %s194 = sphi 0, %s196
      %s197 = sphi 0, %s194
      %s198 = sphi 0, %s197
      %s214 = sphi 0, %s198
    $region4: #{tpu_custom_call.1} parent=1 // loop_header_branch
      %25 = sbr.rel (%p23) target = $region8
    $region5: #{tpu_custom_call.1} parent=1 // loop_body
      %s27 = ssub.s32 %s22, 1
      %s28 = ssub.s32 %s22, 2
      %s35 = sadd.s32 1, %s30
      %p36 = scmp.ge.s32.totalorder %s35, 2
      %s37 = scalar_select %p36, 0, %s35
      %s38 = sadd.s32 1, %s29
      %s39 = scalar_select %p36, %s38, %s29
      %p40 = scmp.ge.s32.totalorder %s39, 1
      %s41 = scalar_select %p40, 0, %s39
      %s42 = ssub.s32 %s30, %s37
      %s43 = ssub.s32 %s29, %s41
      %s44 = sor.u32 %s42, %s43
      %p45 = scmp.eq.s32.totalorder %s44, 0
      %s47 = sadd.s32 %s46, 1
      %s48 = scalar_select %p45, %s46, %s47
      %p51 = pneg %p45
      %p52 = scmp.eq.s32.totalorder %s22, 1
      %p53 = por %p51, %p52
      %p54 = scmp.ne.s32.totalorder %s46, %s49
      %p55 = scmp.eq.s32.totalorder %s22, 0
      %p56 = por %p54, %p55
      %p57 = scmp.ne.s32.totalorder %s46, %s49
      %p58 = scmp.eq.s32.totalorder %s27, 1
      %p59 = por %p57, %p58
      %p60 = scmp.ne.s32.totalorder %s49, %s50
      %p61 = scmp.eq.s32.totalorder %s27, 0
      %p62 = por %p60, %p61
      %p63 = scmp.ne.s32.totalorder %s49, %s50
      %p64 = scmp.eq.s32.totalorder %s28, 1
      %p65 = por %p63, %p64
      %p67 = scmp.ne.s32.totalorder %s50, %s66
      %p68 = scmp.eq.s32.totalorder %s28, 0
      %p69 = por %p67, %p68
      %s70 = ssub.s32 %s29, %s41
      %p71 = scmp.eq.s32.totalorder %s70, 0
      %s73 = sadd.s32 %s72, 1
      %s74 = scalar_select %p71, %s72, %s73
      %p77 = pneg %p71
      %p78 = scmp.eq.s32.totalorder %s22, 1
      %p79 = por %p77, %p78
      %p80 = scmp.ne.s32.totalorder %s72, %s75
      %p81 = scmp.eq.s32.totalorder %s22, 0
      %p82 = por %p80, %p81
      %p83 = scmp.ne.s32.totalorder %s72, %s75
      %p84 = scmp.eq.s32.totalorder %s27, 1
      %p85 = por %p83, %p84
      %p86 = scmp.ne.s32.totalorder %s75, %s76
      %p87 = scmp.eq.s32.totalorder %s27, 0
      %p88 = por %p86, %p87
      %p89 = scmp.ne.s32.totalorder %s75, %s76
      %p90 = scmp.eq.s32.totalorder %s28, 1
      %p91 = por %p89, %p90
      %p93 = scmp.ne.s32.totalorder %s76, %s92
      %p94 = scmp.eq.s32.totalorder %s28, 0
      %p95 = por %p93, %p94
      %s96 = ssub.s32 %s29, %s41
      %p97 = scmp.eq.s32.totalorder %s96, 0
      %s99 = sadd.s32 %s98, 1
      %s100 = scalar_select %p97, %s98, %s99
      %p103 = pneg %p97
      %p104 = scmp.eq.s32.totalorder %s22, 1
      %p105 = por %p103, %p104
      %p106 = scmp.ne.s32.totalorder %s98, %s101
      %p107 = scmp.eq.s32.totalorder %s22, 0
      %p108 = por %p106, %p107
      %p109 = scmp.ne.s32.totalorder %s98, %s101
      %p110 = scmp.eq.s32.totalorder %s27, 1
      %p111 = por %p109, %p110
      %p112 = scmp.ne.s32.totalorder %s101, %s102
      %p113 = scmp.eq.s32.totalorder %s27, 0
      %p114 = por %p112, %p113
      %p115 = scmp.ne.s32.totalorder %s101, %s102
      %p116 = scmp.eq.s32.totalorder %s28, 1
      %p117 = por %p115, %p116
      %p119 = scmp.ne.s32.totalorder %s102, %s118
      %p120 = scmp.eq.s32.totalorder %s28, 0
      %p121 = por %p119, %p120
      %s123 = sadd.s32 %s122, 1
      %p126 = scmp.eq.s32.totalorder %s22, 1
      %p127 = scmp.ne.s32.totalorder %s122, %s124
      %p128 = scmp.eq.s32.totalorder %s22, 0
      %p129 = por %p127, %p128
      %p130 = scmp.ne.s32.totalorder %s122, %s124
      %p131 = scmp.eq.s32.totalorder %s27, 1
      %p132 = por %p130, %p131
      %p133 = scmp.ne.s32.totalorder %s124, %s125
      %p134 = scmp.eq.s32.totalorder %s27, 0
      %p135 = por %p133, %p134
      %p136 = scmp.ne.s32.totalorder %s124, %s125
      %p137 = scmp.eq.s32.totalorder %s28, 1
      %p138 = por %p136, %p137
      %p140 = scmp.ne.s32.totalorder %s125, %s139
      %p141 = scmp.eq.s32.totalorder %s28, 0
      %p142 = por %p140, %p141
      %s144 = sadd.s32 %s143, 1
      %p147 = scmp.eq.s32.totalorder %s22, 1
      %p148 = scmp.ne.s32.totalorder %s143, %s145
      %p149 = scmp.eq.s32.totalorder %s22, 0
      %p150 = por %p148, %p149
      %p151 = scmp.ne.s32.totalorder %s143, %s145
      %p152 = scmp.eq.s32.totalorder %s27, 1
      %p153 = por %p151, %p152
      %p154 = scmp.ne.s32.totalorder %s145, %s146
      %p155 = scmp.eq.s32.totalorder %s27, 0
      %p156 = por %p154, %p155
      %p157 = scmp.ne.s32.totalorder %s145, %s146
      %p158 = scmp.eq.s32.totalorder %s28, 1
      %p159 = por %p157, %p158
      %p161 = scmp.ne.s32.totalorder %s146, %s160
      %p162 = scmp.eq.s32.totalorder %s28, 0
      %p163 = por %p161, %p162
      %s164 = ssub.s32 %s30, %s37
      %s165 = ssub.s32 %s29, %s41
      %s166 = sor.u32 %s164, %s165
      %p167 = scmp.eq.s32.totalorder %s166, 0
      %s169 = sadd.s32 %s168, 1
      %s170 = scalar_select %p167, %s168, %s169
      %p173 = pneg %p167
      %p174 = scmp.eq.s32.totalorder %s22, 1
      %p175 = por %p173, %p174
      %p176 = scmp.ne.s32.totalorder %s168, %s171
      %p177 = scmp.eq.s32.totalorder %s22, 0
      %p178 = por %p176, %p177
      %p179 = scmp.ne.s32.totalorder %s168, %s171
      %p180 = scmp.eq.s32.totalorder %s27, 1
      %p181 = por %p179, %p180
      %p182 = scmp.ne.s32.totalorder %s171, %s172
      %p183 = scmp.eq.s32.totalorder %s27, 0
      %p184 = por %p182, %p183
      %p185 = scmp.ne.s32.totalorder %s171, %s172
      %p186 = scmp.eq.s32.totalorder %s28, 1
      %p187 = por %p185, %p186
      %p189 = scmp.ne.s32.totalorder %s172, %s188
      %p190 = scmp.eq.s32.totalorder %s28, 0
      %p191 = por %p189, %p190
      %s192 = ssub.s32 %s29, %s41
      %p193 = scmp.eq.s32.totalorder %s192, 0
      %s195 = sadd.s32 %s194, 1
      %s196 = scalar_select %p193, %s194, %s195
      %p199 = pneg %p193
      %p200 = scmp.eq.s32.totalorder %s22, 1
      %p201 = por %p199, %p200
      %p202 = scmp.ne.s32.totalorder %s194, %s197
      %p203 = scmp.eq.s32.totalorder %s22, 0
      %p204 = por %p202, %p203
      %p205 = scmp.ne.s32.totalorder %s194, %s197
      %p206 = scmp.eq.s32.totalorder %s27, 1
      %p207 = por %p205, %p206
      %p208 = scmp.ne.s32.totalorder %s197, %s198
      %p209 = scmp.eq.s32.totalorder %s27, 0
      %p210 = por %p208, %p209
      %p211 = scmp.ne.s32.totalorder %s197, %s198
      %p212 = scmp.eq.s32.totalorder %s28, 1
      %p213 = por %p211, %p212
      %p215 = scmp.ne.s32.totalorder %s198, %s214
      %p216 = scmp.eq.s32.totalorder %s28, 0
      %p217 = por %p215, %p216
      %p218 = scmp.le.s32.totalorder 1, %s22
      %p219 = scmp.lt.s32.totalorder %s22, 3
      %p220 = pnand %p218, %p219
      %p221 = pneg %p220
      // Predicated region
      $region9: #{tpu_custom_call.1} parent=5 // pred_check
        _
      $region10: #{tpu_custom_call.1} parent=5 // pred_check_branch
        %223 = sbr.rel (%p220) target = $region12
      $region11: #{tpu_custom_call.1} parent=5 // pred_region
        %s224 = ssub.s32 %s22, 1
        // Predicated region
        $region13: #{tpu_custom_call.1} parent=11 // pred_check
          %p225 = pneg %p88
        $region14: #{tpu_custom_call.1} parent=11 // pred_check_branch
          %227 = sbr.rel (%p225) target = $region16
        $region15: #{tpu_custom_call.1} parent=11 // pred_region
          %s229 = ssub.s32 128, 128
          %230 = vsyncadd [#allocation9], %s229
          %s231 = smul.addr %s31, 128
          %s232 = scalar_lea.hbm %s1, %s231
          %s234 = sshll.u32 [#allocation8], 4
          %s235 = int_to_ptr.vmem [resolvable:$true] %s234
          %237 = dma.hbm_to_vmem [thread:$0]  %s232, 128, %s235, [#allocation9]
        $region16: #{tpu_custom_call.1} parent=11 // pred_fallthru
          _
        // Predicated region
        $region17: #{tpu_custom_call.1} parent=11 // pred_check
          %p238 = pneg %p114
        $region18: #{tpu_custom_call.1} parent=11 // pred_check_branch
          %240 = sbr.rel (%p238) target = $region20
        $region19: #{tpu_custom_call.1} parent=11 // pred_region
          %s242 = ssub.s32 128, 128
          %243 = vsyncadd [#allocation9], %s242
          %s244 = smul.addr %s31, 128
          %s245 = scalar_lea.hbm %s2, %s244
          %s247 = sshll.u32 [#allocation10], 4
          %s248 = int_to_ptr.vmem [resolvable:$true] %s247
          %250 = dma.hbm_to_vmem [thread:$0]  %s245, 128, %s248, [#allocation9]
        $region20: #{tpu_custom_call.1} parent=11 // pred_fallthru
          _
        // Predicated region
        $region21: #{tpu_custom_call.1} parent=11 // pred_check
          %p251 = pneg %p135
        $region22: #{tpu_custom_call.1} parent=11 // pred_check_branch
          %253 = sbr.rel (%p251) target = $region24
        $region23: #{tpu_custom_call.1} parent=11 // pred_region
          %s255 = ssub.s32 16384, 16384
          %256 = vsyncadd [#allocation12], %s255
          %s257 = sshll.u32 [#allocation11], 4
          %s258 = int_to_ptr.vmem [resolvable:$true] %s257
          %263 = dma.hbm_to_vmem [thread:$0]  %s3, 16384, %s258, [#allocation12], 512, 512, 32
        $region24: #{tpu_custom_call.1} parent=11 // pred_fallthru
          _
        // Predicated region
        $region25: #{tpu_custom_call.1} parent=11 // pred_check
          %p264 = pneg %p156
        $region26: #{tpu_custom_call.1} parent=11 // pred_check_branch
          %266 = sbr.rel (%p264) target = $region28
        $region27: #{tpu_custom_call.1} parent=11 // pred_region
          _
        $region28: #{tpu_custom_call.1} parent=11 // pred_fallthru
          _
      $region12: #{tpu_custom_call.1} parent=5 // pred_fallthru
        _
      %p267 = scmp.lt.s32.totalorder %s22, 2
      // Predicated region
      $region29: #{tpu_custom_call.1} parent=5 // pred_check
        %p268 = pneg %p267
      $region30: #{tpu_custom_call.1} parent=5 // pred_check_branch
        %270 = sbr.rel (%p268) target = $region32
      $region31: #{tpu_custom_call.1} parent=5 // pred_region
        // Predicated region
        $region33: #{tpu_custom_call.1} parent=31 // pred_check
          %p271 = pneg %p56
        $region34: #{tpu_custom_call.1} parent=31 // pred_check_branch
          %273 = sbr.rel (%p271) target = $region36
        $region35: #{tpu_custom_call.1} parent=31 // pred_region
          %s274 = sand.u32 %s46, 1
          %s275 = scalar_lea.sflag [#allocation6], %s274
          %s276 = sand.u32 %s46, 1
          %s277 = smul.addr %s276, 64
          %s278 = scalar_lea.vmem [#allocation5], %s277
          %s279 = smul.u32 8, %s30
          %s281 = ssub.s32 1024, 1024
          %282 = vsyncadd %s275, %s281
          %s283 = sadd.s32 %s29, %s279
          %s284 = smul.addr %s283, 128
          %s285 = scalar_lea.hbm %s0, %s284
          %s286 = sshll.u32 %s278, 4
          %s287 = int_to_ptr.vmem [resolvable:$true] %s286
          %292 = dma.hbm_to_vmem [thread:$0]  %s285, 1024, %s287, %s275, 128, 128, 8
        $region36: #{tpu_custom_call.1} parent=31 // pred_fallthru
          _
      $region32: #{tpu_custom_call.1} parent=5 // pred_fallthru
        _
      %p293 = scmp.le.s32.totalorder 1, %s22
      %p294 = scmp.lt.s32.totalorder %s22, 3
      %p295 = pnand %p293, %p294
      %p296 = pneg %p295
      // Predicated region
      $region37: #{tpu_custom_call.1} parent=5 // pred_check
        _
      $region38: #{tpu_custom_call.1} parent=5 // pred_check_branch
        %298 = sbr.rel (%p295) target = $region40
      $region39: #{tpu_custom_call.1} parent=5 // pred_region
        %s299 = ssub.s32 %s22, 1
        %s300 = sand.u32 %s49, 1
        %s301 = scalar_lea.sflag [#allocation6], %s300
        %s302 = sand.u32 %s49, 1
        %s303 = smul.addr %s302, 64
        %s304 = scalar_lea.vmem [#allocation5], %s303
        // Predicated region
        $region41: #{tpu_custom_call.1} parent=39 // pred_check
          %p305 = pneg %p62
        $region42: #{tpu_custom_call.1} parent=39 // pred_check_branch
          %307 = sbr.rel (%p305) target = $region44
        $region43: #{tpu_custom_call.1} parent=39 // pred_region
          %308 = dma.done %s301, 1024
        $region44: #{tpu_custom_call.1} parent=39 // pred_fallthru
          _
        // Predicated region
        $region45: #{tpu_custom_call.1} parent=39 // pred_check
          %p309 = pneg %p88
        $region46: #{tpu_custom_call.1} parent=39 // pred_check_branch
          %311 = sbr.rel (%p309) target = $region48
        $region47: #{tpu_custom_call.1} parent=39 // pred_region
          %312 = dma.done [#allocation9], 128
        $region48: #{tpu_custom_call.1} parent=39 // pred_fallthru
          _
        // Predicated region
        $region49: #{tpu_custom_call.1} parent=39 // pred_check
          %p313 = pneg %p114
        $region50: #{tpu_custom_call.1} parent=39 // pred_check_branch
          %315 = sbr.rel (%p313) target = $region52
        $region51: #{tpu_custom_call.1} parent=39 // pred_region
          %316 = dma.done [#allocation9], 128
        $region52: #{tpu_custom_call.1} parent=39 // pred_fallthru
          _
        // Predicated region
        $region53: #{tpu_custom_call.1} parent=39 // pred_check
          %p317 = pneg %p135
        $region54: #{tpu_custom_call.1} parent=39 // pred_check_branch
          %319 = sbr.rel (%p317) target = $region56
        $region55: #{tpu_custom_call.1} parent=39 // pred_region
          %320 = dma.done [#allocation12], 16384
        $region56: #{tpu_custom_call.1} parent=39 // pred_fallthru
          _
        %s321 = sand.u32 %s49, 1
        %s322 = scalar_lea.sflag [#allocation6], %s321
        %s323 = sand.u32 %s49, 1
        %s324 = smul.addr %s323, 64
        %s325 = scalar_lea.vmem [#allocation5], %s324
        %p326 = pneg %p62
        %p327 = pneg %p59
        %p328 = pneg %p88
        %p329 = pneg %p85
        %p330 = pneg %p114
        %p331 = pneg %p111
        %p332 = pneg %p135
        %p333 = pneg %p132
        %p334 = pneg %p156
        %p335 = pneg %p153
        %p336 = pneg %p184
        %p337 = pneg %p181
        %s338 = sand.u32 %s171, 1
        %s339 = scalar_lea.sflag [#allocation7], %s338
        %s340 = sand.u32 %s171, 1
        %s341 = smul.addr %s340, 64
        %s342 = scalar_lea.vmem [#allocation13], %s341
        %p343 = pneg %p210
        %p344 = pneg %p207
        %s345 = smul.u32 8, %s32
        %s346 = smul.u32 8, %s32
        %p347 = scmp.eq.s32.totalorder %s32, 0
        // Predicated region
        $region57: #{tpu_custom_call.1} parent=39 // pred_check
          %p348 = pneg %p347
        $region58: #{tpu_custom_call.1} parent=39 // pred_check_branch
          %350 = sbr.rel (%p348) target = $region60
        $region59: #{tpu_custom_call.1} parent=39 // pred_region
          %v351 = vld [vmem:[#allocation8] sm:$0xff]
          %352 = vst [vmem:[#allocation2] sm:$0xff] %v351
          %v353 = vld [vmem:[#allocation10] sm:$0xff]
          %354 = vst [vmem:[#allocation3] sm:$0xff] %v353
        $region60: #{tpu_custom_call.1} parent=39 // pred_fallthru
          _
        %v355 = vld [vmem:[%s4] sm:$0xf]
        %v357 = vlaneseq
        %v358 = vshrl.u32 %v357, 7
        %v359 = vsub.s32 0, %v358
        %v360 = vrot.slane %v355, %v359
        %v361 = vlaneseq
        %v362 = vshrl.u32 %v361, 7
        %v363 = vsub.s32 1, %v362
        %v364 = vrot.slane %v355, %v363
        %v365 = vlaneseq
        %v366 = vshrl.u32 %v365, 7
        %v367 = vsub.s32 2, %v366
        %v368 = vrot.slane %v355, %v367
        %v369 = vlaneseq
        %v370 = vshrl.u32 %v369, 7
        %v371 = vsub.s32 3, %v370
        %v372 = vrot.slane %v355, %v371
        %v377 = vld [vmem:[%s304] sm:$0xff]
        %378 = vst [vmem:[#allocation4] sm:$0xff] %v377
        %v379 = vld [vmem:[#allocation2] sm:$0xff]
        %380 = vst [vmem:[#allocation4 + $0x8] sm:$0xff] %v379
        %v381 = vld [vmem:[#allocation4] sm:$0xff]
        %v382 = vld [vmem:[#allocation4 + $0x8] sm:$0xff]
        %v383 = vld [vmem:[#allocation11] sm:$0xff]
        %v384 = vld [vmem:[#allocation11 + $0x8] sm:$0xff]
        %v385 = vld [vmem:[#allocation11 + $0x10] sm:$0xff]
        %v386 = vld [vmem:[#allocation11 + $0x18] sm:$0xff]
        %v387 = vld [vmem:[#allocation11 + $0x20] sm:$0xff]
        %v388 = vld [vmem:[#allocation11 + $0x28] sm:$0xff]
        %v389 = vld [vmem:[#allocation11 + $0x30] sm:$0xff]
        %v390 = vld [vmem:[#allocation11 + $0x38] sm:$0xff]
        %v391 = vld [vmem:[#allocation11 + $0x40] sm:$0xff]
        %v392 = vld [vmem:[#allocation11 + $0x48] sm:$0xff]
        %v393 = vld [vmem:[#allocation11 + $0x50] sm:$0xff]
        %v394 = vld [vmem:[#allocation11 + $0x58] sm:$0xff]
        %v395 = vld [vmem:[#allocation11 + $0x60] sm:$0xff]
        %v396 = vld [vmem:[#allocation11 + $0x68] sm:$0xff]
        %v397 = vld [vmem:[#allocation11 + $0x70] sm:$0xff]
        %v398 = vld [vmem:[#allocation11 + $0x78] sm:$0xff]
        %v399 = vld [vmem:[#allocation11 + $0x80] sm:$0xff]
        %v400 = vld [vmem:[#allocation11 + $0x88] sm:$0xff]
        %v401 = vld [vmem:[#allocation11 + $0x90] sm:$0xff]
        %v402 = vld [vmem:[#allocation11 + $0x98] sm:$0xff]
        %v403 = vld [vmem:[#allocation11 + $0xa0] sm:$0xff]
        %v404 = vld [vmem:[#allocation11 + $0xa8] sm:$0xff]
        %v405 = vld [vmem:[#allocation11 + $0xb0] sm:$0xff]
        %v406 = vld [vmem:[#allocation11 + $0xb8] sm:$0xff]
        %v407 = vld [vmem:[#allocation11 + $0xc0] sm:$0xff]
        %v408 = vld [vmem:[#allocation11 + $0xc8] sm:$0xff]
        %v409 = vld [vmem:[#allocation11 + $0xd0] sm:$0xff]
        %v410 = vld [vmem:[#allocation11 + $0xd8] sm:$0xff]
        %v411 = vld [vmem:[#allocation11 + $0xe0] sm:$0xff]
        %v412 = vld [vmem:[#allocation11 + $0xe8] sm:$0xff]
        %v413 = vld [vmem:[#allocation11 + $0xf0] sm:$0xff]
        %v414 = vld [vmem:[#allocation11 + $0xf8] sm:$0xff]
        %v415 = vld [vmem:[#allocation11 + $0x100] sm:$0xff]
        %v416 = vld [vmem:[#allocation11 + $0x108] sm:$0xff]
        %v417 = vld [vmem:[#allocation11 + $0x110] sm:$0xff]
        %v418 = vld [vmem:[#allocation11 + $0x118] sm:$0xff]
        %v419 = vld [vmem:[#allocation11 + $0x120] sm:$0xff]
        %v420 = vld [vmem:[#allocation11 + $0x128] sm:$0xff]
        %v421 = vld [vmem:[#allocation11 + $0x130] sm:$0xff]
        %v422 = vld [vmem:[#allocation11 + $0x138] sm:$0xff]
        %v423 = vld [vmem:[#allocation11 + $0x140] sm:$0xff]
        %v424 = vld [vmem:[#allocation11 + $0x148] sm:$0xff]
        %v425 = vld [vmem:[#allocation11 + $0x150] sm:$0xff]
        %v426 = vld [vmem:[#allocation11 + $0x158] sm:$0xff]
        %v427 = vld [vmem:[#allocation11 + $0x160] sm:$0xff]
        %v428 = vld [vmem:[#allocation11 + $0x168] sm:$0xff]
        %v429 = vld [vmem:[#allocation11 + $0x170] sm:$0xff]
        %v430 = vld [vmem:[#allocation11 + $0x178] sm:$0xff]
        %v431 = vld [vmem:[#allocation11 + $0x180] sm:$0xff]
        %v432 = vld [vmem:[#allocation11 + $0x188] sm:$0xff]
        %v433 = vld [vmem:[#allocation11 + $0x190] sm:$0xff]
        %v434 = vld [vmem:[#allocation11 + $0x198] sm:$0xff]
        %v435 = vld [vmem:[#allocation11 + $0x1a0] sm:$0xff]
        %v436 = vld [vmem:[#allocation11 + $0x1a8] sm:$0xff]
        %v437 = vld [vmem:[#allocation11 + $0x1b0] sm:$0xff]
        %v438 = vld [vmem:[#allocation11 + $0x1b8] sm:$0xff]
        %v439 = vld [vmem:[#allocation11 + $0x1c0] sm:$0xff]
        %v440 = vld [vmem:[#allocation11 + $0x1c8] sm:$0xff]
        %v441 = vld [vmem:[#allocation11 + $0x1d0] sm:$0xff]
        %v442 = vld [vmem:[#allocation11 + $0x1d8] sm:$0xff]
        %v443 = vld [vmem:[#allocation11 + $0x1e0] sm:$0xff]
        %v444 = vld [vmem:[#allocation11 + $0x1e8] sm:$0xff]
        %v445 = vld [vmem:[#allocation11 + $0x1f0] sm:$0xff]
        %v446 = vld [vmem:[#allocation11 + $0x1f8] sm:$0xff]
        %v447 = vld [vmem:[#allocation11 + $0x200] sm:$0xff]
        %v448 = vld [vmem:[#allocation11 + $0x208] sm:$0xff]
        %v449 = vld [vmem:[#allocation11 + $0x210] sm:$0xff]
        %v450 = vld [vmem:[#allocation11 + $0x218] sm:$0xff]
        %v451 = vld [vmem:[#allocation11 + $0x220] sm:$0xff]
        %v452 = vld [vmem:[#allocation11 + $0x228] sm:$0xff]
        %v453 = vld [vmem:[#allocation11 + $0x230] sm:$0xff]
        %v454 = vld [vmem:[#allocation11 + $0x238] sm:$0xff]
        %v455 = vld [vmem:[#allocation11 + $0x240] sm:$0xff]
        %v456 = vld [vmem:[#allocation11 + $0x248] sm:$0xff]
        %v457 = vld [vmem:[#allocation11 + $0x250] sm:$0xff]
        %v458 = vld [vmem:[#allocation11 + $0x258] sm:$0xff]
        %v459 = vld [vmem:[#allocation11 + $0x260] sm:$0xff]
        %v460 = vld [vmem:[#allocation11 + $0x268] sm:$0xff]
        %v461 = vld [vmem:[#allocation11 + $0x270] sm:$0xff]
        %v462 = vld [vmem:[#allocation11 + $0x278] sm:$0xff]
        %v463 = vld [vmem:[#allocation11 + $0x280] sm:$0xff]
        %v464 = vld [vmem:[#allocation11 + $0x288] sm:$0xff]
        %v465 = vld [vmem:[#allocation11 + $0x290] sm:$0xff]
        %v466 = vld [vmem:[#allocation11 + $0x298] sm:$0xff]
        %v467 = vld [vmem:[#allocation11 + $0x2a0] sm:$0xff]
        %v468 = vld [vmem:[#allocation11 + $0x2a8] sm:$0xff]
        %v469 = vld [vmem:[#allocation11 + $0x2b0] sm:$0xff]
        %v470 = vld [vmem:[#allocation11 + $0x2b8] sm:$0xff]
        %v471 = vld [vmem:[#allocation11 + $0x2c0] sm:$0xff]
        %v472 = vld [vmem:[#allocation11 + $0x2c8] sm:$0xff]
        %v473 = vld [vmem:[#allocation11 + $0x2d0] sm:$0xff]
        %v474 = vld [vmem:[#allocation11 + $0x2d8] sm:$0xff]
        %v475 = vld [vmem:[#allocation11 + $0x2e0] sm:$0xff]
        %v476 = vld [vmem:[#allocation11 + $0x2e8] sm:$0xff]
        %v477 = vld [vmem:[#allocation11 + $0x2f0] sm:$0xff]
        %v478 = vld [vmem:[#allocation11 + $0x2f8] sm:$0xff]
        %v479 = vld [vmem:[#allocation11 + $0x300] sm:$0xff]
        %v480 = vld [vmem:[#allocation11 + $0x308] sm:$0xff]
        %v481 = vld [vmem:[#allocation11 + $0x310] sm:$0xff]
        %v482 = vld [vmem:[#allocation11 + $0x318] sm:$0xff]
        %v483 = vld [vmem:[#allocation11 + $0x320] sm:$0xff]
        %v484 = vld [vmem:[#allocation11 + $0x328] sm:$0xff]
        %v485 = vld [vmem:[#allocation11 + $0x330] sm:$0xff]
        %v486 = vld [vmem:[#allocation11 + $0x338] sm:$0xff]
        %v487 = vld [vmem:[#allocation11 + $0x340] sm:$0xff]
        %v488 = vld [vmem:[#allocation11 + $0x348] sm:$0xff]
        %v489 = vld [vmem:[#allocation11 + $0x350] sm:$0xff]
        %v490 = vld [vmem:[#allocation11 + $0x358] sm:$0xff]
        %v491 = vld [vmem:[#allocation11 + $0x360] sm:$0xff]
        %v492 = vld [vmem:[#allocation11 + $0x368] sm:$0xff]
        %v493 = vld [vmem:[#allocation11 + $0x370] sm:$0xff]
        %v494 = vld [vmem:[#allocation11 + $0x378] sm:$0xff]
        %v495 = vld [vmem:[#allocation11 + $0x380] sm:$0xff]
        %v496 = vld [vmem:[#allocation11 + $0x388] sm:$0xff]
        %v497 = vld [vmem:[#allocation11 + $0x390] sm:$0xff]
        %v498 = vld [vmem:[#allocation11 + $0x398] sm:$0xff]
        %v499 = vld [vmem:[#allocation11 + $0x3a0] sm:$0xff]
        %v500 = vld [vmem:[#allocation11 + $0x3a8] sm:$0xff]
        %v501 = vld [vmem:[#allocation11 + $0x3b0] sm:$0xff]
        %v502 = vld [vmem:[#allocation11 + $0x3b8] sm:$0xff]
        %v503 = vld [vmem:[#allocation11 + $0x3c0] sm:$0xff]
        %v504 = vld [vmem:[#allocation11 + $0x3c8] sm:$0xff]
        %v505 = vld [vmem:[#allocation11 + $0x3d0] sm:$0xff]
        %v506 = vld [vmem:[#allocation11 + $0x3d8] sm:$0xff]
        %v507 = vld [vmem:[#allocation11 + $0x3e0] sm:$0xff]
        %v508 = vld [vmem:[#allocation11 + $0x3e8] sm:$0xff]
        %v509 = vld [vmem:[#allocation11 + $0x3f0] sm:$0xff]
        %v510 = vld [vmem:[#allocation11 + $0x3f8] sm:$0xff]
        %511 = vmatprep.subr.mxu0 %v384
        %512 = vmatpush1.msra.mxu0 %v383
        %513 = vmatprep.subr.mxu0 %v388
        %514 = vmatpush1.msra.mxu0 %v387
        %515 = vmatprep.subr.mxu0 %v392
        %516 = vmatpush1.msra.mxu0 %v391
        %517 = vmatprep.subr.mxu0 %v396
        %518 = vmatpush1.msra.mxu0 %v395
        %519 = vmatprep.subr.mxu0 %v400
        %520 = vmatpush1.msra.mxu0 %v399
        %521 = vmatprep.subr.mxu0 %v404
        %522 = vmatpush1.msra.mxu0 %v403
        %523 = vmatprep.subr.mxu0 %v408
        %524 = vmatpush1.msra.mxu0 %v407
        %525 = vmatprep.subr.mxu0 %v412
        %526 = vmatpush1.msra.mxu0 %v411
        %527 = vmatprep.subr.mxu0 %v416
        %528 = vmatpush1.msra.mxu0 %v415
        %529 = vmatprep.subr.mxu0 %v420
        %530 = vmatpush1.msra.mxu0 %v419
        %531 = vmatprep.subr.mxu0 %v424
        %532 = vmatpush1.msra.mxu0 %v423
        %533 = vmatprep.subr.mxu0 %v428
        %534 = vmatpush1.msra.mxu0 %v427
        %535 = vmatprep.subr.mxu0 %v432
        %536 = vmatpush1.msra.mxu0 %v431
        %537 = vmatprep.subr.mxu0 %v436
        %538 = vmatpush1.msra.mxu0 %v435
        %539 = vmatprep.subr.mxu0 %v440
        %540 = vmatpush1.msra.mxu0 %v439
        %541 = vmatprep.subr.mxu0 %v444
        %542 = vmatpush1.msra.mxu0 %v443
        %543 = vmatprep.subr.mxu0 %v448
        %544 = vmatpush1.msra.mxu0 %v447
        %545 = vmatprep.subr.mxu0 %v452
        %546 = vmatpush1.msra.mxu0 %v451
        %547 = vmatprep.subr.mxu0 %v456
        %548 = vmatpush1.msra.mxu0 %v455
        %549 = vmatprep.subr.mxu0 %v460
        %550 = vmatpush1.msra.mxu0 %v459
        %551 = vmatprep.subr.mxu0 %v464
        %552 = vmatpush1.msra.mxu0 %v463
        %553 = vmatprep.subr.mxu0 %v468
        %554 = vmatpush1.msra.mxu0 %v467
        %555 = vmatprep.subr.mxu0 %v472
        %556 = vmatpush1.msra.mxu0 %v471
        %557 = vmatprep.subr.mxu0 %v476
        %558 = vmatpush1.msra.mxu0 %v475
        %559 = vmatprep.subr.mxu0 %v480
        %560 = vmatpush1.msra.mxu0 %v479
        %561 = vmatprep.subr.mxu0 %v484
        %562 = vmatpush1.msra.mxu0 %v483
        %563 = vmatprep.subr.mxu0 %v488
        %564 = vmatpush1.msra.mxu0 %v487
        %565 = vmatprep.subr.mxu0 %v492
        %566 = vmatpush1.msra.mxu0 %v491
        %567 = vmatprep.subr.mxu0 %v496
        %568 = vmatpush1.msra.mxu0 %v495
        %569 = vmatprep.subr.mxu0 %v500
        %570 = vmatpush1.msra.mxu0 %v499
        %571 = vmatprep.subr.mxu0 %v504
        %572 = vmatpush1.msra.mxu0 %v503
        %573 = vmatprep.subr.mxu0 %v508
        %574 = vmatpush1.msra.mxu0 %v507
        %575 = vmatprep.mubr.f32.mxu0 %v382
        %576 = vmatmul.mubr.f32.gmra.mrb[0].mxu0 %v381
        %v577 = vpop.f32.mrb[0].mxu0
        %v578 = vadd.f32 %v360, %v577
        %v579 = vpop.f32.mrb[0].mxu0
        %v580 = vadd.f32 %v364, %v579
        %581 = vdwg.mxu0
        %582 = vmatprep.subr.mxu0 %v386
        %583 = vmatpush1.msra.mxu0 %v385
        %584 = vmatprep.subr.mxu0 %v390
        %585 = vmatpush1.msra.mxu0 %v389
        %586 = vmatprep.subr.mxu0 %v394
        %587 = vmatpush1.msra.mxu0 %v393
        %588 = vmatprep.subr.mxu0 %v398
        %589 = vmatpush1.msra.mxu0 %v397
        %590 = vmatprep.subr.mxu0 %v402
        %591 = vmatpush1.msra.mxu0 %v401
        %592 = vmatprep.subr.mxu0 %v406
        %593 = vmatpush1.msra.mxu0 %v405
        %594 = vmatprep.subr.mxu0 %v410
        %595 = vmatpush1.msra.mxu0 %v409
        %596 = vmatprep.subr.mxu0 %v414
        %597 = vmatpush1.msra.mxu0 %v413
        %598 = vmatprep.subr.mxu0 %v418
        %599 = vmatpush1.msra.mxu0 %v417
        %600 = vmatprep.subr.mxu0 %v422
        %601 = vmatpush1.msra.mxu0 %v421
        %602 = vmatprep.subr.mxu0 %v426
        %603 = vmatpush1.msra.mxu0 %v425
        %604 = vmatprep.subr.mxu0 %v430
        %605 = vmatpush1.msra.mxu0 %v429
        %606 = vmatprep.subr.mxu0 %v434
        %607 = vmatpush1.msra.mxu0 %v433
        %608 = vmatprep.subr.mxu0 %v438
        %609 = vmatpush1.msra.mxu0 %v437
        %610 = vmatprep.subr.mxu0 %v442
        %611 = vmatpush1.msra.mxu0 %v441
        %612 = vmatprep.subr.mxu0 %v446
        %613 = vmatpush1.msra.mxu0 %v445
        %614 = vmatprep.subr.mxu0 %v450
        %615 = vmatpush1.msra.mxu0 %v449
        %616 = vmatprep.subr.mxu0 %v454
        %617 = vmatpush1.msra.mxu0 %v453
        %618 = vmatprep.subr.mxu0 %v458
        %619 = vmatpush1.msra.mxu0 %v457
        %620 = vmatprep.subr.mxu0 %v462
        %621 = vmatpush1.msra.mxu0 %v461
        %622 = vmatprep.subr.mxu0 %v466
        %623 = vmatpush1.msra.mxu0 %v465
        %624 = vmatprep.subr.mxu0 %v470
        %625 = vmatpush1.msra.mxu0 %v469
        %626 = vmatprep.subr.mxu0 %v474
        %627 = vmatpush1.msra.mxu0 %v473
        %628 = vmatprep.subr.mxu0 %v478
        %629 = vmatpush1.msra.mxu0 %v477
        %630 = vmatprep.subr.mxu0 %v482
        %631 = vmatpush1.msra.mxu0 %v481
        %632 = vmatprep.subr.mxu0 %v486
        %633 = vmatpush1.msra.mxu0 %v485
        %634 = vmatprep.subr.mxu0 %v490
        %635 = vmatpush1.msra.mxu0 %v489
        %636 = vmatprep.subr.mxu0 %v494
        %637 = vmatpush1.msra.mxu0 %v493
        %638 = vmatprep.subr.mxu0 %v498
        %639 = vmatpush1.msra.mxu0 %v497
        %640 = vmatprep.subr.mxu0 %v502
        %641 = vmatpush1.msra.mxu0 %v501
        %642 = vmatprep.subr.mxu0 %v506
        %643 = vmatpush1.msra.mxu0 %v505
        %644 = vmatprep.subr.mxu0 %v510
        %645 = vmatpush1.msra.mxu0 %v509
        %646 = vmatprep.mubr.f32.mxu0 %v382
        %647 = vmatmul.mubr.f32.gmra.mrb[0].mxu0 %v381
        %v648 = vpop.f32.mrb[0].mxu0
        %v649 = vadd.f32 %v368, %v648
        %v650 = vpop.f32.mrb[0].mxu0
        %v651 = vadd.f32 %v372, %v650
        %652 = vdwg.mxu0
        %v653 = vxor.u32 %v578, 2147483648
        %v654 = vmul.f32 %v653, 1.442695
        %v655 = vpow.pop %v654
        %v656 = vadd.f32 %v655, 1.0
        %v657 = vrcp.pop %v656
        %v658 = vmul.f32 1.0, %v657
        %v659 = vxor.u32 %v580, 2147483648
        %v660 = vmul.f32 %v659, 1.442695
        %v661 = vpow.pop %v660
        %v662 = vadd.f32 %v661, 1.0
        %v663 = vrcp.pop %v662
        %v664 = vmul.f32 1.0, %v663
        %v665 = vtanh.pop %v649
        %v666 = vxor.u32 %v651, 2147483648
        %v667 = vmul.f32 %v666, 1.442695
        %v668 = vpow.pop %v667
        %v669 = vadd.f32 %v668, 1.0
        %v670 = vrcp.pop %v669
        %v671 = vmul.f32 1.0, %v670
        %v672 = vld [vmem:[#allocation3] sm:$0xff]
        %v673 = vmul.f32 %v664, %v672
        %v674 = vmul.f32 %v658, %v665
        %v675 = vadd.f32 %v673, %v674
        %v676 = vtanh.pop %v675
        %v677 = vmul.f32 %v671, %v676
        %678 = vst [vmem:[#allocation2] sm:$0xff] %v677
        %679 = vst [vmem:[#allocation3] sm:$0xff] %v675
        %680 = vst [vmem:[%s342] sm:$0xff] %v677
        %s681 = scalar_lea.vmem %s304, 8 [#allocation5]
        %v682 = vld [vmem:[%s681] sm:$0xff]
        %683 = vst [vmem:[#allocation4] sm:$0xff] %v682
        %v684 = vld [vmem:[#allocation2] sm:$0xff]
        %685 = vst [vmem:[#allocation4 + $0x8] sm:$0xff] %v684
        %v686 = vld [vmem:[#allocation4] sm:$0xff]
        %v687 = vld [vmem:[#allocation4 + $0x8] sm:$0xff]
        %v688 = vld [vmem:[#allocation11] sm:$0xff]
        %v689 = vld [vmem:[#allocation11 + $0x8] sm:$0xff]
        %v690 = vld [vmem:[#allocation11 + $0x10] sm:$0xff]
        %v691 = vld [vmem:[#allocation11 + $0x18] sm:$0xff]
        %v692 = vld [vmem:[#allocation11 + $0x20] sm:$0xff]
        %v693 = vld [vmem:[#allocation11 + $0x28] sm:$0xff]
        %v694 = vld [vmem:[#allocation11 + $0x30] sm:$0xff]
        %v695 = vld [vmem:[#allocation11 + $0x38] sm:$0xff]
        %v696 = vld [vmem:[#allocation11 + $0x40] sm:$0xff]
        %v697 = vld [vmem:[#allocation11 + $0x48] sm:$0xff]
        %v698 = vld [vmem:[#allocation11 + $0x50] sm:$0xff]
        %v699 = vld [vmem:[#allocation11 + $0x58] sm:$0xff]
        %v700 = vld [vmem:[#allocation11 + $0x60] sm:$0xff]
        %v701 = vld [vmem:[#allocation11 + $0x68] sm:$0xff]
        %v702 = vld [vmem:[#allocation11 + $0x70] sm:$0xff]
        %v703 = vld [vmem:[#allocation11 + $0x78] sm:$0xff]
        %v704 = vld [vmem:[#allocation11 + $0x80] sm:$0xff]
        %v705 = vld [vmem:[#allocation11 + $0x88] sm:$0xff]
        %v706 = vld [vmem:[#allocation11 + $0x90] sm:$0xff]
        %v707 = vld [vmem:[#allocation11 + $0x98] sm:$0xff]
        %v708 = vld [vmem:[#allocation11 + $0xa0] sm:$0xff]
        %v709 = vld [vmem:[#allocation11 + $0xa8] sm:$0xff]
        %v710 = vld [vmem:[#allocation11 + $0xb0] sm:$0xff]
        %v711 = vld [vmem:[#allocation11 + $0xb8] sm:$0xff]
        %v712 = vld [vmem:[#allocation11 + $0xc0] sm:$0xff]
        %v713 = vld [vmem:[#allocation11 + $0xc8] sm:$0xff]
        %v714 = vld [vmem:[#allocation11 + $0xd0] sm:$0xff]
        %v715 = vld [vmem:[#allocation11 + $0xd8] sm:$0xff]
        %v716 = vld [vmem:[#allocation11 + $0xe0] sm:$0xff]
        %v717 = vld [vmem:[#allocation11 + $0xe8] sm:$0xff]
        %v718 = vld [vmem:[#allocation11 + $0xf0] sm:$0xff]
        %v719 = vld [vmem:[#allocation11 + $0xf8] sm:$0xff]
        %v720 = vld [vmem:[#allocation11 + $0x100] sm:$0xff]
        %v721 = vld [vmem:[#allocation11 + $0x108] sm:$0xff]
        %v722 = vld [vmem:[#allocation11 + $0x110] sm:$0xff]
        %v723 = vld [vmem:[#allocation11 + $0x118] sm:$0xff]
        %v724 = vld [vmem:[#allocation11 + $0x120] sm:$0xff]
        %v725 = vld [vmem:[#allocation11 + $0x128] sm:$0xff]
        %v726 = vld [vmem:[#allocation11 + $0x130] sm:$0xff]
        %v727 = vld [vmem:[#allocation11 + $0x138] sm:$0xff]
        %v728 = vld [vmem:[#allocation11 + $0x140] sm:$0xff]
        %v729 = vld [vmem:[#allocation11 + $0x148] sm:$0xff]
        %v730 = vld [vmem:[#allocation11 + $0x150] sm:$0xff]
        %v731 = vld [vmem:[#allocation11 + $0x158] sm:$0xff]
        %v732 = vld [vmem:[#allocation11 + $0x160] sm:$0xff]
        %v733 = vld [vmem:[#allocation11 + $0x168] sm:$0xff]
        %v734 = vld [vmem:[#allocation11 + $0x170] sm:$0xff]
        %v735 = vld [vmem:[#allocation11 + $0x178] sm:$0xff]
        %v736 = vld [vmem:[#allocation11 + $0x180] sm:$0xff]
        %v737 = vld [vmem:[#allocation11 + $0x188] sm:$0xff]
        %v738 = vld [vmem:[#allocation11 + $0x190] sm:$0xff]
        %v739 = vld [vmem:[#allocation11 + $0x198] sm:$0xff]
        %v740 = vld [vmem:[#allocation11 + $0x1a0] sm:$0xff]
        %v741 = vld [vmem:[#allocation11 + $0x1a8] sm:$0xff]
        %v742 = vld [vmem:[#allocation11 + $0x1b0] sm:$0xff]
        %v743 = vld [vmem:[#allocation11 + $0x1b8] sm:$0xff]
        %v744 = vld [vmem:[#allocation11 + $0x1c0] sm:$0xff]
        %v745 = vld [vmem:[#allocation11 + $0x1c8] sm:$0xff]
        %v746 = vld [vmem:[#allocation11 + $0x1d0] sm:$0xff]
        %v747 = vld [vmem:[#allocation11 + $0x1d8] sm:$0xff]
        %v748 = vld [vmem:[#allocation11 + $0x1e0] sm:$0xff]
        %v749 = vld [vmem:[#allocation11 + $0x1e8] sm:$0xff]
        %v750 = vld [vmem:[#allocation11 + $0x1f0] sm:$0xff]
        %v751 = vld [vmem:[#allocation11 + $0x1f8] sm:$0xff]
        %v752 = vld [vmem:[#allocation11 + $0x200] sm:$0xff]
        %v753 = vld [vmem:[#allocation11 + $0x208] sm:$0xff]
        %v754 = vld [vmem:[#allocation11 + $0x210] sm:$0xff]
        %v755 = vld [vmem:[#allocation11 + $0x218] sm:$0xff]
        %v756 = vld [vmem:[#allocation11 + $0x220] sm:$0xff]
        %v757 = vld [vmem:[#allocation11 + $0x228] sm:$0xff]
        %v758 = vld [vmem:[#allocation11 + $0x230] sm:$0xff]
        %v759 = vld [vmem:[#allocation11 + $0x238] sm:$0xff]
        %v760 = vld [vmem:[#allocation11 + $0x240] sm:$0xff]
        %v761 = vld [vmem:[#allocation11 + $0x248] sm:$0xff]
        %v762 = vld [vmem:[#allocation11 + $0x250] sm:$0xff]
        %v763 = vld [vmem:[#allocation11 + $0x258] sm:$0xff]
        %v764 = vld [vmem:[#allocation11 + $0x260] sm:$0xff]
        %v765 = vld [vmem:[#allocation11 + $0x268] sm:$0xff]
        %v766 = vld [vmem:[#allocation11 + $0x270] sm:$0xff]
        %v767 = vld [vmem:[#allocation11 + $0x278] sm:$0xff]
        %v768 = vld [vmem:[#allocation11 + $0x280] sm:$0xff]
        %v769 = vld [vmem:[#allocation11 + $0x288] sm:$0xff]
        %v770 = vld [vmem:[#allocation11 + $0x290] sm:$0xff]
        %v771 = vld [vmem:[#allocation11 + $0x298] sm:$0xff]
        %v772 = vld [vmem:[#allocation11 + $0x2a0] sm:$0xff]
        %v773 = vld [vmem:[#allocation11 + $0x2a8] sm:$0xff]
        %v774 = vld [vmem:[#allocation11 + $0x2b0] sm:$0xff]
        %v775 = vld [vmem:[#allocation11 + $0x2b8] sm:$0xff]
        %v776 = vld [vmem:[#allocation11 + $0x2c0] sm:$0xff]
        %v777 = vld [vmem:[#allocation11 + $0x2c8] sm:$0xff]
        %v778 = vld [vmem:[#allocation11 + $0x2d0] sm:$0xff]
        %v779 = vld [vmem:[#allocation11 + $0x2d8] sm:$0xff]
        %v780 = vld [vmem:[#allocation11 + $0x2e0] sm:$0xff]
        %v781 = vld [vmem:[#allocation11 + $0x2e8] sm:$0xff]
        %v782 = vld [vmem:[#allocation11 + $0x2f0] sm:$0xff]
        %v783 = vld [vmem:[#allocation11 + $0x2f8] sm:$0xff]
        %v784 = vld [vmem:[#allocation11 + $0x300] sm:$0xff]
        %v785 = vld [vmem:[#allocation11 + $0x308] sm:$0xff]
        %v786 = vld [vmem:[#allocation11 + $0x310] sm:$0xff]
        %v787 = vld [vmem:[#allocation11 + $0x318] sm:$0xff]
        %v788 = vld [vmem:[#allocation11 + $0x320] sm:$0xff]
        %v789 = vld [vmem:[#allocation11 + $0x328] sm:$0xff]
        %v790 = vld [vmem:[#allocation11 + $0x330] sm:$0xff]
        %v791 = vld [vmem:[#allocation11 + $0x338] sm:$0xff]
        %v792 = vld [vmem:[#allocation11 + $0x340] sm:$0xff]
        %v793 = vld [vmem:[#allocation11 + $0x348] sm:$0xff]
        %v794 = vld [vmem:[#allocation11 + $0x350] sm:$0xff]
        %v795 = vld [vmem:[#allocation11 + $0x358] sm:$0xff]
        %v796 = vld [vmem:[#allocation11 + $0x360] sm:$0xff]
        %v797 = vld [vmem:[#allocation11 + $0x368] sm:$0xff]
        %v798 = vld [vmem:[#allocation11 + $0x370] sm:$0xff]
        %v799 = vld [vmem:[#allocation11 + $0x378] sm:$0xff]
        %v800 = vld [vmem:[#allocation11 + $0x380] sm:$0xff]
        %v801 = vld [vmem:[#allocation11 + $0x388] sm:$0xff]
        %v802 = vld [vmem:[#allocation11 + $0x390] sm:$0xff]
        %v803 = vld [vmem:[#allocation11 + $0x398] sm:$0xff]
        %v804 = vld [vmem:[#allocation11 + $0x3a0] sm:$0xff]
        %v805 = vld [vmem:[#allocation11 + $0x3a8] sm:$0xff]
        %v806 = vld [vmem:[#allocation11 + $0x3b0] sm:$0xff]
        %v807 = vld [vmem:[#allocation11 + $0x3b8] sm:$0xff]
        %v808 = vld [vmem:[#allocation11 + $0x3c0] sm:$0xff]
        %v809 = vld [vmem:[#allocation11 + $0x3c8] sm:$0xff]
        %v810 = vld [vmem:[#allocation11 + $0x3d0] sm:$0xff]
        %v811 = vld [vmem:[#allocation11 + $0x3d8] sm:$0xff]
        %v812 = vld [vmem:[#allocation11 + $0x3e0] sm:$0xff]
        %v813 = vld [vmem:[#allocation11 + $0x3e8] sm:$0xff]
        %v814 = vld [vmem:[#allocation11 + $0x3f0] sm:$0xff]
        %v815 = vld [vmem:[#allocation11 + $0x3f8] sm:$0xff]
        %816 = vmatprep.subr.mxu0 %v689
        %817 = vmatpush1.msra.mxu0 %v688
        %818 = vmatprep.subr.mxu0 %v693
        %819 = vmatpush1.msra.mxu0 %v692
        %820 = vmatprep.subr.mxu0 %v697
        %821 = vmatpush1.msra.mxu0 %v696
        %822 = vmatprep.subr.mxu0 %v701
        %823 = vmatpush1.msra.mxu0 %v700
        %824 = vmatprep.subr.mxu0 %v705
        %825 = vmatpush1.msra.mxu0 %v704
        %826 = vmatprep.subr.mxu0 %v709
        %827 = vmatpush1.msra.mxu0 %v708
        %828 = vmatprep.subr.mxu0 %v713
        %829 = vmatpush1.msra.mxu0 %v712
        %830 = vmatprep.subr.mxu0 %v717
        %831 = vmatpush1.msra.mxu0 %v716
        %832 = vmatprep.subr.mxu0 %v721
        %833 = vmatpush1.msra.mxu0 %v720
        %834 = vmatprep.subr.mxu0 %v725
        %835 = vmatpush1.msra.mxu0 %v724
        %836 = vmatprep.subr.mxu0 %v729
        %837 = vmatpush1.msra.mxu0 %v728
        %838 = vmatprep.subr.mxu0 %v733
        %839 = vmatpush1.msra.mxu0 %v732
        %840 = vmatprep.subr.mxu0 %v737
        %841 = vmatpush1.msra.mxu0 %v736
        %842 = vmatprep.subr.mxu0 %v741
        %843 = vmatpush1.msra.mxu0 %v740
        %844 = vmatprep.subr.mxu0 %v745
        %845 = vmatpush1.msra.mxu0 %v744
        %846 = vmatprep.subr.mxu0 %v749
        %847 = vmatpush1.msra.mxu0 %v748
        %848 = vmatprep.subr.mxu0 %v753
        %849 = vmatpush1.msra.mxu0 %v752
        %850 = vmatprep.subr.mxu0 %v757
        %851 = vmatpush1.msra.mxu0 %v756
        %852 = vmatprep.subr.mxu0 %v761
        %853 = vmatpush1.msra.mxu0 %v760
        %854 = vmatprep.subr.mxu0 %v765
        %855 = vmatpush1.msra.mxu0 %v764
        %856 = vmatprep.subr.mxu0 %v769
        %857 = vmatpush1.msra.mxu0 %v768
        %858 = vmatprep.subr.mxu0 %v773
        %859 = vmatpush1.msra.mxu0 %v772
        %860 = vmatprep.subr.mxu0 %v777
        %861 = vmatpush1.msra.mxu0 %v776
        %862 = vmatprep.subr.mxu0 %v781
        %863 = vmatpush1.msra.mxu0 %v780
        %864 = vmatprep.subr.mxu0 %v785
        %865 = vmatpush1.msra.mxu0 %v784
        %866 = vmatprep.subr.mxu0 %v789
        %867 = vmatpush1.msra.mxu0 %v788
        %868 = vmatprep.subr.mxu0 %v793
        %869 = vmatpush1.msra.mxu0 %v792
        %870 = vmatprep.subr.mxu0 %v797
        %871 = vmatpush1.msra.mxu0 %v796
        %872 = vmatprep.subr.mxu0 %v801
        %873 = vmatpush1.msra.mxu0 %v800
        %874 = vmatprep.subr.mxu0 %v805
        %875 = vmatpush1.msra.mxu0 %v804
        %876 = vmatprep.subr.mxu0 %v809
        %877 = vmatpush1.msra.mxu0 %v808
        %878 = vmatprep.subr.mxu0 %v813
        %879 = vmatpush1.msra.mxu0 %v812
        %880 = vmatprep.mubr.f32.mxu0 %v687
        %881 = vmatmul.mubr.f32.gmra.mrb[0].mxu0 %v686
        %v882 = vpop.f32.mrb[0].mxu0
        %v883 = vadd.f32 %v360, %v882
        %v884 = vpop.f32.mrb[0].mxu0
        %v885 = vadd.f32 %v364, %v884
        %886 = vdwg.mxu0
        %887 = vmatprep.subr.mxu0 %v691
        %888 = vmatpush1.msra.mxu0 %v690
        %889 = vmatprep.subr.mxu0 %v695
        %890 = vmatpush1.msra.mxu0 %v694
        %891 = vmatprep.subr.mxu0 %v699
        %892 = vmatpush1.msra.mxu0 %v698
        %893 = vmatprep.subr.mxu0 %v703
        %894 = vmatpush1.msra.mxu0 %v702
        %895 = vmatprep.subr.mxu0 %v707
        %896 = vmatpush1.msra.mxu0 %v706
        %897 = vmatprep.subr.mxu0 %v711
        %898 = vmatpush1.msra.mxu0 %v710
        %899 = vmatprep.subr.mxu0 %v715
        %900 = vmatpush1.msra.mxu0 %v714
        %901 = vmatprep.subr.mxu0 %v719
        %902 = vmatpush1.msra.mxu0 %v718
        %903 = vmatprep.subr.mxu0 %v723
        %904 = vmatpush1.msra.mxu0 %v722
        %905 = vmatprep.subr.mxu0 %v727
        %906 = vmatpush1.msra.mxu0 %v726
        %907 = vmatprep.subr.mxu0 %v731
        %908 = vmatpush1.msra.mxu0 %v730
        %909 = vmatprep.subr.mxu0 %v735
        %910 = vmatpush1.msra.mxu0 %v734
        %911 = vmatprep.subr.mxu0 %v739
        %912 = vmatpush1.msra.mxu0 %v738
        %913 = vmatprep.subr.mxu0 %v743
        %914 = vmatpush1.msra.mxu0 %v742
        %915 = vmatprep.subr.mxu0 %v747
        %916 = vmatpush1.msra.mxu0 %v746
        %917 = vmatprep.subr.mxu0 %v751
        %918 = vmatpush1.msra.mxu0 %v750
        %919 = vmatprep.subr.mxu0 %v755
        %920 = vmatpush1.msra.mxu0 %v754
        %921 = vmatprep.subr.mxu0 %v759
        %922 = vmatpush1.msra.mxu0 %v758
        %923 = vmatprep.subr.mxu0 %v763
        %924 = vmatpush1.msra.mxu0 %v762
        %925 = vmatprep.subr.mxu0 %v767
        %926 = vmatpush1.msra.mxu0 %v766
        %927 = vmatprep.subr.mxu0 %v771
        %928 = vmatpush1.msra.mxu0 %v770
        %929 = vmatprep.subr.mxu0 %v775
        %930 = vmatpush1.msra.mxu0 %v774
        %931 = vmatprep.subr.mxu0 %v779
        %932 = vmatpush1.msra.mxu0 %v778
        %933 = vmatprep.subr.mxu0 %v783
        %934 = vmatpush1.msra.mxu0 %v782
        %935 = vmatprep.subr.mxu0 %v787
        %936 = vmatpush1.msra.mxu0 %v786
        %937 = vmatprep.subr.mxu0 %v791
        %938 = vmatpush1.msra.mxu0 %v790
        %939 = vmatprep.subr.mxu0 %v795
        %940 = vmatpush1.msra.mxu0 %v794
        %941 = vmatprep.subr.mxu0 %v799
        %942 = vmatpush1.msra.mxu0 %v798
        %943 = vmatprep.subr.mxu0 %v803
        %944 = vmatpush1.msra.mxu0 %v802
        %945 = vmatprep.subr.mxu0 %v807
        %946 = vmatpush1.msra.mxu0 %v806
        %947 = vmatprep.subr.mxu0 %v811
        %948 = vmatpush1.msra.mxu0 %v810
        %949 = vmatprep.subr.mxu0 %v815
        %950 = vmatpush1.msra.mxu0 %v814
        %951 = vmatprep.mubr.f32.mxu0 %v687
        %952 = vmatmul.mubr.f32.gmra.mrb[0].mxu0 %v686
        %v953 = vpop.f32.mrb[0].mxu0
        %v954 = vadd.f32 %v368, %v953
        %v955 = vpop.f32.mrb[0].mxu0
        %v956 = vadd.f32 %v372, %v955
        %957 = vdwg.mxu0
        %v958 = vxor.u32 %v883, 2147483648
        %v959 = vmul.f32 %v958, 1.442695
        %v960 = vpow.pop %v959
        %v961 = vadd.f32 %v960, 1.0
        %v962 = vrcp.pop %v961
        %v963 = vmul.f32 1.0, %v962
        %v964 = vxor.u32 %v885, 2147483648
        %v965 = vmul.f32 %v964, 1.442695
        %v966 = vpow.pop %v965
        %v967 = vadd.f32 %v966, 1.0
        %v968 = vrcp.pop %v967
        %v969 = vmul.f32 1.0, %v968
        %v970 = vtanh.pop %v954
        %v971 = vxor.u32 %v956, 2147483648
        %v972 = vmul.f32 %v971, 1.442695
        %v973 = vpow.pop %v972
        %v974 = vadd.f32 %v973, 1.0
        %v975 = vrcp.pop %v974
        %v976 = vmul.f32 1.0, %v975
        %v977 = vld [vmem:[#allocation3] sm:$0xff]
        %v978 = vmul.f32 %v969, %v977
        %v979 = vmul.f32 %v963, %v970
        %v980 = vadd.f32 %v978, %v979
        %v981 = vtanh.pop %v980
        %v982 = vmul.f32 %v976, %v981
        %983 = vst [vmem:[#allocation2] sm:$0xff] %v982
        %984 = vst [vmem:[#allocation3] sm:$0xff] %v980
        %s985 = scalar_lea.vmem %s342, 8 [#allocation13]
        %986 = vst [vmem:[%s985] sm:$0xff] %v982
        %s987 = scalar_lea.vmem %s304, 16 [#allocation5]
        %v988 = vld [vmem:[%s987] sm:$0xff]
        %989 = vst [vmem:[#allocation4] sm:$0xff] %v988
        %v990 = vld [vmem:[#allocation2] sm:$0xff]
        %991 = vst [vmem:[#allocation4 + $0x8] sm:$0xff] %v990
        %v992 = vld [vmem:[#allocation4] sm:$0xff]
        %v993 = vld [vmem:[#allocation4 + $0x8] sm:$0xff]
        %v994 = vld [vmem:[#allocation11] sm:$0xff]
        %v995 = vld [vmem:[#allocation11 + $0x8] sm:$0xff]
        %v996 = vld [vmem:[#allocation11 + $0x10] sm:$0xff]
        %v997 = vld [vmem:[#allocation11 + $0x18] sm:$0xff]
        %v998 = vld [vmem:[#allocation11 + $0x20] sm:$0xff]
        %v999 = vld [vmem:[#allocation11 + $0x28] sm:$0xff]
        %v1000 = vld [vmem:[#allocation11 + $0x30] sm:$0xff]
        %v1001 = vld [vmem:[#allocation11 + $0x38] sm:$0xff]
        %v1002 = vld [vmem:[#allocation11 + $0x40] sm:$0xff]
        %v1003 = vld [vmem:[#allocation11 + $0x48] sm:$0xff]
        %v1004 = vld [vmem:[#allocation11 + $0x50] sm:$0xff]
        %v1005 = vld [vmem:[#allocation11 + $0x58] sm:$0xff]
        %v1006 = vld [vmem:[#allocation11 + $0x60] sm:$0xff]
        %v1007 = vld [vmem:[#allocation11 + $0x68] sm:$0xff]
        %v1008 = vld [vmem:[#allocation11 + $0x70] sm:$0xff]
        %v1009 = vld [vmem:[#allocation11 + $0x78] sm:$0xff]
        %v1010 = vld [vmem:[#allocation11 + $0x80] sm:$0xff]
        %v1011 = vld [vmem:[#allocation11 + $0x88] sm:$0xff]
        %v1012 = vld [vmem:[#allocation11 + $0x90] sm:$0xff]
        %v1013 = vld [vmem:[#allocation11 + $0x98] sm:$0xff]
        %v1014 = vld [vmem:[#allocation11 + $0xa0] sm:$0xff]
        %v1015 = vld [vmem:[#allocation11 + $0xa8] sm:$0xff]
        %v1016 = vld [vmem:[#allocation11 + $0xb0] sm:$0xff]
        %v1017 = vld [vmem:[#allocation11 + $0xb8] sm:$0xff]
        %v1018 = vld [vmem:[#allocation11 + $0xc0] sm:$0xff]
        %v1019 = vld [vmem:[#allocation11 + $0xc8] sm:$0xff]
        %v1020 = vld [vmem:[#allocation11 + $0xd0] sm:$0xff]
        %v1021 = vld [vmem:[#allocation11 + $0xd8] sm:$0xff]
        %v1022 = vld [vmem:[#allocation11 + $0xe0] sm:$0xff]
        %v1023 = vld [vmem:[#allocation11 + $0xe8] sm:$0xff]
        %v1024 = vld [vmem:[#allocation11 + $0xf0] sm:$0xff]
        %v1025 = vld [vmem:[#allocation11 + $0xf8] sm:$0xff]
        %v1026 = vld [vmem:[#allocation11 + $0x100] sm:$0xff]
        %v1027 = vld [vmem:[#allocation11 + $0x108] sm:$0xff]
        %v1028 = vld [vmem:[#allocation11 + $0x110] sm:$0xff]
        %v1029 = vld [vmem:[#allocation11 + $0x118] sm:$0xff]
        %v1030 = vld [vmem:[#allocation11 + $0x120] sm:$0xff]
        %v1031 = vld [vmem:[#allocation11 + $0x128] sm:$0xff]
        %v1032 = vld [vmem:[#allocation11 + $0x130] sm:$0xff]
        %v1033 = vld [vmem:[#allocation11 + $0x138] sm:$0xff]
        %v1034 = vld [vmem:[#allocation11 + $0x140] sm:$0xff]
        %v1035 = vld [vmem:[#allocation11 + $0x148] sm:$0xff]
        %v1036 = vld [vmem:[#allocation11 + $0x150] sm:$0xff]
        %v1037 = vld [vmem:[#allocation11 + $0x158] sm:$0xff]
        %v1038 = vld [vmem:[#allocation11 + $0x160] sm:$0xff]
        %v1039 = vld [vmem:[#allocation11 + $0x168] sm:$0xff]
        %v1040 = vld [vmem:[#allocation11 + $0x170] sm:$0xff]
        %v1041 = vld [vmem:[#allocation11 + $0x178] sm:$0xff]
        %v1042 = vld [vmem:[#allocation11 + $0x180] sm:$0xff]
        %v1043 = vld [vmem:[#allocation11 + $0x188] sm:$0xff]
        %v1044 = vld [vmem:[#allocation11 + $0x190] sm:$0xff]
        %v1045 = vld [vmem:[#allocation11 + $0x198] sm:$0xff]
        %v1046 = vld [vmem:[#allocation11 + $0x1a0] sm:$0xff]
        %v1047 = vld [vmem:[#allocation11 + $0x1a8] sm:$0xff]
        %v1048 = vld [vmem:[#allocation11 + $0x1b0] sm:$0xff]
        %v1049 = vld [vmem:[#allocation11 + $0x1b8] sm:$0xff]
        %v1050 = vld [vmem:[#allocation11 + $0x1c0] sm:$0xff]
        %v1051 = vld [vmem:[#allocation11 + $0x1c8] sm:$0xff]
        %v1052 = vld [vmem:[#allocation11 + $0x1d0] sm:$0xff]
        %v1053 = vld [vmem:[#allocation11 + $0x1d8] sm:$0xff]
        %v1054 = vld [vmem:[#allocation11 + $0x1e0] sm:$0xff]
        %v1055 = vld [vmem:[#allocation11 + $0x1e8] sm:$0xff]
        %v1056 = vld [vmem:[#allocation11 + $0x1f0] sm:$0xff]
        %v1057 = vld [vmem:[#allocation11 + $0x1f8] sm:$0xff]
        %v1058 = vld [vmem:[#allocation11 + $0x200] sm:$0xff]
        %v1059 = vld [vmem:[#allocation11 + $0x208] sm:$0xff]
        %v1060 = vld [vmem:[#allocation11 + $0x210] sm:$0xff]
        %v1061 = vld [vmem:[#allocation11 + $0x218] sm:$0xff]
        %v1062 = vld [vmem:[#allocation11 + $0x220] sm:$0xff]
        %v1063 = vld [vmem:[#allocation11 + $0x228] sm:$0xff]
        %v1064 = vld [vmem:[#allocation11 + $0x230] sm:$0xff]
        %v1065 = vld [vmem:[#allocation11 + $0x238] sm:$0xff]
        %v1066 = vld [vmem:[#allocation11 + $0x240] sm:$0xff]
        %v1067 = vld [vmem:[#allocation11 + $0x248] sm:$0xff]
        %v1068 = vld [vmem:[#allocation11 + $0x250] sm:$0xff]
        %v1069 = vld [vmem:[#allocation11 + $0x258] sm:$0xff]
        %v1070 = vld [vmem:[#allocation11 + $0x260] sm:$0xff]
        %v1071 = vld [vmem:[#allocation11 + $0x268] sm:$0xff]
        %v1072 = vld [vmem:[#allocation11 + $0x270] sm:$0xff]
        %v1073 = vld [vmem:[#allocation11 + $0x278] sm:$0xff]
        %v1074 = vld [vmem:[#allocation11 + $0x280] sm:$0xff]
        %v1075 = vld [vmem:[#allocation11 + $0x288] sm:$0xff]
        %v1076 = vld [vmem:[#allocation11 + $0x290] sm:$0xff]
        %v1077 = vld [vmem:[#allocation11 + $0x298] sm:$0xff]
        %v1078 = vld [vmem:[#allocation11 + $0x2a0] sm:$0xff]
        %v1079 = vld [vmem:[#allocation11 + $0x2a8] sm:$0xff]
        %v1080 = vld [vmem:[#allocation11 + $0x2b0] sm:$0xff]
        %v1081 = vld [vmem:[#allocation11 + $0x2b8] sm:$0xff]
        %v1082 = vld [vmem:[#allocation11 + $0x2c0] sm:$0xff]
        %v1083 = vld [vmem:[#allocation11 + $0x2c8] sm:$0xff]
        %v1084 = vld [vmem:[#allocation11 + $0x2d0] sm:$0xff]
        %v1085 = vld [vmem:[#allocation11 + $0x2d8] sm:$0xff]
        %v1086 = vld [vmem:[#allocation11 + $0x2e0] sm:$0xff]
        %v1087 = vld [vmem:[#allocation11 + $0x2e8] sm:$0xff]
        %v1088 = vld [vmem:[#allocation11 + $0x2f0] sm:$0xff]
        %v1089 = vld [vmem:[#allocation11 + $0x2f8] sm:$0xff]
        %v1090 = vld [vmem:[#allocation11 + $0x300] sm:$0xff]
        %v1091 = vld [vmem:[#allocation11 + $0x308] sm:$0xff]
        %v1092 = vld [vmem:[#allocation11 + $0x310] sm:$0xff]
        %v1093 = vld [vmem:[#allocation11 + $0x318] sm:$0xff]
        %v1094 = vld [vmem:[#allocation11 + $0x320] sm:$0xff]
        %v1095 = vld [vmem:[#allocation11 + $0x328] sm:$0xff]
        %v1096 = vld [vmem:[#allocation11 + $0x330] sm:$0xff]
        %v1097 = vld [vmem:[#allocation11 + $0x338] sm:$0xff]
        %v1098 = vld [vmem:[#allocation11 + $0x340] sm:$0xff]
        %v1099 = vld [vmem:[#allocation11 + $0x348] sm:$0xff]
        %v1100 = vld [vmem:[#allocation11 + $0x350] sm:$0xff]
        %v1101 = vld [vmem:[#allocation11 + $0x358] sm:$0xff]
        %v1102 = vld [vmem:[#allocation11 + $0x360] sm:$0xff]
        %v1103 = vld [vmem:[#allocation11 + $0x368] sm:$0xff]
        %v1104 = vld [vmem:[#allocation11 + $0x370] sm:$0xff]
        %v1105 = vld [vmem:[#allocation11 + $0x378] sm:$0xff]
        %v1106 = vld [vmem:[#allocation11 + $0x380] sm:$0xff]
        %v1107 = vld [vmem:[#allocation11 + $0x388] sm:$0xff]
        %v1108 = vld [vmem:[#allocation11 + $0x390] sm:$0xff]
        %v1109 = vld [vmem:[#allocation11 + $0x398] sm:$0xff]
        %v1110 = vld [vmem:[#allocation11 + $0x3a0] sm:$0xff]
        %v1111 = vld [vmem:[#allocation11 + $0x3a8] sm:$0xff]
        %v1112 = vld [vmem:[#allocation11 + $0x3b0] sm:$0xff]
        %v1113 = vld [vmem:[#allocation11 + $0x3b8] sm:$0xff]
        %v1114 = vld [vmem:[#allocation11 + $0x3c0] sm:$0xff]
        %v1115 = vld [vmem:[#allocation11 + $0x3c8] sm:$0xff]
        %v1116 = vld [vmem:[#allocation11 + $0x3d0] sm:$0xff]
        %v1117 = vld [vmem:[#allocation11 + $0x3d8] sm:$0xff]
        %v1118 = vld [vmem:[#allocation11 + $0x3e0] sm:$0xff]
        %v1119 = vld [vmem:[#allocation11 + $0x3e8] sm:$0xff]
        %v1120 = vld [vmem:[#allocation11 + $0x3f0] sm:$0xff]
        %v1121 = vld [vmem:[#allocation11 + $0x3f8] sm:$0xff]
        %1122 = vmatprep.subr.mxu0 %v995
        %1123 = vmatpush1.msra.mxu0 %v994
        %1124 = vmatprep.subr.mxu0 %v999
        %1125 = vmatpush1.msra.mxu0 %v998
        %1126 = vmatprep.subr.mxu0 %v1003
        %1127 = vmatpush1.msra.mxu0 %v1002
        %1128 = vmatprep.subr.mxu0 %v1007
        %1129 = vmatpush1.msra.mxu0 %v1006
        %1130 = vmatprep.subr.mxu0 %v1011
        %1131 = vmatpush1.msra.mxu0 %v1010
        %1132 = vmatprep.subr.mxu0 %v1015
        %1133 = vmatpush1.msra.mxu0 %v1014
        %1134 = vmatprep.subr.mxu0 %v1019
        %1135 = vmatpush1.msra.mxu0 %v1018
        %1136 = vmatprep.subr.mxu0 %v1023
        %1137 = vmatpush1.msra.mxu0 %v1022
        %1138 = vmatprep.subr.mxu0 %v1027
        %1139 = vmatpush1.msra.mxu0 %v1026
        %1140 = vmatprep.subr.mxu0 %v1031
        %1141 = vmatpush1.msra.mxu0 %v1030
        %1142 = vmatprep.subr.mxu0 %v1035
        %1143 = vmatpush1.msra.mxu0 %v1034
        %1144 = vmatprep.subr.mxu0 %v1039
        %1145 = vmatpush1.msra.mxu0 %v1038
        %1146 = vmatprep.subr.mxu0 %v1043
        %1147 = vmatpush1.msra.mxu0 %v1042
        %1148 = vmatprep.subr.mxu0 %v1047
        %1149 = vmatpush1.msra.mxu0 %v1046
        %1150 = vmatprep.subr.mxu0 %v1051
        %1151 = vmatpush1.msra.mxu0 %v1050
        %1152 = vmatprep.subr.mxu0 %v1055
        %1153 = vmatpush1.msra.mxu0 %v1054
        %1154 = vmatprep.subr.mxu0 %v1059
        %1155 = vmatpush1.msra.mxu0 %v1058
        %1156 = vmatprep.subr.mxu0 %v1063
        %1157 = vmatpush1.msra.mxu0 %v1062
        %1158 = vmatprep.subr.mxu0 %v1067
        %1159 = vmatpush1.msra.mxu0 %v1066
        %1160 = vmatprep.subr.mxu0 %v1071
        %1161 = vmatpush1.msra.mxu0 %v1070
        %1162 = vmatprep.subr.mxu0 %v1075
        %1163 = vmatpush1.msra.mxu0 %v1074
        %1164 = vmatprep.subr.mxu0 %v1079
        %1165 = vmatpush1.msra.mxu0 %v1078
        %1166 = vmatprep.subr.mxu0 %v1083
        %1167 = vmatpush1.msra.mxu0 %v1082
        %1168 = vmatprep.subr.mxu0 %v1087
        %1169 = vmatpush1.msra.mxu0 %v1086
        %1170 = vmatprep.subr.mxu0 %v1091
        %1171 = vmatpush1.msra.mxu0 %v1090
        %1172 = vmatprep.subr.mxu0 %v1095
        %1173 = vmatpush1.msra.mxu0 %v1094
        %1174 = vmatprep.subr.mxu0 %v1099
        %1175 = vmatpush1.msra.mxu0 %v1098
        %1176 = vmatprep.subr.mxu0 %v1103
        %1177 = vmatpush1.msra.mxu0 %v1102
        %1178 = vmatprep.subr.mxu0 %v1107
        %1179 = vmatpush1.msra.mxu0 %v1106
        %1180 = vmatprep.subr.mxu0 %v1111
        %1181 = vmatpush1.msra.mxu0 %v1110
        %1182 = vmatprep.subr.mxu0 %v1115
        %1183 = vmatpush1.msra.mxu0 %v1114
        %1184 = vmatprep.subr.mxu0 %v1119
        %1185 = vmatpush1.msra.mxu0 %v1118
        %1186 = vmatprep.mubr.f32.mxu0 %v993
        %1187 = vmatmul.mubr.f32.gmra.mrb[0].mxu0 %v992
        %v1188 = vpop.f32.mrb[0].mxu0
        %v1189 = vadd.f32 %v360, %v1188
        %v1190 = vpop.f32.mrb[0].mxu0
        %v1191 = vadd.f32 %v364, %v1190
        %1192 = vdwg.mxu0
        %1193 = vmatprep.subr.mxu0 %v997
        %1194 = vmatpush1.msra.mxu0 %v996
        %1195 = vmatprep.subr.mxu0 %v1001
        %1196 = vmatpush1.msra.mxu0 %v1000
        %1197 = vmatprep.subr.mxu0 %v1005
        %1198 = vmatpush1.msra.mxu0 %v1004
        %1199 = vmatprep.subr.mxu0 %v1009
        %1200 = vmatpush1.msra.mxu0 %v1008
        %1201 = vmatprep.subr.mxu0 %v1013
        %1202 = vmatpush1.msra.mxu0 %v1012
        %1203 = vmatprep.subr.mxu0 %v1017
        %1204 = vmatpush1.msra.mxu0 %v1016
        %1205 = vmatprep.subr.mxu0 %v1021
        %1206 = vmatpush1.msra.mxu0 %v1020
        %1207 = vmatprep.subr.mxu0 %v1025
        %1208 = vmatpush1.msra.mxu0 %v1024
        %1209 = vmatprep.subr.mxu0 %v1029
        %1210 = vmatpush1.msra.mxu0 %v1028
        %1211 = vmatprep.subr.mxu0 %v1033
        %1212 = vmatpush1.msra.mxu0 %v1032
        %1213 = vmatprep.subr.mxu0 %v1037
        %1214 = vmatpush1.msra.mxu0 %v1036
        %1215 = vmatprep.subr.mxu0 %v1041
        %1216 = vmatpush1.msra.mxu0 %v1040
        %1217 = vmatprep.subr.mxu0 %v1045
        %1218 = vmatpush1.msra.mxu0 %v1044
        %1219 = vmatprep.subr.mxu0 %v1049
        %1220 = vmatpush1.msra.mxu0 %v1048
        %1221 = vmatprep.subr.mxu0 %v1053
        %1222 = vmatpush1.msra.mxu0 %v1052
        %1223 = vmatprep.subr.mxu0 %v1057
        %1224 = vmatpush1.msra.mxu0 %v1056
        %1225 = vmatprep.subr.mxu0 %v1061
        %1226 = vmatpush1.msra.mxu0 %v1060
        %1227 = vmatprep.subr.mxu0 %v1065
        %1228 = vmatpush1.msra.mxu0 %v1064
        %1229 = vmatprep.subr.mxu0 %v1069
        %1230 = vmatpush1.msra.mxu0 %v1068
        %1231 = vmatprep.subr.mxu0 %v1073
        %1232 = vmatpush1.msra.mxu0 %v1072
        %1233 = vmatprep.subr.mxu0 %v1077
        %1234 = vmatpush1.msra.mxu0 %v1076
        %1235 = vmatprep.subr.mxu0 %v1081
        %1236 = vmatpush1.msra.mxu0 %v1080
        %1237 = vmatprep.subr.mxu0 %v1085
        %1238 = vmatpush1.msra.mxu0 %v1084
        %1239 = vmatprep.subr.mxu0 %v1089
        %1240 = vmatpush1.msra.mxu0 %v1088
        %1241 = vmatprep.subr.mxu0 %v1093
        %1242 = vmatpush1.msra.mxu0 %v1092
        %1243 = vmatprep.subr.mxu0 %v1097
        %1244 = vmatpush1.msra.mxu0 %v1096
        %1245 = vmatprep.subr.mxu0 %v1101
        %1246 = vmatpush1.msra.mxu0 %v1100
        %1247 = vmatprep.subr.mxu0 %v1105
        %1248 = vmatpush1.msra.mxu0 %v1104
        %1249 = vmatprep.subr.mxu0 %v1109
        %1250 = vmatpush1.msra.mxu0 %v1108
        %1251 = vmatprep.subr.mxu0 %v1113
        %1252 = vmatpush1.msra.mxu0 %v1112
        %1253 = vmatprep.subr.mxu0 %v1117
        %1254 = vmatpush1.msra.mxu0 %v1116
        %1255 = vmatprep.subr.mxu0 %v1121
        %1256 = vmatpush1.msra.mxu0 %v1120
        %1257 = vmatprep.mubr.f32.mxu0 %v993
        %1258 = vmatmul.mubr.f32.gmra.mrb[0].mxu0 %v992
        %v1259 = vpop.f32.mrb[0].mxu0
        %v1260 = vadd.f32 %v368, %v1259
        %v1261 = vpop.f32.mrb[0].mxu0
        %v1262 = vadd.f32 %v372, %v1261
        %1263 = vdwg.mxu0
        %v1264 = vxor.u32 %v1189, 2147483648
        %v1265 = vmul.f32 %v1264, 1.442695
        %v1266 = vpow.pop %v1265
        %v1267 = vadd.f32 %v1266, 1.0
        %v1268 = vrcp.pop %v1267
        %v1269 = vmul.f32 1.0, %v1268
        %v1270 = vxor.u32 %v1191, 2147483648
        %v1271 = vmul.f32 %v1270, 1.442695
        %v1272 = vpow.pop %v1271
        %v1273 = vadd.f32 %v1272, 1.0
        %v1274 = vrcp.pop %v1273
        %v1275 = vmul.f32 1.0, %v1274
        %v1276 = vtanh.pop %v1260
        %v1277 = vxor.u32 %v1262, 2147483648
        %v1278 = vmul.f32 %v1277, 1.442695
        %v1279 = vpow.pop %v1278
        %v1280 = vadd.f32 %v1279, 1.0
        %v1281 = vrcp.pop %v1280
        %v1282 = vmul.f32 1.0, %v1281
        %v1283 = vld [vmem:[#allocation3] sm:$0xff]
        %v1284 = vmul.f32 %v1275, %v1283
        %v1285 = vmul.f32 %v1269, %v1276
        %v1286 = vadd.f32 %v1284, %v1285
        %v1287 = vtanh.pop %v1286
        %v1288 = vmul.f32 %v1282, %v1287
        %1289 = vst [vmem:[#allocation2] sm:$0xff] %v1288
        %1290 = vst [vmem:[#allocation3] sm:$0xff] %v1286
        %s1291 = scalar_lea.vmem %s342, 16 [#allocation13]
        %1292 = vst [vmem:[%s1291] sm:$0xff] %v1288
        %s1293 = scalar_lea.vmem %s304, 24 [#allocation5]
        %v1294 = vld [vmem:[%s1293] sm:$0xff]
        %1295 = vst [vmem:[#allocation4] sm:$0xff] %v1294
        %v1296 = vld [vmem:[#allocation2] sm:$0xff]
        %1297 = vst [vmem:[#allocation4 + $0x8] sm:$0xff] %v1296
        %v1298 = vld [vmem:[#allocation4] sm:$0xff]
        %v1299 = vld [vmem:[#allocation4 + $0x8] sm:$0xff]
        %v1300 = vld [vmem:[#allocation11] sm:$0xff]
        %v1301 = vld [vmem:[#allocation11 + $0x8] sm:$0xff]
        %v1302 = vld [vmem:[#allocation11 + $0x10] sm:$0xff]
        %v1303 = vld [vmem:[#allocation11 + $0x18] sm:$0xff]
        %v1304 = vld [vmem:[#allocation11 + $0x20] sm:$0xff]
        %v1305 = vld [vmem:[#allocation11 + $0x28] sm:$0xff]
        %v1306 = vld [vmem:[#allocation11 + $0x30] sm:$0xff]
        %v1307 = vld [vmem:[#allocation11 + $0x38] sm:$0xff]
        %v1308 = vld [vmem:[#allocation11 + $0x40] sm:$0xff]
        %v1309 = vld [vmem:[#allocation11 + $0x48] sm:$0xff]
        %v1310 = vld [vmem:[#allocation11 + $0x50] sm:$0xff]
        %v1311 = vld [vmem:[#allocation11 + $0x58] sm:$0xff]
        %v1312 = vld [vmem:[#allocation11 + $0x60] sm:$0xff]
        %v1313 = vld [vmem:[#allocation11 + $0x68] sm:$0xff]
        %v1314 = vld [vmem:[#allocation11 + $0x70] sm:$0xff]
        %v1315 = vld [vmem:[#allocation11 + $0x78] sm:$0xff]
        %v1316 = vld [vmem:[#allocation11 + $0x80] sm:$0xff]
        %v1317 = vld [vmem:[#allocation11 + $0x88] sm:$0xff]
        %v1318 = vld [vmem:[#allocation11 + $0x90] sm:$0xff]
        %v1319 = vld [vmem:[#allocation11 + $0x98] sm:$0xff]
        %v1320 = vld [vmem:[#allocation11 + $0xa0] sm:$0xff]
        %v1321 = vld [vmem:[#allocation11 + $0xa8] sm:$0xff]
        %v1322 = vld [vmem:[#allocation11 + $0xb0] sm:$0xff]
        %v1323 = vld [vmem:[#allocation11 + $0xb8] sm:$0xff]
        %v1324 = vld [vmem:[#allocation11 + $0xc0] sm:$0xff]
        %v1325 = vld [vmem:[#allocation11 + $0xc8] sm:$0xff]
        %v1326 = vld [vmem:[#allocation11 + $0xd0] sm:$0xff]
        %v1327 = vld [vmem:[#allocation11 + $0xd8] sm:$0xff]
        %v1328 = vld [vmem:[#allocation11 + $0xe0] sm:$0xff]
        %v1329 = vld [vmem:[#allocation11 + $0xe8] sm:$0xff]
        %v1330 = vld [vmem:[#allocation11 + $0xf0] sm:$0xff]
        %v1331 = vld [vmem:[#allocation11 + $0xf8] sm:$0xff]
        %v1332 = vld [vmem:[#allocation11 + $0x100] sm:$0xff]
        %v1333 = vld [vmem:[#allocation11 + $0x108] sm:$0xff]
        %v1334 = vld [vmem:[#allocation11 + $0x110] sm:$0xff]
        %v1335 = vld [vmem:[#allocation11 + $0x118] sm:$0xff]
        %v1336 = vld [vmem:[#allocation11 + $0x120] sm:$0xff]
        %v1337 = vld [vmem:[#allocation11 + $0x128] sm:$0xff]
        %v1338 = vld [vmem:[#allocation11 + $0x130] sm:$0xff]
        %v1339 = vld [vmem:[#allocation11 + $0x138] sm:$0xff]
        %v1340 = vld [vmem:[#allocation11 + $0x140] sm:$0xff]
        %v1341 = vld [vmem:[#allocation11 + $0x148] sm:$0xff]
        %v1342 = vld [vmem:[#allocation11 + $0x150] sm:$0xff]
        %v1343 = vld [vmem:[#allocation11 + $0x158] sm:$0xff]
        %v1344 = vld [vmem:[#allocation11 + $0x160] sm:$0xff]
        %v1345 = vld [vmem:[#allocation11 + $0x168] sm:$0xff]
        %v1346 = vld [vmem:[#allocation11 + $0x170] sm:$0xff]
        %v1347 = vld [vmem:[#allocation11 + $0x178] sm:$0xff]
        %v1348 = vld [vmem:[#allocation11 + $0x180] sm:$0xff]
        %v1349 = vld [vmem:[#allocation11 + $0x188] sm:$0xff]
        %v1350 = vld [vmem:[#allocation11 + $0x190] sm:$0xff]
        %v1351 = vld [vmem:[#allocation11 + $0x198] sm:$0xff]
        %v1352 = vld [vmem:[#allocation11 + $0x1a0] sm:$0xff]
        %v1353 = vld [vmem:[#allocation11 + $0x1a8] sm:$0xff]
        %v1354 = vld [vmem:[#allocation11 + $0x1b0] sm:$0xff]
        %v1355 = vld [vmem:[#allocation11 + $0x1b8] sm:$0xff]
        %v1356 = vld [vmem:[#allocation11 + $0x1c0] sm:$0xff]
        %v1357 = vld [vmem:[#allocation11 + $0x1c8] sm:$0xff]
        %v1358 = vld [vmem:[#allocation11 + $0x1d0] sm:$0xff]
        %v1359 = vld [vmem:[#allocation11 + $0x1d8] sm:$0xff]
        %v1360 = vld [vmem:[#allocation11 + $0x1e0] sm:$0xff]
        %v1361 = vld [vmem:[#allocation11 + $0x1e8] sm:$0xff]
        %v1362 = vld [vmem:[#allocation11 + $0x1f0] sm:$0xff]
        %v1363 = vld [vmem:[#allocation11 + $0x1f8] sm:$0xff]
        %v1364 = vld [vmem:[#allocation11 + $0x200] sm:$0xff]
        %v1365 = vld [vmem:[#allocation11 + $0x208] sm:$0xff]
        %v1366 = vld [vmem:[#allocation11 + $0x210] sm:$0xff]
        %v1367 = vld [vmem:[#allocation11 + $0x218] sm:$0xff]
        %v1368 = vld [vmem:[#allocation11 + $0x220] sm:$0xff]
        %v1369 = vld [vmem:[#allocation11 + $0x228] sm:$0xff]
        %v1370 = vld [vmem:[#allocation11 + $0x230] sm:$0xff]
        %v1371 = vld [vmem:[#allocation11 + $0x238] sm:$0xff]
        %v1372 = vld [vmem:[#allocation11 + $0x240] sm:$0xff]
        %v1373 = vld [vmem:[#allocation11 + $0x248] sm:$0xff]
        %v1374 = vld [vmem:[#allocation11 + $0x250] sm:$0xff]
        %v1375 = vld [vmem:[#allocation11 + $0x258] sm:$0xff]
        %v1376 = vld [vmem:[#allocation11 + $0x260] sm:$0xff]
        %v1377 = vld [vmem:[#allocation11 + $0x268] sm:$0xff]
        %v1378 = vld [vmem:[#allocation11 + $0x270] sm:$0xff]
        %v1379 = vld [vmem:[#allocation11 + $0x278] sm:$0xff]
        %v1380 = vld [vmem:[#allocation11 + $0x280] sm:$0xff]
        %v1381 = vld [vmem:[#allocation11 + $0x288] sm:$0xff]
        %v1382 = vld [vmem:[#allocation11 + $0x290] sm:$0xff]
        %v1383 = vld [vmem:[#allocation11 + $0x298] sm:$0xff]
        %v1384 = vld [vmem:[#allocation11 + $0x2a0] sm:$0xff]
        %v1385 = vld [vmem:[#allocation11 + $0x2a8] sm:$0xff]
        %v1386 = vld [vmem:[#allocation11 + $0x2b0] sm:$0xff]
        %v1387 = vld [vmem:[#allocation11 + $0x2b8] sm:$0xff]
        %v1388 = vld [vmem:[#allocation11 + $0x2c0] sm:$0xff]
        %v1389 = vld [vmem:[#allocation11 + $0x2c8] sm:$0xff]
        %v1390 = vld [vmem:[#allocation11 + $0x2d0] sm:$0xff]
        %v1391 = vld [vmem:[#allocation11 + $0x2d8] sm:$0xff]
        %v1392 = vld [vmem:[#allocation11 + $0x2e0] sm:$0xff]
        %v1393 = vld [vmem:[#allocation11 + $0x2e8] sm:$0xff]
        %v1394 = vld [vmem:[#allocation11 + $0x2f0] sm:$0xff]
        %v1395 = vld [vmem:[#allocation11 + $0x2f8] sm:$0xff]
        %v1396 = vld [vmem:[#allocation11 + $0x300] sm:$0xff]
        %v1397 = vld [vmem:[#allocation11 + $0x308] sm:$0xff]
        %v1398 = vld [vmem:[#allocation11 + $0x310] sm:$0xff]
        %v1399 = vld [vmem:[#allocation11 + $0x318] sm:$0xff]
        %v1400 = vld [vmem:[#allocation11 + $0x320] sm:$0xff]
        %v1401 = vld [vmem:[#allocation11 + $0x328] sm:$0xff]
        %v1402 = vld [vmem:[#allocation11 + $0x330] sm:$0xff]
        %v1403 = vld [vmem:[#allocation11 + $0x338] sm:$0xff]
        %v1404 = vld [vmem:[#allocation11 + $0x340] sm:$0xff]
        %v1405 = vld [vmem:[#allocation11 + $0x348] sm:$0xff]
        %v1406 = vld [vmem:[#allocation11 + $0x350] sm:$0xff]
        %v1407 = vld [vmem:[#allocation11 + $0x358] sm:$0xff]
        %v1408 = vld [vmem:[#allocation11 + $0x360] sm:$0xff]
        %v1409 = vld [vmem:[#allocation11 + $0x368] sm:$0xff]
        %v1410 = vld [vmem:[#allocation11 + $0x370] sm:$0xff]
        %v1411 = vld [vmem:[#allocation11 + $0x378] sm:$0xff]
        %v1412 = vld [vmem:[#allocation11 + $0x380] sm:$0xff]
        %v1413 = vld [vmem:[#allocation11 + $0x388] sm:$0xff]
        %v1414 = vld [vmem:[#allocation11 + $0x390] sm:$0xff]
        %v1415 = vld [vmem:[#allocation11 + $0x398] sm:$0xff]
        %v1416 = vld [vmem:[#allocation11 + $0x3a0] sm:$0xff]
        %v1417 = vld [vmem:[#allocation11 + $0x3a8] sm:$0xff]
        %v1418 = vld [vmem:[#allocation11 + $0x3b0] sm:$0xff]
        %v1419 = vld [vmem:[#allocation11 + $0x3b8] sm:$0xff]
        %v1420 = vld [vmem:[#allocation11 + $0x3c0] sm:$0xff]
        %v1421 = vld [vmem:[#allocation11 + $0x3c8] sm:$0xff]
        %v1422 = vld [vmem:[#allocation11 + $0x3d0] sm:$0xff]
        %v1423 = vld [vmem:[#allocation11 + $0x3d8] sm:$0xff]
        %v1424 = vld [vmem:[#allocation11 + $0x3e0] sm:$0xff]
        %v1425 = vld [vmem:[#allocation11 + $0x3e8] sm:$0xff]
        %v1426 = vld [vmem:[#allocation11 + $0x3f0] sm:$0xff]
        %v1427 = vld [vmem:[#allocation11 + $0x3f8] sm:$0xff]
        %1428 = vmatprep.subr.mxu0 %v1301
        %1429 = vmatpush1.msra.mxu0 %v1300
        %1430 = vmatprep.subr.mxu0 %v1305
        %1431 = vmatpush1.msra.mxu0 %v1304
        %1432 = vmatprep.subr.mxu0 %v1309
        %1433 = vmatpush1.msra.mxu0 %v1308
        %1434 = vmatprep.subr.mxu0 %v1313
        %1435 = vmatpush1.msra.mxu0 %v1312
        %1436 = vmatprep.subr.mxu0 %v1317
        %1437 = vmatpush1.msra.mxu0 %v1316
        %1438 = vmatprep.subr.mxu0 %v1321
        %1439 = vmatpush1.msra.mxu0 %v1320
        %1440 = vmatprep.subr.mxu0 %v1325
        %1441 = vmatpush1.msra.mxu0 %v1324
        %1442 = vmatprep.subr.mxu0 %v1329
        %1443 = vmatpush1.msra.mxu0 %v1328
        %1444 = vmatprep.subr.mxu0 %v1333
        %1445 = vmatpush1.msra.mxu0 %v1332
        %1446 = vmatprep.subr.mxu0 %v1337
        %1447 = vmatpush1.msra.mxu0 %v1336
        %1448 = vmatprep.subr.mxu0 %v1341
        %1449 = vmatpush1.msra.mxu0 %v1340
        %1450 = vmatprep.subr.mxu0 %v1345
        %1451 = vmatpush1.msra.mxu0 %v1344
        %1452 = vmatprep.subr.mxu0 %v1349
        %1453 = vmatpush1.msra.mxu0 %v1348
        %1454 = vmatprep.subr.mxu0 %v1353
        %1455 = vmatpush1.msra.mxu0 %v1352
        %1456 = vmatprep.subr.mxu0 %v1357
        %1457 = vmatpush1.msra.mxu0 %v1356
        %1458 = vmatprep.subr.mxu0 %v1361
        %1459 = vmatpush1.msra.mxu0 %v1360
        %1460 = vmatprep.subr.mxu0 %v1365
        %1461 = vmatpush1.msra.mxu0 %v1364
        %1462 = vmatprep.subr.mxu0 %v1369
        %1463 = vmatpush1.msra.mxu0 %v1368
        %1464 = vmatprep.subr.mxu0 %v1373
        %1465 = vmatpush1.msra.mxu0 %v1372
        %1466 = vmatprep.subr.mxu0 %v1377
        %1467 = vmatpush1.msra.mxu0 %v1376
        %1468 = vmatprep.subr.mxu0 %v1381
        %1469 = vmatpush1.msra.mxu0 %v1380
        %1470 = vmatprep.subr.mxu0 %v1385
        %1471 = vmatpush1.msra.mxu0 %v1384
        %1472 = vmatprep.subr.mxu0 %v1389
        %1473 = vmatpush1.msra.mxu0 %v1388
        %1474 = vmatprep.subr.mxu0 %v1393
        %1475 = vmatpush1.msra.mxu0 %v1392
        %1476 = vmatprep.subr.mxu0 %v1397
        %1477 = vmatpush1.msra.mxu0 %v1396
        %1478 = vmatprep.subr.mxu0 %v1401
        %1479 = vmatpush1.msra.mxu0 %v1400
        %1480 = vmatprep.subr.mxu0 %v1405
        %1481 = vmatpush1.msra.mxu0 %v1404
        %1482 = vmatprep.subr.mxu0 %v1409
        %1483 = vmatpush1.msra.mxu0 %v1408
        %1484 = vmatprep.subr.mxu0 %v1413
        %1485 = vmatpush1.msra.mxu0 %v1412
        %1486 = vmatprep.subr.mxu0 %v1417
        %1487 = vmatpush1.msra.mxu0 %v1416
        %1488 = vmatprep.subr.mxu0 %v1421
        %1489 = vmatpush1.msra.mxu0 %v1420
        %1490 = vmatprep.subr.mxu0 %v1425
        %1491 = vmatpush1.msra.mxu0 %v1424
        %1492 = vmatprep.mubr.f32.mxu0 %v1299
        %1493 = vmatmul.mubr.f32.gmra.mrb[0].mxu0 %v1298
        %v1494 = vpop.f32.mrb[0].mxu0
        %v1495 = vadd.f32 %v360, %v1494
        %v1496 = vpop.f32.mrb[0].mxu0
        %v1497 = vadd.f32 %v364, %v1496
        %1498 = vdwg.mxu0
        %1499 = vmatprep.subr.mxu0 %v1303
        %1500 = vmatpush1.msra.mxu0 %v1302
        %1501 = vmatprep.subr.mxu0 %v1307
        %1502 = vmatpush1.msra.mxu0 %v1306
        %1503 = vmatprep.subr.mxu0 %v1311
        %1504 = vmatpush1.msra.mxu0 %v1310
        %1505 = vmatprep.subr.mxu0 %v1315
        %1506 = vmatpush1.msra.mxu0 %v1314
        %1507 = vmatprep.subr.mxu0 %v1319
        %1508 = vmatpush1.msra.mxu0 %v1318
        %1509 = vmatprep.subr.mxu0 %v1323
        %1510 = vmatpush1.msra.mxu0 %v1322
        %1511 = vmatprep.subr.mxu0 %v1327
        %1512 = vmatpush1.msra.mxu0 %v1326
        %1513 = vmatprep.subr.mxu0 %v1331
        %1514 = vmatpush1.msra.mxu0 %v1330
        %1515 = vmatprep.subr.mxu0 %v1335
        %1516 = vmatpush1.msra.mxu0 %v1334
        %1517 = vmatprep.subr.mxu0 %v1339
        %1518 = vmatpush1.msra.mxu0 %v1338
        %1519 = vmatprep.subr.mxu0 %v1343
        %1520 = vmatpush1.msra.mxu0 %v1342
        %1521 = vmatprep.subr.mxu0 %v1347
        %1522 = vmatpush1.msra.mxu0 %v1346
        %1523 = vmatprep.subr.mxu0 %v1351
        %1524 = vmatpush1.msra.mxu0 %v1350
        %1525 = vmatprep.subr.mxu0 %v1355
        %1526 = vmatpush1.msra.mxu0 %v1354
        %1527 = vmatprep.subr.mxu0 %v1359
        %1528 = vmatpush1.msra.mxu0 %v1358
        %1529 = vmatprep.subr.mxu0 %v1363
        %1530 = vmatpush1.msra.mxu0 %v1362
        %1531 = vmatprep.subr.mxu0 %v1367
        %1532 = vmatpush1.msra.mxu0 %v1366
        %1533 = vmatprep.subr.mxu0 %v1371
        %1534 = vmatpush1.msra.mxu0 %v1370
        %1535 = vmatprep.subr.mxu0 %v1375
        %1536 = vmatpush1.msra.mxu0 %v1374
        %1537 = vmatprep.subr.mxu0 %v1379
        %1538 = vmatpush1.msra.mxu0 %v1378
        %1539 = vmatprep.subr.mxu0 %v1383
        %1540 = vmatpush1.msra.mxu0 %v1382
        %1541 = vmatprep.subr.mxu0 %v1387
        %1542 = vmatpush1.msra.mxu0 %v1386
        %1543 = vmatprep.subr.mxu0 %v1391
        %1544 = vmatpush1.msra.mxu0 %v1390
        %1545 = vmatprep.subr.mxu0 %v1395
        %1546 = vmatpush1.msra.mxu0 %v1394
        %1547 = vmatprep.subr.mxu0 %v1399
        %1548 = vmatpush1.msra.mxu0 %v1398
        %1549 = vmatprep.subr.mxu0 %v1403
        %1550 = vmatpush1.msra.mxu0 %v1402
        %1551 = vmatprep.subr.mxu0 %v1407
        %1552 = vmatpush1.msra.mxu0 %v1406
        %1553 = vmatprep.subr.mxu0 %v1411
        %1554 = vmatpush1.msra.mxu0 %v1410
        %1555 = vmatprep.subr.mxu0 %v1415
        %1556 = vmatpush1.msra.mxu0 %v1414
        %1557 = vmatprep.subr.mxu0 %v1419
        %1558 = vmatpush1.msra.mxu0 %v1418
        %1559 = vmatprep.subr.mxu0 %v1423
        %1560 = vmatpush1.msra.mxu0 %v1422
        %1561 = vmatprep.subr.mxu0 %v1427
        %1562 = vmatpush1.msra.mxu0 %v1426
        %1563 = vmatprep.mubr.f32.mxu0 %v1299
        %1564 = vmatmul.mubr.f32.gmra.mrb[0].mxu0 %v1298
        %v1565 = vpop.f32.mrb[0].mxu0
        %v1566 = vadd.f32 %v368, %v1565
        %v1567 = vpop.f32.mrb[0].mxu0
        %v1568 = vadd.f32 %v372, %v1567
        %1569 = vdwg.mxu0
        %v1570 = vxor.u32 %v1495, 2147483648
        %v1571 = vmul.f32 %v1570, 1.442695
        %v1572 = vpow.pop %v1571
        %v1573 = vadd.f32 %v1572, 1.0
        %v1574 = vrcp.pop %v1573
        %v1575 = vmul.f32 1.0, %v1574
        %v1576 = vxor.u32 %v1497, 2147483648
        %v1577 = vmul.f32 %v1576, 1.442695
        %v1578 = vpow.pop %v1577
        %v1579 = vadd.f32 %v1578, 1.0
        %v1580 = vrcp.pop %v1579
        %v1581 = vmul.f32 1.0, %v1580
        %v1582 = vtanh.pop %v1566
        %v1583 = vxor.u32 %v1568, 2147483648
        %v1584 = vmul.f32 %v1583, 1.442695
        %v1585 = vpow.pop %v1584
        %v1586 = vadd.f32 %v1585, 1.0
        %v1587 = vrcp.pop %v1586
        %v1588 = vmul.f32 1.0, %v1587
        %v1589 = vld [vmem:[#allocation3] sm:$0xff]
        %v1590 = vmul.f32 %v1581, %v1589
        %v1591 = vmul.f32 %v1575, %v1582
        %v1592 = vadd.f32 %v1590, %v1591
        %v1593 = vtanh.pop %v1592
        %v1594 = vmul.f32 %v1588, %v1593
        %1595 = vst [vmem:[#allocation2] sm:$0xff] %v1594
        %1596 = vst [vmem:[#allocation3] sm:$0xff] %v1592
        %s1597 = scalar_lea.vmem %s342, 24 [#allocation13]
        %1598 = vst [vmem:[%s1597] sm:$0xff] %v1594
        %s1599 = scalar_lea.vmem %s304, 32 [#allocation5]
        %v1600 = vld [vmem:[%s1599] sm:$0xff]
        %1601 = vst [vmem:[#allocation4] sm:$0xff] %v1600
        %v1602 = vld [vmem:[#allocation2] sm:$0xff]
        %1603 = vst [vmem:[#allocation4 + $0x8] sm:$0xff] %v1602
        %v1604 = vld [vmem:[#allocation4] sm:$0xff]
        %v1605 = vld [vmem:[#allocation4 + $0x8] sm:$0xff]
        %v1606 = vld [vmem:[#allocation11] sm:$0xff]
        %v1607 = vld [vmem:[#allocation11 + $0x8] sm:$0xff]
        %v1608 = vld [vmem:[#allocation11 + $0x10] sm:$0xff]
        %v1609 = vld [vmem:[#allocation11 + $0x18] sm:$0xff]
        %v1610 = vld [vmem:[#allocation11 + $0x20] sm:$0xff]
        %v1611 = vld [vmem:[#allocation11 + $0x28] sm:$0xff]
        %v1612 = vld [vmem:[#allocation11 + $0x30] sm:$0xff]
        %v1613 = vld [vmem:[#allocation11 + $0x38] sm:$0xff]
        %v1614 = vld [vmem:[#allocation11 + $0x40] sm:$0xff]
        %v1615 = vld [vmem:[#allocation11 + $0x48] sm:$0xff]
        %v1616 = vld [vmem:[#allocation11 + $0x50] sm:$0xff]
        %v1617 = vld [vmem:[#allocation11 + $0x58] sm:$0xff]
        %v1618 = vld [vmem:[#allocation11 + $0x60] sm:$0xff]
        %v1619 = vld [vmem:[#allocation11 + $0x68] sm:$0xff]
        %v1620 = vld [vmem:[#allocation11 + $0x70] sm:$0xff]
        %v1621 = vld [vmem:[#allocation11 + $0x78] sm:$0xff]
        %v1622 = vld [vmem:[#allocation11 + $0x80] sm:$0xff]
        %v1623 = vld [vmem:[#allocation11 + $0x88] sm:$0xff]
        %v1624 = vld [vmem:[#allocation11 + $0x90] sm:$0xff]
        %v1625 = vld [vmem:[#allocation11 + $0x98] sm:$0xff]
        %v1626 = vld [vmem:[#allocation11 + $0xa0] sm:$0xff]
        %v1627 = vld [vmem:[#allocation11 + $0xa8] sm:$0xff]
        %v1628 = vld [vmem:[#allocation11 + $0xb0] sm:$0xff]
        %v1629 = vld [vmem:[#allocation11 + $0xb8] sm:$0xff]
        %v1630 = vld [vmem:[#allocation11 + $0xc0] sm:$0xff]
        %v1631 = vld [vmem:[#allocation11 + $0xc8] sm:$0xff]
        %v1632 = vld [vmem:[#allocation11 + $0xd0] sm:$0xff]
        %v1633 = vld [vmem:[#allocation11 + $0xd8] sm:$0xff]
        %v1634 = vld [vmem:[#allocation11 + $0xe0] sm:$0xff]
        %v1635 = vld [vmem:[#allocation11 + $0xe8] sm:$0xff]
        %v1636 = vld [vmem:[#allocation11 + $0xf0] sm:$0xff]
        %v1637 = vld [vmem:[#allocation11 + $0xf8] sm:$0xff]
        %v1638 = vld [vmem:[#allocation11 + $0x100] sm:$0xff]
        %v1639 = vld [vmem:[#allocation11 + $0x108] sm:$0xff]
        %v1640 = vld [vmem:[#allocation11 + $0x110] sm:$0xff]
        %v1641 = vld [vmem:[#allocation11 + $0x118] sm:$0xff]
        %v1642 = vld [vmem:[#allocation11 + $0x120] sm:$0xff]
        %v1643 = vld [vmem:[#allocation11 + $0x128] sm:$0xff]
        %v1644 = vld [vmem:[#allocation11 + $0x130] sm:$0xff]
        %v1645 = vld [vmem:[#allocation11 + $0x138] sm:$0xff]
        %v1646 = vld [vmem:[#allocation11 + $0x140] sm:$0xff]
        %v1647 = vld [vmem:[#allocation11 + $0x148] sm:$0xff]
        %v1648 = vld [vmem:[#allocation11 + $0x150] sm:$0xff]
        %v1649 = vld [vmem:[#allocation11 + $0x158] sm:$0xff]
        %v1650 = vld [vmem:[#allocation11 + $0x160] sm:$0xff]
        %v1651 = vld [vmem:[#allocation11 + $0x168] sm:$0xff]
        %v1652 = vld [vmem:[#allocation11 + $0x170] sm:$0xff]
        %v1653 = vld [vmem:[#allocation11 + $0x178] sm:$0xff]
        %v1654 = vld [vmem:[#allocation11 + $0x180] sm:$0xff]
        %v1655 = vld [vmem:[#allocation11 + $0x188] sm:$0xff]
        %v1656 = vld [vmem:[#allocation11 + $0x190] sm:$0xff]
        %v1657 = vld [vmem:[#allocation11 + $0x198] sm:$0xff]
        %v1658 = vld [vmem:[#allocation11 + $0x1a0] sm:$0xff]
        %v1659 = vld [vmem:[#allocation11 + $0x1a8] sm:$0xff]
        %v1660 = vld [vmem:[#allocation11 + $0x1b0] sm:$0xff]
        %v1661 = vld [vmem:[#allocation11 + $0x1b8] sm:$0xff]
        %v1662 = vld [vmem:[#allocation11 + $0x1c0] sm:$0xff]
        %v1663 = vld [vmem:[#allocation11 + $0x1c8] sm:$0xff]
        %v1664 = vld [vmem:[#allocation11 + $0x1d0] sm:$0xff]
        %v1665 = vld [vmem:[#allocation11 + $0x1d8] sm:$0xff]
        %v1666 = vld [vmem:[#allocation11 + $0x1e0] sm:$0xff]
        %v1667 = vld [vmem:[#allocation11 + $0x1e8] sm:$0xff]
        %v1668 = vld [vmem:[#allocation11 + $0x1f0] sm:$0xff]
        %v1669 = vld [vmem:[#allocation11 + $0x1f8] sm:$0xff]
        %v1670 = vld [vmem:[#allocation11 + $0x200] sm:$0xff]
        %v1671 = vld [vmem:[#allocation11 + $0x208] sm:$0xff]
        %v1672 = vld [vmem:[#allocation11 + $0x210] sm:$0xff]
        %v1673 = vld [vmem:[#allocation11 + $0x218] sm:$0xff]
        %v1674 = vld [vmem:[#allocation11 + $0x220] sm:$0xff]
        %v1675 = vld [vmem:[#allocation11 + $0x228] sm:$0xff]
        %v1676 = vld [vmem:[#allocation11 + $0x230] sm:$0xff]
        %v1677 = vld [vmem:[#allocation11 + $0x238] sm:$0xff]
        %v1678 = vld [vmem:[#allocation11 + $0x240] sm:$0xff]
        %v1679 = vld [vmem:[#allocation11 + $0x248] sm:$0xff]
        %v1680 = vld [vmem:[#allocation11 + $0x250] sm:$0xff]
        %v1681 = vld [vmem:[#allocation11 + $0x258] sm:$0xff]
        %v1682 = vld [vmem:[#allocation11 + $0x260] sm:$0xff]
        %v1683 = vld [vmem:[#allocation11 + $0x268] sm:$0xff]
        %v1684 = vld [vmem:[#allocation11 + $0x270] sm:$0xff]
        %v1685 = vld [vmem:[#allocation11 + $0x278] sm:$0xff]
        %v1686 = vld [vmem:[#allocation11 + $0x280] sm:$0xff]
        %v1687 = vld [vmem:[#allocation11 + $0x288] sm:$0xff]
        %v1688 = vld [vmem:[#allocation11 + $0x290] sm:$0xff]
        %v1689 = vld [vmem:[#allocation11 + $0x298] sm:$0xff]
        %v1690 = vld [vmem:[#allocation11 + $0x2a0] sm:$0xff]
        %v1691 = vld [vmem:[#allocation11 + $0x2a8] sm:$0xff]
        %v1692 = vld [vmem:[#allocation11 + $0x2b0] sm:$0xff]
        %v1693 = vld [vmem:[#allocation11 + $0x2b8] sm:$0xff]
        %v1694 = vld [vmem:[#allocation11 + $0x2c0] sm:$0xff]
        %v1695 = vld [vmem:[#allocation11 + $0x2c8] sm:$0xff]
        %v1696 = vld [vmem:[#allocation11 + $0x2d0] sm:$0xff]
        %v1697 = vld [vmem:[#allocation11 + $0x2d8] sm:$0xff]
        %v1698 = vld [vmem:[#allocation11 + $0x2e0] sm:$0xff]
        %v1699 = vld [vmem:[#allocation11 + $0x2e8] sm:$0xff]
        %v1700 = vld [vmem:[#allocation11 + $0x2f0] sm:$0xff]
        %v1701 = vld [vmem:[#allocation11 + $0x2f8] sm:$0xff]
        %v1702 = vld [vmem:[#allocation11 + $0x300] sm:$0xff]
        %v1703 = vld [vmem:[#allocation11 + $0x308] sm:$0xff]
        %v1704 = vld [vmem:[#allocation11 + $0x310] sm:$0xff]
        %v1705 = vld [vmem:[#allocation11 + $0x318] sm:$0xff]
        %v1706 = vld [vmem:[#allocation11 + $0x320] sm:$0xff]
        %v1707 = vld [vmem:[#allocation11 + $0x328] sm:$0xff]
        %v1708 = vld [vmem:[#allocation11 + $0x330] sm:$0xff]
        %v1709 = vld [vmem:[#allocation11 + $0x338] sm:$0xff]
        %v1710 = vld [vmem:[#allocation11 + $0x340] sm:$0xff]
        %v1711 = vld [vmem:[#allocation11 + $0x348] sm:$0xff]
        %v1712 = vld [vmem:[#allocation11 + $0x350] sm:$0xff]
        %v1713 = vld [vmem:[#allocation11 + $0x358] sm:$0xff]
        %v1714 = vld [vmem:[#allocation11 + $0x360] sm:$0xff]
        %v1715 = vld [vmem:[#allocation11 + $0x368] sm:$0xff]
        %v1716 = vld [vmem:[#allocation11 + $0x370] sm:$0xff]
        %v1717 = vld [vmem:[#allocation11 + $0x378] sm:$0xff]
        %v1718 = vld [vmem:[#allocation11 + $0x380] sm:$0xff]
        %v1719 = vld [vmem:[#allocation11 + $0x388] sm:$0xff]
        %v1720 = vld [vmem:[#allocation11 + $0x390] sm:$0xff]
        %v1721 = vld [vmem:[#allocation11 + $0x398] sm:$0xff]
        %v1722 = vld [vmem:[#allocation11 + $0x3a0] sm:$0xff]
        %v1723 = vld [vmem:[#allocation11 + $0x3a8] sm:$0xff]
        %v1724 = vld [vmem:[#allocation11 + $0x3b0] sm:$0xff]
        %v1725 = vld [vmem:[#allocation11 + $0x3b8] sm:$0xff]
        %v1726 = vld [vmem:[#allocation11 + $0x3c0] sm:$0xff]
        %v1727 = vld [vmem:[#allocation11 + $0x3c8] sm:$0xff]
        %v1728 = vld [vmem:[#allocation11 + $0x3d0] sm:$0xff]
        %v1729 = vld [vmem:[#allocation11 + $0x3d8] sm:$0xff]
        %v1730 = vld [vmem:[#allocation11 + $0x3e0] sm:$0xff]
        %v1731 = vld [vmem:[#allocation11 + $0x3e8] sm:$0xff]
        %v1732 = vld [vmem:[#allocation11 + $0x3f0] sm:$0xff]
        %v1733 = vld [vmem:[#allocation11 + $0x3f8] sm:$0xff]
        %1734 = vmatprep.subr.mxu0 %v1607
        %1735 = vmatpush1.msra.mxu0 %v1606
        %1736 = vmatprep.subr.mxu0 %v1611
        %1737 = vmatpush1.msra.mxu0 %v1610
        %1738 = vmatprep.subr.mxu0 %v1615
        %1739 = vmatpush1.msra.mxu0 %v1614
        %1740 = vmatprep.subr.mxu0 %v1619
        %1741 = vmatpush1.msra.mxu0 %v1618
        %1742 = vmatprep.subr.mxu0 %v1623
        %1743 = vmatpush1.msra.mxu0 %v1622
        %1744 = vmatprep.subr.mxu0 %v1627
        %1745 = vmatpush1.msra.mxu0 %v1626
        %1746 = vmatprep.subr.mxu0 %v1631
        %1747 = vmatpush1.msra.mxu0 %v1630
        %1748 = vmatprep.subr.mxu0 %v1635
        %1749 = vmatpush1.msra.mxu0 %v1634
        %1750 = vmatprep.subr.mxu0 %v1639
        %1751 = vmatpush1.msra.mxu0 %v1638
        %1752 = vmatprep.subr.mxu0 %v1643
        %1753 = vmatpush1.msra.mxu0 %v1642
        %1754 = vmatprep.subr.mxu0 %v1647
        %1755 = vmatpush1.msra.mxu0 %v1646
        %1756 = vmatprep.subr.mxu0 %v1651
        %1757 = vmatpush1.msra.mxu0 %v1650
        %1758 = vmatprep.subr.mxu0 %v1655
        %1759 = vmatpush1.msra.mxu0 %v1654
        %1760 = vmatprep.subr.mxu0 %v1659
        %1761 = vmatpush1.msra.mxu0 %v1658
        %1762 = vmatprep.subr.mxu0 %v1663
        %1763 = vmatpush1.msra.mxu0 %v1662
        %1764 = vmatprep.subr.mxu0 %v1667
        %1765 = vmatpush1.msra.mxu0 %v1666
        %1766 = vmatprep.subr.mxu0 %v1671
        %1767 = vmatpush1.msra.mxu0 %v1670
        %1768 = vmatprep.subr.mxu0 %v1675
        %1769 = vmatpush1.msra.mxu0 %v1674
        %1770 = vmatprep.subr.mxu0 %v1679
        %1771 = vmatpush1.msra.mxu0 %v1678
        %1772 = vmatprep.subr.mxu0 %v1683
        %1773 = vmatpush1.msra.mxu0 %v1682
        %1774 = vmatprep.subr.mxu0 %v1687
        %1775 = vmatpush1.msra.mxu0 %v1686
        %1776 = vmatprep.subr.mxu0 %v1691
        %1777 = vmatpush1.msra.mxu0 %v1690
        %1778 = vmatprep.subr.mxu0 %v1695
        %1779 = vmatpush1.msra.mxu0 %v1694
        %1780 = vmatprep.subr.mxu0 %v1699
        %1781 = vmatpush1.msra.mxu0 %v1698
        %1782 = vmatprep.subr.mxu0 %v1703
        %1783 = vmatpush1.msra.mxu0 %v1702
        %1784 = vmatprep.subr.mxu0 %v1707
        %1785 = vmatpush1.msra.mxu0 %v1706
        %1786 = vmatprep.subr.mxu0 %v1711
        %1787 = vmatpush1.msra.mxu0 %v1710
        %1788 = vmatprep.subr.mxu0 %v1715
        %1789 = vmatpush1.msra.mxu0 %v1714
        %1790 = vmatprep.subr.mxu0 %v1719
        %1791 = vmatpush1.msra.mxu0 %v1718
        %1792 = vmatprep.subr.mxu0 %v1723
        %1793 = vmatpush1.msra.mxu0 %v1722
        %1794 = vmatprep.subr.mxu0 %v1727
        %1795 = vmatpush1.msra.mxu0 %v1726
        %1796 = vmatprep.subr.mxu0 %v1731
        %1797 = vmatpush1.msra.mxu0 %v1730
        %1798 = vmatprep.mubr.f32.mxu0 %v1605
        %1799 = vmatmul.mubr.f32.gmra.mrb[0].mxu0 %v1604
        %v1800 = vpop.f32.mrb[0].mxu0
        %v1801 = vadd.f32 %v360, %v1800
        %v1802 = vpop.f32.mrb[0].mxu0
        %v1803 = vadd.f32 %v364, %v1802
        %1804 = vdwg.mxu0
        %1805 = vmatprep.subr.mxu0 %v1609
        %1806 = vmatpush1.msra.mxu0 %v1608
        %1807 = vmatprep.subr.mxu0 %v1613
        %1808 = vmatpush1.msra.mxu0 %v1612
        %1809 = vmatprep.subr.mxu0 %v1617
        %1810 = vmatpush1.msra.mxu0 %v1616
        %1811 = vmatprep.subr.mxu0 %v1621
        %1812 = vmatpush1.msra.mxu0 %v1620
        %1813 = vmatprep.subr.mxu0 %v1625
        %1814 = vmatpush1.msra.mxu0 %v1624
        %1815 = vmatprep.subr.mxu0 %v1629
        %1816 = vmatpush1.msra.mxu0 %v1628
        %1817 = vmatprep.subr.mxu0 %v1633
        %1818 = vmatpush1.msra.mxu0 %v1632
        %1819 = vmatprep.subr.mxu0 %v1637
        %1820 = vmatpush1.msra.mxu0 %v1636
        %1821 = vmatprep.subr.mxu0 %v1641
        %1822 = vmatpush1.msra.mxu0 %v1640
        %1823 = vmatprep.subr.mxu0 %v1645
        %1824 = vmatpush1.msra.mxu0 %v1644
        %1825 = vmatprep.subr.mxu0 %v1649
        %1826 = vmatpush1.msra.mxu0 %v1648
        %1827 = vmatprep.subr.mxu0 %v1653
        %1828 = vmatpush1.msra.mxu0 %v1652
        %1829 = vmatprep.subr.mxu0 %v1657
        %1830 = vmatpush1.msra.mxu0 %v1656
        %1831 = vmatprep.subr.mxu0 %v1661
        %1832 = vmatpush1.msra.mxu0 %v1660
        %1833 = vmatprep.subr.mxu0 %v1665
        %1834 = vmatpush1.msra.mxu0 %v1664
        %1835 = vmatprep.subr.mxu0 %v1669
        %1836 = vmatpush1.msra.mxu0 %v1668
        %1837 = vmatprep.subr.mxu0 %v1673
        %1838 = vmatpush1.msra.mxu0 %v1672
        %1839 = vmatprep.subr.mxu0 %v1677
        %1840 = vmatpush1.msra.mxu0 %v1676
        %1841 = vmatprep.subr.mxu0 %v1681
        %1842 = vmatpush1.msra.mxu0 %v1680
        %1843 = vmatprep.subr.mxu0 %v1685
        %1844 = vmatpush1.msra.mxu0 %v1684
        %1845 = vmatprep.subr.mxu0 %v1689
        %1846 = vmatpush1.msra.mxu0 %v1688
        %1847 = vmatprep.subr.mxu0 %v1693
        %1848 = vmatpush1.msra.mxu0 %v1692
        %1849 = vmatprep.subr.mxu0 %v1697
        %1850 = vmatpush1.msra.mxu0 %v1696
        %1851 = vmatprep.subr.mxu0 %v1701
        %1852 = vmatpush1.msra.mxu0 %v1700
        %1853 = vmatprep.subr.mxu0 %v1705
        %1854 = vmatpush1.msra.mxu0 %v1704
        %1855 = vmatprep.subr.mxu0 %v1709
        %1856 = vmatpush1.msra.mxu0 %v1708
        %1857 = vmatprep.subr.mxu0 %v1713
        %1858 = vmatpush1.msra.mxu0 %v1712
        %1859 = vmatprep.subr.mxu0 %v1717
        %1860 = vmatpush1.msra.mxu0 %v1716
        %1861 = vmatprep.subr.mxu0 %v1721
        %1862 = vmatpush1.msra.mxu0 %v1720
        %1863 = vmatprep.subr.mxu0 %v1725
        %1864 = vmatpush1.msra.mxu0 %v1724
        %1865 = vmatprep.subr.mxu0 %v1729
        %1866 = vmatpush1.msra.mxu0 %v1728
        %1867 = vmatprep.subr.mxu0 %v1733
        %1868 = vmatpush1.msra.mxu0 %v1732
        %1869 = vmatprep.mubr.f32.mxu0 %v1605
        %1870 = vmatmul.mubr.f32.gmra.mrb[0].mxu0 %v1604
        %v1871 = vpop.f32.mrb[0].mxu0
        %v1872 = vadd.f32 %v368, %v1871
        %v1873 = vpop.f32.mrb[0].mxu0
        %v1874 = vadd.f32 %v372, %v1873
        %1875 = vdwg.mxu0
        %v1876 = vxor.u32 %v1801, 2147483648
        %v1877 = vmul.f32 %v1876, 1.442695
        %v1878 = vpow.pop %v1877
        %v1879 = vadd.f32 %v1878, 1.0
        %v1880 = vrcp.pop %v1879
        %v1881 = vmul.f32 1.0, %v1880
        %v1882 = vxor.u32 %v1803, 2147483648
        %v1883 = vmul.f32 %v1882, 1.442695
        %v1884 = vpow.pop %v1883
        %v1885 = vadd.f32 %v1884, 1.0
        %v1886 = vrcp.pop %v1885
        %v1887 = vmul.f32 1.0, %v1886
        %v1888 = vtanh.pop %v1872
        %v1889 = vxor.u32 %v1874, 2147483648
        %v1890 = vmul.f32 %v1889, 1.442695
        %v1891 = vpow.pop %v1890
        %v1892 = vadd.f32 %v1891, 1.0
        %v1893 = vrcp.pop %v1892
        %v1894 = vmul.f32 1.0, %v1893
        %v1895 = vld [vmem:[#allocation3] sm:$0xff]
        %v1896 = vmul.f32 %v1887, %v1895
        %v1897 = vmul.f32 %v1881, %v1888
        %v1898 = vadd.f32 %v1896, %v1897
        %v1899 = vtanh.pop %v1898
        %v1900 = vmul.f32 %v1894, %v1899
        %1901 = vst [vmem:[#allocation2] sm:$0xff] %v1900
        %1902 = vst [vmem:[#allocation3] sm:$0xff] %v1898
        %s1903 = scalar_lea.vmem %s342, 32 [#allocation13]
        %1904 = vst [vmem:[%s1903] sm:$0xff] %v1900
        %s1905 = scalar_lea.vmem %s304, 40 [#allocation5]
        %v1906 = vld [vmem:[%s1905] sm:$0xff]
        %1907 = vst [vmem:[#allocation4] sm:$0xff] %v1906
        %v1908 = vld [vmem:[#allocation2] sm:$0xff]
        %1909 = vst [vmem:[#allocation4 + $0x8] sm:$0xff] %v1908
        %v1910 = vld [vmem:[#allocation4] sm:$0xff]
        %v1911 = vld [vmem:[#allocation4 + $0x8] sm:$0xff]
        %v1912 = vld [vmem:[#allocation11] sm:$0xff]
        %v1913 = vld [vmem:[#allocation11 + $0x8] sm:$0xff]
        %v1914 = vld [vmem:[#allocation11 + $0x10] sm:$0xff]
        %v1915 = vld [vmem:[#allocation11 + $0x18] sm:$0xff]
        %v1916 = vld [vmem:[#allocation11 + $0x20] sm:$0xff]
        %v1917 = vld [vmem:[#allocation11 + $0x28] sm:$0xff]
        %v1918 = vld [vmem:[#allocation11 + $0x30] sm:$0xff]
        %v1919 = vld [vmem:[#allocation11 + $0x38] sm:$0xff]
        %v1920 = vld [vmem:[#allocation11 + $0x40] sm:$0xff]
        %v1921 = vld [vmem:[#allocation11 + $0x48] sm:$0xff]
        %v1922 = vld [vmem:[#allocation11 + $0x50] sm:$0xff]
        %v1923 = vld [vmem:[#allocation11 + $0x58] sm:$0xff]
        %v1924 = vld [vmem:[#allocation11 + $0x60] sm:$0xff]
        %v1925 = vld [vmem:[#allocation11 + $0x68] sm:$0xff]
        %v1926 = vld [vmem:[#allocation11 + $0x70] sm:$0xff]
        %v1927 = vld [vmem:[#allocation11 + $0x78] sm:$0xff]
        %v1928 = vld [vmem:[#allocation11 + $0x80] sm:$0xff]
        %v1929 = vld [vmem:[#allocation11 + $0x88] sm:$0xff]
        %v1930 = vld [vmem:[#allocation11 + $0x90] sm:$0xff]
        %v1931 = vld [vmem:[#allocation11 + $0x98] sm:$0xff]
        %v1932 = vld [vmem:[#allocation11 + $0xa0] sm:$0xff]
        %v1933 = vld [vmem:[#allocation11 + $0xa8] sm:$0xff]
        %v1934 = vld [vmem:[#allocation11 + $0xb0] sm:$0xff]
        %v1935 = vld [vmem:[#allocation11 + $0xb8] sm:$0xff]
        %v1936 = vld [vmem:[#allocation11 + $0xc0] sm:$0xff]
        %v1937 = vld [vmem:[#allocation11 + $0xc8] sm:$0xff]
        %v1938 = vld [vmem:[#allocation11 + $0xd0] sm:$0xff]
        %v1939 = vld [vmem:[#allocation11 + $0xd8] sm:$0xff]
        %v1940 = vld [vmem:[#allocation11 + $0xe0] sm:$0xff]
        %v1941 = vld [vmem:[#allocation11 + $0xe8] sm:$0xff]
        %v1942 = vld [vmem:[#allocation11 + $0xf0] sm:$0xff]
        %v1943 = vld [vmem:[#allocation11 + $0xf8] sm:$0xff]
        %v1944 = vld [vmem:[#allocation11 + $0x100] sm:$0xff]
        %v1945 = vld [vmem:[#allocation11 + $0x108] sm:$0xff]
        %v1946 = vld [vmem:[#allocation11 + $0x110] sm:$0xff]
        %v1947 = vld [vmem:[#allocation11 + $0x118] sm:$0xff]
        %v1948 = vld [vmem:[#allocation11 + $0x120] sm:$0xff]
        %v1949 = vld [vmem:[#allocation11 + $0x128] sm:$0xff]
        %v1950 = vld [vmem:[#allocation11 + $0x130] sm:$0xff]
        %v1951 = vld [vmem:[#allocation11 + $0x138] sm:$0xff]
        %v1952 = vld [vmem:[#allocation11 + $0x140] sm:$0xff]
        %v1953 = vld [vmem:[#allocation11 + $0x148] sm:$0xff]
        %v1954 = vld [vmem:[#allocation11 + $0x150] sm:$0xff]
        %v1955 = vld [vmem:[#allocation11 + $0x158] sm:$0xff]
        %v1956 = vld [vmem:[#allocation11 + $0x160] sm:$0xff]
        %v1957 = vld [vmem:[#allocation11 + $0x168] sm:$0xff]
        %v1958 = vld [vmem:[#allocation11 + $0x170] sm:$0xff]
        %v1959 = vld [vmem:[#allocation11 + $0x178] sm:$0xff]
        %v1960 = vld [vmem:[#allocation11 + $0x180] sm:$0xff]
        %v1961 = vld [vmem:[#allocation11 + $0x188] sm:$0xff]
        %v1962 = vld [vmem:[#allocation11 + $0x190] sm:$0xff]
        %v1963 = vld [vmem:[#allocation11 + $0x198] sm:$0xff]
        %v1964 = vld [vmem:[#allocation11 + $0x1a0] sm:$0xff]
        %v1965 = vld [vmem:[#allocation11 + $0x1a8] sm:$0xff]
        %v1966 = vld [vmem:[#allocation11 + $0x1b0] sm:$0xff]
        %v1967 = vld [vmem:[#allocation11 + $0x1b8] sm:$0xff]
        %v1968 = vld [vmem:[#allocation11 + $0x1c0] sm:$0xff]
        %v1969 = vld [vmem:[#allocation11 + $0x1c8] sm:$0xff]
        %v1970 = vld [vmem:[#allocation11 + $0x1d0] sm:$0xff]
        %v1971 = vld [vmem:[#allocation11 + $0x1d8] sm:$0xff]
        %v1972 = vld [vmem:[#allocation11 + $0x1e0] sm:$0xff]
        %v1973 = vld [vmem:[#allocation11 + $0x1e8] sm:$0xff]
        %v1974 = vld [vmem:[#allocation11 + $0x1f0] sm:$0xff]
        %v1975 = vld [vmem:[#allocation11 + $0x1f8] sm:$0xff]
        %v1976 = vld [vmem:[#allocation11 + $0x200] sm:$0xff]
        %v1977 = vld [vmem:[#allocation11 + $0x208] sm:$0xff]
        %v1978 = vld [vmem:[#allocation11 + $0x210] sm:$0xff]
        %v1979 = vld [vmem:[#allocation11 + $0x218] sm:$0xff]
        %v1980 = vld [vmem:[#allocation11 + $0x220] sm:$0xff]
        %v1981 = vld [vmem:[#allocation11 + $0x228] sm:$0xff]
        %v1982 = vld [vmem:[#allocation11 + $0x230] sm:$0xff]
        %v1983 = vld [vmem:[#allocation11 + $0x238] sm:$0xff]
        %v1984 = vld [vmem:[#allocation11 + $0x240] sm:$0xff]
        %v1985 = vld [vmem:[#allocation11 + $0x248] sm:$0xff]
        %v1986 = vld [vmem:[#allocation11 + $0x250] sm:$0xff]
        %v1987 = vld [vmem:[#allocation11 + $0x258] sm:$0xff]
        %v1988 = vld [vmem:[#allocation11 + $0x260] sm:$0xff]
        %v1989 = vld [vmem:[#allocation11 + $0x268] sm:$0xff]
        %v1990 = vld [vmem:[#allocation11 + $0x270] sm:$0xff]
        %v1991 = vld [vmem:[#allocation11 + $0x278] sm:$0xff]
        %v1992 = vld [vmem:[#allocation11 + $0x280] sm:$0xff]
        %v1993 = vld [vmem:[#allocation11 + $0x288] sm:$0xff]
        %v1994 = vld [vmem:[#allocation11 + $0x290] sm:$0xff]
        %v1995 = vld [vmem:[#allocation11 + $0x298] sm:$0xff]
        %v1996 = vld [vmem:[#allocation11 + $0x2a0] sm:$0xff]
        %v1997 = vld [vmem:[#allocation11 + $0x2a8] sm:$0xff]
        %v1998 = vld [vmem:[#allocation11 + $0x2b0] sm:$0xff]
        %v1999 = vld [vmem:[#allocation11 + $0x2b8] sm:$0xff]
        %v2000 = vld [vmem:[#allocation11 + $0x2c0] sm:$0xff]
        %v2001 = vld [vmem:[#allocation11 + $0x2c8] sm:$0xff]
        %v2002 = vld [vmem:[#allocation11 + $0x2d0] sm:$0xff]
        %v2003 = vld [vmem:[#allocation11 + $0x2d8] sm:$0xff]
        %v2004 = vld [vmem:[#allocation11 + $0x2e0] sm:$0xff]
        %v2005 = vld [vmem:[#allocation11 + $0x2e8] sm:$0xff]
        %v2006 = vld [vmem:[#allocation11 + $0x2f0] sm:$0xff]
        %v2007 = vld [vmem:[#allocation11 + $0x2f8] sm:$0xff]
        %v2008 = vld [vmem:[#allocation11 + $0x300] sm:$0xff]
        %v2009 = vld [vmem:[#allocation11 + $0x308] sm:$0xff]
        %v2010 = vld [vmem:[#allocation11 + $0x310] sm:$0xff]
        %v2011 = vld [vmem:[#allocation11 + $0x318] sm:$0xff]
        %v2012 = vld [vmem:[#allocation11 + $0x320] sm:$0xff]
        %v2013 = vld [vmem:[#allocation11 + $0x328] sm:$0xff]
        %v2014 = vld [vmem:[#allocation11 + $0x330] sm:$0xff]
        %v2015 = vld [vmem:[#allocation11 + $0x338] sm:$0xff]
        %v2016 = vld [vmem:[#allocation11 + $0x340] sm:$0xff]
        %v2017 = vld [vmem:[#allocation11 + $0x348] sm:$0xff]
        %v2018 = vld [vmem:[#allocation11 + $0x350] sm:$0xff]
        %v2019 = vld [vmem:[#allocation11 + $0x358] sm:$0xff]
        %v2020 = vld [vmem:[#allocation11 + $0x360] sm:$0xff]
        %v2021 = vld [vmem:[#allocation11 + $0x368] sm:$0xff]
        %v2022 = vld [vmem:[#allocation11 + $0x370] sm:$0xff]
        %v2023 = vld [vmem:[#allocation11 + $0x378] sm:$0xff]
        %v2024 = vld [vmem:[#allocation11 + $0x380] sm:$0xff]
        %v2025 = vld [vmem:[#allocation11 + $0x388] sm:$0xff]
        %v2026 = vld [vmem:[#allocation11 + $0x390] sm:$0xff]
        %v2027 = vld [vmem:[#allocation11 + $0x398] sm:$0xff]
        %v2028 = vld [vmem:[#allocation11 + $0x3a0] sm:$0xff]
        %v2029 = vld [vmem:[#allocation11 + $0x3a8] sm:$0xff]
        %v2030 = vld [vmem:[#allocation11 + $0x3b0] sm:$0xff]
        %v2031 = vld [vmem:[#allocation11 + $0x3b8] sm:$0xff]
        %v2032 = vld [vmem:[#allocation11 + $0x3c0] sm:$0xff]
        %v2033 = vld [vmem:[#allocation11 + $0x3c8] sm:$0xff]
        %v2034 = vld [vmem:[#allocation11 + $0x3d0] sm:$0xff]
        %v2035 = vld [vmem:[#allocation11 + $0x3d8] sm:$0xff]
        %v2036 = vld [vmem:[#allocation11 + $0x3e0] sm:$0xff]
        %v2037 = vld [vmem:[#allocation11 + $0x3e8] sm:$0xff]
        %v2038 = vld [vmem:[#allocation11 + $0x3f0] sm:$0xff]
        %v2039 = vld [vmem:[#allocation11 + $0x3f8] sm:$0xff]
        %2040 = vmatprep.subr.mxu0 %v1913
        %2041 = vmatpush1.msra.mxu0 %v1912
        %2042 = vmatprep.subr.mxu0 %v1917
        %2043 = vmatpush1.msra.mxu0 %v1916
        %2044 = vmatprep.subr.mxu0 %v1921
        %2045 = vmatpush1.msra.mxu0 %v1920
        %2046 = vmatprep.subr.mxu0 %v1925
        %2047 = vmatpush1.msra.mxu0 %v1924
        %2048 = vmatprep.subr.mxu0 %v1929
        %2049 = vmatpush1.msra.mxu0 %v1928
        %2050 = vmatprep.subr.mxu0 %v1933
        %2051 = vmatpush1.msra.mxu0 %v1932
        %2052 = vmatprep.subr.mxu0 %v1937
        %2053 = vmatpush1.msra.mxu0 %v1936
        %2054 = vmatprep.subr.mxu0 %v1941
        %2055 = vmatpush1.msra.mxu0 %v1940
        %2056 = vmatprep.subr.mxu0 %v1945
        %2057 = vmatpush1.msra.mxu0 %v1944
        %2058 = vmatprep.subr.mxu0 %v1949
        %2059 = vmatpush1.msra.mxu0 %v1948
        %2060 = vmatprep.subr.mxu0 %v1953
        %2061 = vmatpush1.msra.mxu0 %v1952
        %2062 = vmatprep.subr.mxu0 %v1957
        %2063 = vmatpush1.msra.mxu0 %v1956
        %2064 = vmatprep.subr.mxu0 %v1961
        %2065 = vmatpush1.msra.mxu0 %v1960
        %2066 = vmatprep.subr.mxu0 %v1965
        %2067 = vmatpush1.msra.mxu0 %v1964
        %2068 = vmatprep.subr.mxu0 %v1969
        %2069 = vmatpush1.msra.mxu0 %v1968
        %2070 = vmatprep.subr.mxu0 %v1973
        %2071 = vmatpush1.msra.mxu0 %v1972
        %2072 = vmatprep.subr.mxu0 %v1977
        %2073 = vmatpush1.msra.mxu0 %v1976
        %2074 = vmatprep.subr.mxu0 %v1981
        %2075 = vmatpush1.msra.mxu0 %v1980
        %2076 = vmatprep.subr.mxu0 %v1985
        %2077 = vmatpush1.msra.mxu0 %v1984
        %2078 = vmatprep.subr.mxu0 %v1989
        %2079 = vmatpush1.msra.mxu0 %v1988
        %2080 = vmatprep.subr.mxu0 %v1993
        %2081 = vmatpush1.msra.mxu0 %v1992
        %2082 = vmatprep.subr.mxu0 %v1997
        %2083 = vmatpush1.msra.mxu0 %v1996
        %2084 = vmatprep.subr.mxu0 %v2001
        %2085 = vmatpush1.msra.mxu0 %v2000
        %2086 = vmatprep.subr.mxu0 %v2005
        %2087 = vmatpush1.msra.mxu0 %v2004
        %2088 = vmatprep.subr.mxu0 %v2009
        %2089 = vmatpush1.msra.mxu0 %v2008
        %2090 = vmatprep.subr.mxu0 %v2013
        %2091 = vmatpush1.msra.mxu0 %v2012
        %2092 = vmatprep.subr.mxu0 %v2017
        %2093 = vmatpush1.msra.mxu0 %v2016
        %2094 = vmatprep.subr.mxu0 %v2021
        %2095 = vmatpush1.msra.mxu0 %v2020
        %2096 = vmatprep.subr.mxu0 %v2025
        %2097 = vmatpush1.msra.mxu0 %v2024
        %2098 = vmatprep.subr.mxu0 %v2029
        %2099 = vmatpush1.msra.mxu0 %v2028
        %2100 = vmatprep.subr.mxu0 %v2033
        %2101 = vmatpush1.msra.mxu0 %v2032
        %2102 = vmatprep.subr.mxu0 %v2037
        %2103 = vmatpush1.msra.mxu0 %v2036
        %2104 = vmatprep.mubr.f32.mxu0 %v1911
        %2105 = vmatmul.mubr.f32.gmra.mrb[0].mxu0 %v1910
        %v2106 = vpop.f32.mrb[0].mxu0
        %v2107 = vadd.f32 %v360, %v2106
        %v2108 = vpop.f32.mrb[0].mxu0
        %v2109 = vadd.f32 %v364, %v2108
        %2110 = vdwg.mxu0
        %2111 = vmatprep.subr.mxu0 %v1915
        %2112 = vmatpush1.msra.mxu0 %v1914
        %2113 = vmatprep.subr.mxu0 %v1919
        %2114 = vmatpush1.msra.mxu0 %v1918
        %2115 = vmatprep.subr.mxu0 %v1923
        %2116 = vmatpush1.msra.mxu0 %v1922
        %2117 = vmatprep.subr.mxu0 %v1927
        %2118 = vmatpush1.msra.mxu0 %v1926
        %2119 = vmatprep.subr.mxu0 %v1931
        %2120 = vmatpush1.msra.mxu0 %v1930
        %2121 = vmatprep.subr.mxu0 %v1935
        %2122 = vmatpush1.msra.mxu0 %v1934
        %2123 = vmatprep.subr.mxu0 %v1939
        %2124 = vmatpush1.msra.mxu0 %v1938
        %2125 = vmatprep.subr.mxu0 %v1943
        %2126 = vmatpush1.msra.mxu0 %v1942
        %2127 = vmatprep.subr.mxu0 %v1947
        %2128 = vmatpush1.msra.mxu0 %v1946
        %2129 = vmatprep.subr.mxu0 %v1951
        %2130 = vmatpush1.msra.mxu0 %v1950
        %2131 = vmatprep.subr.mxu0 %v1955
        %2132 = vmatpush1.msra.mxu0 %v1954
        %2133 = vmatprep.subr.mxu0 %v1959
        %2134 = vmatpush1.msra.mxu0 %v1958
        %2135 = vmatprep.subr.mxu0 %v1963
        %2136 = vmatpush1.msra.mxu0 %v1962
        %2137 = vmatprep.subr.mxu0 %v1967
        %2138 = vmatpush1.msra.mxu0 %v1966
        %2139 = vmatprep.subr.mxu0 %v1971
        %2140 = vmatpush1.msra.mxu0 %v1970
        %2141 = vmatprep.subr.mxu0 %v1975
        %2142 = vmatpush1.msra.mxu0 %v1974
        %2143 = vmatprep.subr.mxu0 %v1979
        %2144 = vmatpush1.msra.mxu0 %v1978
        %2145 = vmatprep.subr.mxu0 %v1983
        %2146 = vmatpush1.msra.mxu0 %v1982
        %2147 = vmatprep.subr.mxu0 %v1987
        %2148 = vmatpush1.msra.mxu0 %v1986
        %2149 = vmatprep.subr.mxu0 %v1991
        %2150 = vmatpush1.msra.mxu0 %v1990
        %2151 = vmatprep.subr.mxu0 %v1995
        %2152 = vmatpush1.msra.mxu0 %v1994
        %2153 = vmatprep.subr.mxu0 %v1999
        %2154 = vmatpush1.msra.mxu0 %v1998
        %2155 = vmatprep.subr.mxu0 %v2003
        %2156 = vmatpush1.msra.mxu0 %v2002
        %2157 = vmatprep.subr.mxu0 %v2007
        %2158 = vmatpush1.msra.mxu0 %v2006
        %2159 = vmatprep.subr.mxu0 %v2011
        %2160 = vmatpush1.msra.mxu0 %v2010
        %2161 = vmatprep.subr.mxu0 %v2015
        %2162 = vmatpush1.msra.mxu0 %v2014
        %2163 = vmatprep.subr.mxu0 %v2019
        %2164 = vmatpush1.msra.mxu0 %v2018
        %2165 = vmatprep.subr.mxu0 %v2023
        %2166 = vmatpush1.msra.mxu0 %v2022
        %2167 = vmatprep.subr.mxu0 %v2027
        %2168 = vmatpush1.msra.mxu0 %v2026
        %2169 = vmatprep.subr.mxu0 %v2031
        %2170 = vmatpush1.msra.mxu0 %v2030
        %2171 = vmatprep.subr.mxu0 %v2035
        %2172 = vmatpush1.msra.mxu0 %v2034
        %2173 = vmatprep.subr.mxu0 %v2039
        %2174 = vmatpush1.msra.mxu0 %v2038
        %2175 = vmatprep.mubr.f32.mxu0 %v1911
        %2176 = vmatmul.mubr.f32.gmra.mrb[0].mxu0 %v1910
        %v2177 = vpop.f32.mrb[0].mxu0
        %v2178 = vadd.f32 %v368, %v2177
        %v2179 = vpop.f32.mrb[0].mxu0
        %v2180 = vadd.f32 %v372, %v2179
        %2181 = vdwg.mxu0
        %v2182 = vxor.u32 %v2107, 2147483648
        %v2183 = vmul.f32 %v2182, 1.442695
        %v2184 = vpow.pop %v2183
        %v2185 = vadd.f32 %v2184, 1.0
        %v2186 = vrcp.pop %v2185
        %v2187 = vmul.f32 1.0, %v2186
        %v2188 = vxor.u32 %v2109, 2147483648
        %v2189 = vmul.f32 %v2188, 1.442695
        %v2190 = vpow.pop %v2189
        %v2191 = vadd.f32 %v2190, 1.0
        %v2192 = vrcp.pop %v2191
        %v2193 = vmul.f32 1.0, %v2192
        %v2194 = vtanh.pop %v2178
        %v2195 = vxor.u32 %v2180, 2147483648
        %v2196 = vmul.f32 %v2195, 1.442695
        %v2197 = vpow.pop %v2196
        %v2198 = vadd.f32 %v2197, 1.0
        %v2199 = vrcp.pop %v2198
        %v2200 = vmul.f32 1.0, %v2199
        %v2201 = vld [vmem:[#allocation3] sm:$0xff]
        %v2202 = vmul.f32 %v2193, %v2201
        %v2203 = vmul.f32 %v2187, %v2194
        %v2204 = vadd.f32 %v2202, %v2203
        %v2205 = vtanh.pop %v2204
        %v2206 = vmul.f32 %v2200, %v2205
        %2207 = vst [vmem:[#allocation2] sm:$0xff] %v2206
        %2208 = vst [vmem:[#allocation3] sm:$0xff] %v2204
        %s2209 = scalar_lea.vmem %s342, 40 [#allocation13]
        %2210 = vst [vmem:[%s2209] sm:$0xff] %v2206
        %s2211 = scalar_lea.vmem %s304, 48 [#allocation5]
        %v2212 = vld [vmem:[%s2211] sm:$0xff]
        %2213 = vst [vmem:[#allocation4] sm:$0xff] %v2212
        %v2214 = vld [vmem:[#allocation2] sm:$0xff]
        %2215 = vst [vmem:[#allocation4 + $0x8] sm:$0xff] %v2214
        %v2216 = vld [vmem:[#allocation4] sm:$0xff]
        %v2217 = vld [vmem:[#allocation4 + $0x8] sm:$0xff]
        %v2218 = vld [vmem:[#allocation11] sm:$0xff]
        %v2219 = vld [vmem:[#allocation11 + $0x8] sm:$0xff]
        %v2220 = vld [vmem:[#allocation11 + $0x10] sm:$0xff]
        %v2221 = vld [vmem:[#allocation11 + $0x18] sm:$0xff]
        %v2222 = vld [vmem:[#allocation11 + $0x20] sm:$0xff]
        %v2223 = vld [vmem:[#allocation11 + $0x28] sm:$0xff]
        %v2224 = vld [vmem:[#allocation11 + $0x30] sm:$0xff]
        %v2225 = vld [vmem:[#allocation11 + $0x38] sm:$0xff]
        %v2226 = vld [vmem:[#allocation11 + $0x40] sm:$0xff]
        %v2227 = vld [vmem:[#allocation11 + $0x48] sm:$0xff]
        %v2228 = vld [vmem:[#allocation11 + $0x50] sm:$0xff]
        %v2229 = vld [vmem:[#allocation11 + $0x58] sm:$0xff]
        %v2230 = vld [vmem:[#allocation11 + $0x60] sm:$0xff]
        %v2231 = vld [vmem:[#allocation11 + $0x68] sm:$0xff]
        %v2232 = vld [vmem:[#allocation11 + $0x70] sm:$0xff]
        %v2233 = vld [vmem:[#allocation11 + $0x78] sm:$0xff]
        %v2234 = vld [vmem:[#allocation11 + $0x80] sm:$0xff]
        %v2235 = vld [vmem:[#allocation11 + $0x88] sm:$0xff]
        %v2236 = vld [vmem:[#allocation11 + $0x90] sm:$0xff]
        %v2237 = vld [vmem:[#allocation11 + $0x98] sm:$0xff]
        %v2238 = vld [vmem:[#allocation11 + $0xa0] sm:$0xff]
        %v2239 = vld [vmem:[#allocation11 + $0xa8] sm:$0xff]
        %v2240 = vld [vmem:[#allocation11 + $0xb0] sm:$0xff]
        %v2241 = vld [vmem:[#allocation11 + $0xb8] sm:$0xff]
        %v2242 = vld [vmem:[#allocation11 + $0xc0] sm:$0xff]
        %v2243 = vld [vmem:[#allocation11 + $0xc8] sm:$0xff]
        %v2244 = vld [vmem:[#allocation11 + $0xd0] sm:$0xff]
        %v2245 = vld [vmem:[#allocation11 + $0xd8] sm:$0xff]
        %v2246 = vld [vmem:[#allocation11 + $0xe0] sm:$0xff]
        %v2247 = vld [vmem:[#allocation11 + $0xe8] sm:$0xff]
        %v2248 = vld [vmem:[#allocation11 + $0xf0] sm:$0xff]
        %v2249 = vld [vmem:[#allocation11 + $0xf8] sm:$0xff]
        %v2250 = vld [vmem:[#allocation11 + $0x100] sm:$0xff]
        %v2251 = vld [vmem:[#allocation11 + $0x108] sm:$0xff]
        %v2252 = vld [vmem:[#allocation11 + $0x110] sm:$0xff]
        %v2253 = vld [vmem:[#allocation11 + $0x118] sm:$0xff]
        %v2254 = vld [vmem:[#allocation11 + $0x120] sm:$0xff]
        %v2255 = vld [vmem:[#allocation11 + $0x128] sm:$0xff]
        %v2256 = vld [vmem:[#allocation11 + $0x130] sm:$0xff]
        %v2257 = vld [vmem:[#allocation11 + $0x138] sm:$0xff]
        %v2258 = vld [vmem:[#allocation11 + $0x140] sm:$0xff]
        %v2259 = vld [vmem:[#allocation11 + $0x148] sm:$0xff]
        %v2260 = vld [vmem:[#allocation11 + $0x150] sm:$0xff]
        %v2261 = vld [vmem:[#allocation11 + $0x158] sm:$0xff]
        %v2262 = vld [vmem:[#allocation11 + $0x160] sm:$0xff]
        %v2263 = vld [vmem:[#allocation11 + $0x168] sm:$0xff]
        %v2264 = vld [vmem:[#allocation11 + $0x170] sm:$0xff]
        %v2265 = vld [vmem:[#allocation11 + $0x178] sm:$0xff]
        %v2266 = vld [vmem:[#allocation11 + $0x180] sm:$0xff]
        %v2267 = vld [vmem:[#allocation11 + $0x188] sm:$0xff]
        %v2268 = vld [vmem:[#allocation11 + $0x190] sm:$0xff]
        %v2269 = vld [vmem:[#allocation11 + $0x198] sm:$0xff]
        %v2270 = vld [vmem:[#allocation11 + $0x1a0] sm:$0xff]
        %v2271 = vld [vmem:[#allocation11 + $0x1a8] sm:$0xff]
        %v2272 = vld [vmem:[#allocation11 + $0x1b0] sm:$0xff]
        %v2273 = vld [vmem:[#allocation11 + $0x1b8] sm:$0xff]
        %v2274 = vld [vmem:[#allocation11 + $0x1c0] sm:$0xff]
        %v2275 = vld [vmem:[#allocation11 + $0x1c8] sm:$0xff]
        %v2276 = vld [vmem:[#allocation11 + $0x1d0] sm:$0xff]
        %v2277 = vld [vmem:[#allocation11 + $0x1d8] sm:$0xff]
        %v2278 = vld [vmem:[#allocation11 + $0x1e0] sm:$0xff]
        %v2279 = vld [vmem:[#allocation11 + $0x1e8] sm:$0xff]
        %v2280 = vld [vmem:[#allocation11 + $0x1f0] sm:$0xff]
        %v2281 = vld [vmem:[#allocation11 + $0x1f8] sm:$0xff]
        %v2282 = vld [vmem:[#allocation11 + $0x200] sm:$0xff]
        %v2283 = vld [vmem:[#allocation11 + $0x208] sm:$0xff]
        %v2284 = vld [vmem:[#allocation11 + $0x210] sm:$0xff]
        %v2285 = vld [vmem:[#allocation11 + $0x218] sm:$0xff]
        %v2286 = vld [vmem:[#allocation11 + $0x220] sm:$0xff]
        %v2287 = vld [vmem:[#allocation11 + $0x228] sm:$0xff]
        %v2288 = vld [vmem:[#allocation11 + $0x230] sm:$0xff]
        %v2289 = vld [vmem:[#allocation11 + $0x238] sm:$0xff]
        %v2290 = vld [vmem:[#allocation11 + $0x240] sm:$0xff]
        %v2291 = vld [vmem:[#allocation11 + $0x248] sm:$0xff]
        %v2292 = vld [vmem:[#allocation11 + $0x250] sm:$0xff]
        %v2293 = vld [vmem:[#allocation11 + $0x258] sm:$0xff]
        %v2294 = vld [vmem:[#allocation11 + $0x260] sm:$0xff]
        %v2295 = vld [vmem:[#allocation11 + $0x268] sm:$0xff]
        %v2296 = vld [vmem:[#allocation11 + $0x270] sm:$0xff]
        %v2297 = vld [vmem:[#allocation11 + $0x278] sm:$0xff]
        %v2298 = vld [vmem:[#allocation11 + $0x280] sm:$0xff]
        %v2299 = vld [vmem:[#allocation11 + $0x288] sm:$0xff]
        %v2300 = vld [vmem:[#allocation11 + $0x290] sm:$0xff]
        %v2301 = vld [vmem:[#allocation11 + $0x298] sm:$0xff]
        %v2302 = vld [vmem:[#allocation11 + $0x2a0] sm:$0xff]
        %v2303 = vld [vmem:[#allocation11 + $0x2a8] sm:$0xff]
        %v2304 = vld [vmem:[#allocation11 + $0x2b0] sm:$0xff]
        %v2305 = vld [vmem:[#allocation11 + $0x2b8] sm:$0xff]
        %v2306 = vld [vmem:[#allocation11 + $0x2c0] sm:$0xff]
        %v2307 = vld [vmem:[#allocation11 + $0x2c8] sm:$0xff]
        %v2308 = vld [vmem:[#allocation11 + $0x2d0] sm:$0xff]
        %v2309 = vld [vmem:[#allocation11 + $0x2d8] sm:$0xff]
        %v2310 = vld [vmem:[#allocation11 + $0x2e0] sm:$0xff]
        %v2311 = vld [vmem:[#allocation11 + $0x2e8] sm:$0xff]
        %v2312 = vld [vmem:[#allocation11 + $0x2f0] sm:$0xff]
        %v2313 = vld [vmem:[#allocation11 + $0x2f8] sm:$0xff]
        %v2314 = vld [vmem:[#allocation11 + $0x300] sm:$0xff]
        %v2315 = vld [vmem:[#allocation11 + $0x308] sm:$0xff]
        %v2316 = vld [vmem:[#allocation11 + $0x310] sm:$0xff]
        %v2317 = vld [vmem:[#allocation11 + $0x318] sm:$0xff]
        %v2318 = vld [vmem:[#allocation11 + $0x320] sm:$0xff]
        %v2319 = vld [vmem:[#allocation11 + $0x328] sm:$0xff]
        %v2320 = vld [vmem:[#allocation11 + $0x330] sm:$0xff]
        %v2321 = vld [vmem:[#allocation11 + $0x338] sm:$0xff]
        %v2322 = vld [vmem:[#allocation11 + $0x340] sm:$0xff]
        %v2323 = vld [vmem:[#allocation11 + $0x348] sm:$0xff]
        %v2324 = vld [vmem:[#allocation11 + $0x350] sm:$0xff]
        %v2325 = vld [vmem:[#allocation11 + $0x358] sm:$0xff]
        %v2326 = vld [vmem:[#allocation11 + $0x360] sm:$0xff]
        %v2327 = vld [vmem:[#allocation11 + $0x368] sm:$0xff]
        %v2328 = vld [vmem:[#allocation11 + $0x370] sm:$0xff]
        %v2329 = vld [vmem:[#allocation11 + $0x378] sm:$0xff]
        %v2330 = vld [vmem:[#allocation11 + $0x380] sm:$0xff]
        %v2331 = vld [vmem:[#allocation11 + $0x388] sm:$0xff]
        %v2332 = vld [vmem:[#allocation11 + $0x390] sm:$0xff]
        %v2333 = vld [vmem:[#allocation11 + $0x398] sm:$0xff]
        %v2334 = vld [vmem:[#allocation11 + $0x3a0] sm:$0xff]
        %v2335 = vld [vmem:[#allocation11 + $0x3a8] sm:$0xff]
        %v2336 = vld [vmem:[#allocation11 + $0x3b0] sm:$0xff]
        %v2337 = vld [vmem:[#allocation11 + $0x3b8] sm:$0xff]
        %v2338 = vld [vmem:[#allocation11 + $0x3c0] sm:$0xff]
        %v2339 = vld [vmem:[#allocation11 + $0x3c8] sm:$0xff]
        %v2340 = vld [vmem:[#allocation11 + $0x3d0] sm:$0xff]
        %v2341 = vld [vmem:[#allocation11 + $0x3d8] sm:$0xff]
        %v2342 = vld [vmem:[#allocation11 + $0x3e0] sm:$0xff]
        %v2343 = vld [vmem:[#allocation11 + $0x3e8] sm:$0xff]
        %v2344 = vld [vmem:[#allocation11 + $0x3f0] sm:$0xff]
        %v2345 = vld [vmem:[#allocation11 + $0x3f8] sm:$0xff]
        %2346 = vmatprep.subr.mxu0 %v2219
        %2347 = vmatpush1.msra.mxu0 %v2218
        %2348 = vmatprep.subr.mxu0 %v2223
        %2349 = vmatpush1.msra.mxu0 %v2222
        %2350 = vmatprep.subr.mxu0 %v2227
        %2351 = vmatpush1.msra.mxu0 %v2226
        %2352 = vmatprep.subr.mxu0 %v2231
        %2353 = vmatpush1.msra.mxu0 %v2230
        %2354 = vmatprep.subr.mxu0 %v2235
        %2355 = vmatpush1.msra.mxu0 %v2234
        %2356 = vmatprep.subr.mxu0 %v2239
        %2357 = vmatpush1.msra.mxu0 %v2238
        %2358 = vmatprep.subr.mxu0 %v2243
        %2359 = vmatpush1.msra.mxu0 %v2242
        %2360 = vmatprep.subr.mxu0 %v2247
        %2361 = vmatpush1.msra.mxu0 %v2246
        %2362 = vmatprep.subr.mxu0 %v2251
        %2363 = vmatpush1.msra.mxu0 %v2250
        %2364 = vmatprep.subr.mxu0 %v2255
        %2365 = vmatpush1.msra.mxu0 %v2254
        %2366 = vmatprep.subr.mxu0 %v2259
        %2367 = vmatpush1.msra.mxu0 %v2258
        %2368 = vmatprep.subr.mxu0 %v2263
        %2369 = vmatpush1.msra.mxu0 %v2262
        %2370 = vmatprep.subr.mxu0 %v2267
        %2371 = vmatpush1.msra.mxu0 %v2266
        %2372 = vmatprep.subr.mxu0 %v2271
        %2373 = vmatpush1.msra.mxu0 %v2270
        %2374 = vmatprep.subr.mxu0 %v2275
        %2375 = vmatpush1.msra.mxu0 %v2274
        %2376 = vmatprep.subr.mxu0 %v2279
        %2377 = vmatpush1.msra.mxu0 %v2278
        %2378 = vmatprep.subr.mxu0 %v2283
        %2379 = vmatpush1.msra.mxu0 %v2282
        %2380 = vmatprep.subr.mxu0 %v2287
        %2381 = vmatpush1.msra.mxu0 %v2286
        %2382 = vmatprep.subr.mxu0 %v2291
        %2383 = vmatpush1.msra.mxu0 %v2290
        %2384 = vmatprep.subr.mxu0 %v2295
        %2385 = vmatpush1.msra.mxu0 %v2294
        %2386 = vmatprep.subr.mxu0 %v2299
        %2387 = vmatpush1.msra.mxu0 %v2298
        %2388 = vmatprep.subr.mxu0 %v2303
        %2389 = vmatpush1.msra.mxu0 %v2302
        %2390 = vmatprep.subr.mxu0 %v2307
        %2391 = vmatpush1.msra.mxu0 %v2306
        %2392 = vmatprep.subr.mxu0 %v2311
        %2393 = vmatpush1.msra.mxu0 %v2310
        %2394 = vmatprep.subr.mxu0 %v2315
        %2395 = vmatpush1.msra.mxu0 %v2314
        %2396 = vmatprep.subr.mxu0 %v2319
        %2397 = vmatpush1.msra.mxu0 %v2318
        %2398 = vmatprep.subr.mxu0 %v2323
        %2399 = vmatpush1.msra.mxu0 %v2322
        %2400 = vmatprep.subr.mxu0 %v2327
        %2401 = vmatpush1.msra.mxu0 %v2326
        %2402 = vmatprep.subr.mxu0 %v2331
        %2403 = vmatpush1.msra.mxu0 %v2330
        %2404 = vmatprep.subr.mxu0 %v2335
        %2405 = vmatpush1.msra.mxu0 %v2334
        %2406 = vmatprep.subr.mxu0 %v2339
        %2407 = vmatpush1.msra.mxu0 %v2338
        %2408 = vmatprep.subr.mxu0 %v2343
        %2409 = vmatpush1.msra.mxu0 %v2342
        %2410 = vmatprep.mubr.f32.mxu0 %v2217
        %2411 = vmatmul.mubr.f32.gmra.mrb[0].mxu0 %v2216
        %v2412 = vpop.f32.mrb[0].mxu0
        %v2413 = vadd.f32 %v360, %v2412
        %v2414 = vpop.f32.mrb[0].mxu0
        %v2415 = vadd.f32 %v364, %v2414
        %2416 = vdwg.mxu0
        %2417 = vmatprep.subr.mxu0 %v2221
        %2418 = vmatpush1.msra.mxu0 %v2220
        %2419 = vmatprep.subr.mxu0 %v2225
        %2420 = vmatpush1.msra.mxu0 %v2224
        %2421 = vmatprep.subr.mxu0 %v2229
        %2422 = vmatpush1.msra.mxu0 %v2228
        %2423 = vmatprep.subr.mxu0 %v2233
        %2424 = vmatpush1.msra.mxu0 %v2232
        %2425 = vmatprep.subr.mxu0 %v2237
        %2426 = vmatpush1.msra.mxu0 %v2236
        %2427 = vmatprep.subr.mxu0 %v2241
        %2428 = vmatpush1.msra.mxu0 %v2240
        %2429 = vmatprep.subr.mxu0 %v2245
        %2430 = vmatpush1.msra.mxu0 %v2244
        %2431 = vmatprep.subr.mxu0 %v2249
        %2432 = vmatpush1.msra.mxu0 %v2248
        %2433 = vmatprep.subr.mxu0 %v2253
        %2434 = vmatpush1.msra.mxu0 %v2252
        %2435 = vmatprep.subr.mxu0 %v2257
        %2436 = vmatpush1.msra.mxu0 %v2256
        %2437 = vmatprep.subr.mxu0 %v2261
        %2438 = vmatpush1.msra.mxu0 %v2260
        %2439 = vmatprep.subr.mxu0 %v2265
        %2440 = vmatpush1.msra.mxu0 %v2264
        %2441 = vmatprep.subr.mxu0 %v2269
        %2442 = vmatpush1.msra.mxu0 %v2268
        %2443 = vmatprep.subr.mxu0 %v2273
        %2444 = vmatpush1.msra.mxu0 %v2272
        %2445 = vmatprep.subr.mxu0 %v2277
        %2446 = vmatpush1.msra.mxu0 %v2276
        %2447 = vmatprep.subr.mxu0 %v2281
        %2448 = vmatpush1.msra.mxu0 %v2280
        %2449 = vmatprep.subr.mxu0 %v2285
        %2450 = vmatpush1.msra.mxu0 %v2284
        %2451 = vmatprep.subr.mxu0 %v2289
        %2452 = vmatpush1.msra.mxu0 %v2288
        %2453 = vmatprep.subr.mxu0 %v2293
        %2454 = vmatpush1.msra.mxu0 %v2292
        %2455 = vmatprep.subr.mxu0 %v2297
        %2456 = vmatpush1.msra.mxu0 %v2296
        %2457 = vmatprep.subr.mxu0 %v2301
        %2458 = vmatpush1.msra.mxu0 %v2300
        %2459 = vmatprep.subr.mxu0 %v2305
        %2460 = vmatpush1.msra.mxu0 %v2304
        %2461 = vmatprep.subr.mxu0 %v2309
        %2462 = vmatpush1.msra.mxu0 %v2308
        %2463 = vmatprep.subr.mxu0 %v2313
        %2464 = vmatpush1.msra.mxu0 %v2312
        %2465 = vmatprep.subr.mxu0 %v2317
        %2466 = vmatpush1.msra.mxu0 %v2316
        %2467 = vmatprep.subr.mxu0 %v2321
        %2468 = vmatpush1.msra.mxu0 %v2320
        %2469 = vmatprep.subr.mxu0 %v2325
        %2470 = vmatpush1.msra.mxu0 %v2324
        %2471 = vmatprep.subr.mxu0 %v2329
        %2472 = vmatpush1.msra.mxu0 %v2328
        %2473 = vmatprep.subr.mxu0 %v2333
        %2474 = vmatpush1.msra.mxu0 %v2332
        %2475 = vmatprep.subr.mxu0 %v2337
        %2476 = vmatpush1.msra.mxu0 %v2336
        %2477 = vmatprep.subr.mxu0 %v2341
        %2478 = vmatpush1.msra.mxu0 %v2340
        %2479 = vmatprep.subr.mxu0 %v2345
        %2480 = vmatpush1.msra.mxu0 %v2344
        %2481 = vmatprep.mubr.f32.mxu0 %v2217
        %2482 = vmatmul.mubr.f32.gmra.mrb[0].mxu0 %v2216
        %v2483 = vpop.f32.mrb[0].mxu0
        %v2484 = vadd.f32 %v368, %v2483
        %v2485 = vpop.f32.mrb[0].mxu0
        %v2486 = vadd.f32 %v372, %v2485
        %2487 = vdwg.mxu0
        %v2488 = vxor.u32 %v2413, 2147483648
        %v2489 = vmul.f32 %v2488, 1.442695
        %v2490 = vpow.pop %v2489
        %v2491 = vadd.f32 %v2490, 1.0
        %v2492 = vrcp.pop %v2491
        %v2493 = vmul.f32 1.0, %v2492
        %v2494 = vxor.u32 %v2415, 2147483648
        %v2495 = vmul.f32 %v2494, 1.442695
        %v2496 = vpow.pop %v2495
        %v2497 = vadd.f32 %v2496, 1.0
        %v2498 = vrcp.pop %v2497
        %v2499 = vmul.f32 1.0, %v2498
        %v2500 = vtanh.pop %v2484
        %v2501 = vxor.u32 %v2486, 2147483648
        %v2502 = vmul.f32 %v2501, 1.442695
        %v2503 = vpow.pop %v2502
        %v2504 = vadd.f32 %v2503, 1.0
        %v2505 = vrcp.pop %v2504
        %v2506 = vmul.f32 1.0, %v2505
        %v2507 = vld [vmem:[#allocation3] sm:$0xff]
        %v2508 = vmul.f32 %v2499, %v2507
        %v2509 = vmul.f32 %v2493, %v2500
        %v2510 = vadd.f32 %v2508, %v2509
        %v2511 = vtanh.pop %v2510
        %v2512 = vmul.f32 %v2506, %v2511
        %2513 = vst [vmem:[#allocation2] sm:$0xff] %v2512
        %2514 = vst [vmem:[#allocation3] sm:$0xff] %v2510
        %s2515 = scalar_lea.vmem %s342, 48 [#allocation13]
        %2516 = vst [vmem:[%s2515] sm:$0xff] %v2512
        %s2517 = scalar_lea.vmem %s304, 56 [#allocation5]
        %v2518 = vld [vmem:[%s2517] sm:$0xff]
        %2519 = vst [vmem:[#allocation4] sm:$0xff] %v2518
        %v2520 = vld [vmem:[#allocation2] sm:$0xff]
        %2521 = vst [vmem:[#allocation4 + $0x8] sm:$0xff] %v2520
        %v2522 = vld [vmem:[#allocation4] sm:$0xff]
        %v2523 = vld [vmem:[#allocation4 + $0x8] sm:$0xff]
        %v2524 = vld [vmem:[#allocation11] sm:$0xff]
        %v2525 = vld [vmem:[#allocation11 + $0x8] sm:$0xff]
        %v2526 = vld [vmem:[#allocation11 + $0x10] sm:$0xff]
        %v2527 = vld [vmem:[#allocation11 + $0x18] sm:$0xff]
        %v2528 = vld [vmem:[#allocation11 + $0x20] sm:$0xff]
        %v2529 = vld [vmem:[#allocation11 + $0x28] sm:$0xff]
        %v2530 = vld [vmem:[#allocation11 + $0x30] sm:$0xff]
        %v2531 = vld [vmem:[#allocation11 + $0x38] sm:$0xff]
        %v2532 = vld [vmem:[#allocation11 + $0x40] sm:$0xff]
        %v2533 = vld [vmem:[#allocation11 + $0x48] sm:$0xff]
        %v2534 = vld [vmem:[#allocation11 + $0x50] sm:$0xff]
        %v2535 = vld [vmem:[#allocation11 + $0x58] sm:$0xff]
        %v2536 = vld [vmem:[#allocation11 + $0x60] sm:$0xff]
        %v2537 = vld [vmem:[#allocation11 + $0x68] sm:$0xff]
        %v2538 = vld [vmem:[#allocation11 + $0x70] sm:$0xff]
        %v2539 = vld [vmem:[#allocation11 + $0x78] sm:$0xff]
        %v2540 = vld [vmem:[#allocation11 + $0x80] sm:$0xff]
        %v2541 = vld [vmem:[#allocation11 + $0x88] sm:$0xff]
        %v2542 = vld [vmem:[#allocation11 + $0x90] sm:$0xff]
        %v2543 = vld [vmem:[#allocation11 + $0x98] sm:$0xff]
        %v2544 = vld [vmem:[#allocation11 + $0xa0] sm:$0xff]
        %v2545 = vld [vmem:[#allocation11 + $0xa8] sm:$0xff]
        %v2546 = vld [vmem:[#allocation11 + $0xb0] sm:$0xff]
        %v2547 = vld [vmem:[#allocation11 + $0xb8] sm:$0xff]
        %v2548 = vld [vmem:[#allocation11 + $0xc0] sm:$0xff]
        %v2549 = vld [vmem:[#allocation11 + $0xc8] sm:$0xff]
        %v2550 = vld [vmem:[#allocation11 + $0xd0] sm:$0xff]
        %v2551 = vld [vmem:[#allocation11 + $0xd8] sm:$0xff]
        %v2552 = vld [vmem:[#allocation11 + $0xe0] sm:$0xff]
        %v2553 = vld [vmem:[#allocation11 + $0xe8] sm:$0xff]
        %v2554 = vld [vmem:[#allocation11 + $0xf0] sm:$0xff]
        %v2555 = vld [vmem:[#allocation11 + $0xf8] sm:$0xff]
        %v2556 = vld [vmem:[#allocation11 + $0x100] sm:$0xff]
        %v2557 = vld [vmem:[#allocation11 + $0x108] sm:$0xff]
        %v2558 = vld [vmem:[#allocation11 + $0x110] sm:$0xff]
        %v2559 = vld [vmem:[#allocation11 + $0x118] sm:$0xff]
        %v2560 = vld [vmem:[#allocation11 + $0x120] sm:$0xff]
        %v2561 = vld [vmem:[#allocation11 + $0x128] sm:$0xff]
        %v2562 = vld [vmem:[#allocation11 + $0x130] sm:$0xff]
        %v2563 = vld [vmem:[#allocation11 + $0x138] sm:$0xff]
        %v2564 = vld [vmem:[#allocation11 + $0x140] sm:$0xff]
        %v2565 = vld [vmem:[#allocation11 + $0x148] sm:$0xff]
        %v2566 = vld [vmem:[#allocation11 + $0x150] sm:$0xff]
        %v2567 = vld [vmem:[#allocation11 + $0x158] sm:$0xff]
        %v2568 = vld [vmem:[#allocation11 + $0x160] sm:$0xff]
        %v2569 = vld [vmem:[#allocation11 + $0x168] sm:$0xff]
        %v2570 = vld [vmem:[#allocation11 + $0x170] sm:$0xff]
        %v2571 = vld [vmem:[#allocation11 + $0x178] sm:$0xff]
        %v2572 = vld [vmem:[#allocation11 + $0x180] sm:$0xff]
        %v2573 = vld [vmem:[#allocation11 + $0x188] sm:$0xff]
        %v2574 = vld [vmem:[#allocation11 + $0x190] sm:$0xff]
        %v2575 = vld [vmem:[#allocation11 + $0x198] sm:$0xff]
        %v2576 = vld [vmem:[#allocation11 + $0x1a0] sm:$0xff]
        %v2577 = vld [vmem:[#allocation11 + $0x1a8] sm:$0xff]
        %v2578 = vld [vmem:[#allocation11 + $0x1b0] sm:$0xff]
        %v2579 = vld [vmem:[#allocation11 + $0x1b8] sm:$0xff]
        %v2580 = vld [vmem:[#allocation11 + $0x1c0] sm:$0xff]
        %v2581 = vld [vmem:[#allocation11 + $0x1c8] sm:$0xff]
        %v2582 = vld [vmem:[#allocation11 + $0x1d0] sm:$0xff]
        %v2583 = vld [vmem:[#allocation11 + $0x1d8] sm:$0xff]
        %v2584 = vld [vmem:[#allocation11 + $0x1e0] sm:$0xff]
        %v2585 = vld [vmem:[#allocation11 + $0x1e8] sm:$0xff]
        %v2586 = vld [vmem:[#allocation11 + $0x1f0] sm:$0xff]
        %v2587 = vld [vmem:[#allocation11 + $0x1f8] sm:$0xff]
        %v2588 = vld [vmem:[#allocation11 + $0x200] sm:$0xff]
        %v2589 = vld [vmem:[#allocation11 + $0x208] sm:$0xff]
        %v2590 = vld [vmem:[#allocation11 + $0x210] sm:$0xff]
        %v2591 = vld [vmem:[#allocation11 + $0x218] sm:$0xff]
        %v2592 = vld [vmem:[#allocation11 + $0x220] sm:$0xff]
        %v2593 = vld [vmem:[#allocation11 + $0x228] sm:$0xff]
        %v2594 = vld [vmem:[#allocation11 + $0x230] sm:$0xff]
        %v2595 = vld [vmem:[#allocation11 + $0x238] sm:$0xff]
        %v2596 = vld [vmem:[#allocation11 + $0x240] sm:$0xff]
        %v2597 = vld [vmem:[#allocation11 + $0x248] sm:$0xff]
        %v2598 = vld [vmem:[#allocation11 + $0x250] sm:$0xff]
        %v2599 = vld [vmem:[#allocation11 + $0x258] sm:$0xff]
        %v2600 = vld [vmem:[#allocation11 + $0x260] sm:$0xff]
        %v2601 = vld [vmem:[#allocation11 + $0x268] sm:$0xff]
        %v2602 = vld [vmem:[#allocation11 + $0x270] sm:$0xff]
        %v2603 = vld [vmem:[#allocation11 + $0x278] sm:$0xff]
        %v2604 = vld [vmem:[#allocation11 + $0x280] sm:$0xff]
        %v2605 = vld [vmem:[#allocation11 + $0x288] sm:$0xff]
        %v2606 = vld [vmem:[#allocation11 + $0x290] sm:$0xff]
        %v2607 = vld [vmem:[#allocation11 + $0x298] sm:$0xff]
        %v2608 = vld [vmem:[#allocation11 + $0x2a0] sm:$0xff]
        %v2609 = vld [vmem:[#allocation11 + $0x2a8] sm:$0xff]
        %v2610 = vld [vmem:[#allocation11 + $0x2b0] sm:$0xff]
        %v2611 = vld [vmem:[#allocation11 + $0x2b8] sm:$0xff]
        %v2612 = vld [vmem:[#allocation11 + $0x2c0] sm:$0xff]
        %v2613 = vld [vmem:[#allocation11 + $0x2c8] sm:$0xff]
        %v2614 = vld [vmem:[#allocation11 + $0x2d0] sm:$0xff]
        %v2615 = vld [vmem:[#allocation11 + $0x2d8] sm:$0xff]
        %v2616 = vld [vmem:[#allocation11 + $0x2e0] sm:$0xff]
        %v2617 = vld [vmem:[#allocation11 + $0x2e8] sm:$0xff]
        %v2618 = vld [vmem:[#allocation11 + $0x2f0] sm:$0xff]
        %v2619 = vld [vmem:[#allocation11 + $0x2f8] sm:$0xff]
        %v2620 = vld [vmem:[#allocation11 + $0x300] sm:$0xff]
        %v2621 = vld [vmem:[#allocation11 + $0x308] sm:$0xff]
        %v2622 = vld [vmem:[#allocation11 + $0x310] sm:$0xff]
        %v2623 = vld [vmem:[#allocation11 + $0x318] sm:$0xff]
        %v2624 = vld [vmem:[#allocation11 + $0x320] sm:$0xff]
        %v2625 = vld [vmem:[#allocation11 + $0x328] sm:$0xff]
        %v2626 = vld [vmem:[#allocation11 + $0x330] sm:$0xff]
        %v2627 = vld [vmem:[#allocation11 + $0x338] sm:$0xff]
        %v2628 = vld [vmem:[#allocation11 + $0x340] sm:$0xff]
        %v2629 = vld [vmem:[#allocation11 + $0x348] sm:$0xff]
        %v2630 = vld [vmem:[#allocation11 + $0x350] sm:$0xff]
        %v2631 = vld [vmem:[#allocation11 + $0x358] sm:$0xff]
        %v2632 = vld [vmem:[#allocation11 + $0x360] sm:$0xff]
        %v2633 = vld [vmem:[#allocation11 + $0x368] sm:$0xff]
        %v2634 = vld [vmem:[#allocation11 + $0x370] sm:$0xff]
        %v2635 = vld [vmem:[#allocation11 + $0x378] sm:$0xff]
        %v2636 = vld [vmem:[#allocation11 + $0x380] sm:$0xff]
        %v2637 = vld [vmem:[#allocation11 + $0x388] sm:$0xff]
        %v2638 = vld [vmem:[#allocation11 + $0x390] sm:$0xff]
        %v2639 = vld [vmem:[#allocation11 + $0x398] sm:$0xff]
        %v2640 = vld [vmem:[#allocation11 + $0x3a0] sm:$0xff]
        %v2641 = vld [vmem:[#allocation11 + $0x3a8] sm:$0xff]
        %v2642 = vld [vmem:[#allocation11 + $0x3b0] sm:$0xff]
        %v2643 = vld [vmem:[#allocation11 + $0x3b8] sm:$0xff]
        %v2644 = vld [vmem:[#allocation11 + $0x3c0] sm:$0xff]
        %v2645 = vld [vmem:[#allocation11 + $0x3c8] sm:$0xff]
        %v2646 = vld [vmem:[#allocation11 + $0x3d0] sm:$0xff]
        %v2647 = vld [vmem:[#allocation11 + $0x3d8] sm:$0xff]
        %v2648 = vld [vmem:[#allocation11 + $0x3e0] sm:$0xff]
        %v2649 = vld [vmem:[#allocation11 + $0x3e8] sm:$0xff]
        %v2650 = vld [vmem:[#allocation11 + $0x3f0] sm:$0xff]
        %v2651 = vld [vmem:[#allocation11 + $0x3f8] sm:$0xff]
        %2652 = vmatprep.subr.mxu0 %v2525
        %2653 = vmatpush1.msra.mxu0 %v2524
        %2654 = vmatprep.subr.mxu0 %v2529
        %2655 = vmatpush1.msra.mxu0 %v2528
        %2656 = vmatprep.subr.mxu0 %v2533
        %2657 = vmatpush1.msra.mxu0 %v2532
        %2658 = vmatprep.subr.mxu0 %v2537
        %2659 = vmatpush1.msra.mxu0 %v2536
        %2660 = vmatprep.subr.mxu0 %v2541
        %2661 = vmatpush1.msra.mxu0 %v2540
        %2662 = vmatprep.subr.mxu0 %v2545
        %2663 = vmatpush1.msra.mxu0 %v2544
        %2664 = vmatprep.subr.mxu0 %v2549
        %2665 = vmatpush1.msra.mxu0 %v2548
        %2666 = vmatprep.subr.mxu0 %v2553
        %2667 = vmatpush1.msra.mxu0 %v2552
        %2668 = vmatprep.subr.mxu0 %v2557
        %2669 = vmatpush1.msra.mxu0 %v2556
        %2670 = vmatprep.subr.mxu0 %v2561
        %2671 = vmatpush1.msra.mxu0 %v2560
        %2672 = vmatprep.subr.mxu0 %v2565
        %2673 = vmatpush1.msra.mxu0 %v2564
        %2674 = vmatprep.subr.mxu0 %v2569
        %2675 = vmatpush1.msra.mxu0 %v2568
        %2676 = vmatprep.subr.mxu0 %v2573
        %2677 = vmatpush1.msra.mxu0 %v2572
        %2678 = vmatprep.subr.mxu0 %v2577
        %2679 = vmatpush1.msra.mxu0 %v2576
        %2680 = vmatprep.subr.mxu0 %v2581
        %2681 = vmatpush1.msra.mxu0 %v2580
        %2682 = vmatprep.subr.mxu0 %v2585
        %2683 = vmatpush1.msra.mxu0 %v2584
        %2684 = vmatprep.subr.mxu0 %v2589
        %2685 = vmatpush1.msra.mxu0 %v2588
        %2686 = vmatprep.subr.mxu0 %v2593
        %2687 = vmatpush1.msra.mxu0 %v2592
        %2688 = vmatprep.subr.mxu0 %v2597
        %2689 = vmatpush1.msra.mxu0 %v2596
        %2690 = vmatprep.subr.mxu0 %v2601
        %2691 = vmatpush1.msra.mxu0 %v2600
        %2692 = vmatprep.subr.mxu0 %v2605
        %2693 = vmatpush1.msra.mxu0 %v2604
        %2694 = vmatprep.subr.mxu0 %v2609
        %2695 = vmatpush1.msra.mxu0 %v2608
        %2696 = vmatprep.subr.mxu0 %v2613
        %2697 = vmatpush1.msra.mxu0 %v2612
        %2698 = vmatprep.subr.mxu0 %v2617
        %2699 = vmatpush1.msra.mxu0 %v2616
        %2700 = vmatprep.subr.mxu0 %v2621
        %2701 = vmatpush1.msra.mxu0 %v2620
        %2702 = vmatprep.subr.mxu0 %v2625
        %2703 = vmatpush1.msra.mxu0 %v2624
        %2704 = vmatprep.subr.mxu0 %v2629
        %2705 = vmatpush1.msra.mxu0 %v2628
        %2706 = vmatprep.subr.mxu0 %v2633
        %2707 = vmatpush1.msra.mxu0 %v2632
        %2708 = vmatprep.subr.mxu0 %v2637
        %2709 = vmatpush1.msra.mxu0 %v2636
        %2710 = vmatprep.subr.mxu0 %v2641
        %2711 = vmatpush1.msra.mxu0 %v2640
        %2712 = vmatprep.subr.mxu0 %v2645
        %2713 = vmatpush1.msra.mxu0 %v2644
        %2714 = vmatprep.subr.mxu0 %v2649
        %2715 = vmatpush1.msra.mxu0 %v2648
        %2716 = vmatprep.mubr.f32.mxu0 %v2523
        %2717 = vmatmul.mubr.f32.gmra.mrb[0].mxu0 %v2522
        %v2718 = vpop.f32.mrb[0].mxu0
        %v2719 = vadd.f32 %v360, %v2718
        %v2720 = vpop.f32.mrb[0].mxu0
        %v2721 = vadd.f32 %v364, %v2720
        %2722 = vdwg.mxu0
        %2723 = vmatprep.subr.mxu0 %v2527
        %2724 = vmatpush1.msra.mxu0 %v2526
        %2725 = vmatprep.subr.mxu0 %v2531
        %2726 = vmatpush1.msra.mxu0 %v2530
        %2727 = vmatprep.subr.mxu0 %v2535
        %2728 = vmatpush1.msra.mxu0 %v2534
        %2729 = vmatprep.subr.mxu0 %v2539
        %2730 = vmatpush1.msra.mxu0 %v2538
        %2731 = vmatprep.subr.mxu0 %v2543
        %2732 = vmatpush1.msra.mxu0 %v2542
        %2733 = vmatprep.subr.mxu0 %v2547
        %2734 = vmatpush1.msra.mxu0 %v2546
        %2735 = vmatprep.subr.mxu0 %v2551
        %2736 = vmatpush1.msra.mxu0 %v2550
        %2737 = vmatprep.subr.mxu0 %v2555
        %2738 = vmatpush1.msra.mxu0 %v2554
        %2739 = vmatprep.subr.mxu0 %v2559
        %2740 = vmatpush1.msra.mxu0 %v2558
        %2741 = vmatprep.subr.mxu0 %v2563
        %2742 = vmatpush1.msra.mxu0 %v2562
        %2743 = vmatprep.subr.mxu0 %v2567
        %2744 = vmatpush1.msra.mxu0 %v2566
        %2745 = vmatprep.subr.mxu0 %v2571
        %2746 = vmatpush1.msra.mxu0 %v2570
        %2747 = vmatprep.subr.mxu0 %v2575
        %2748 = vmatpush1.msra.mxu0 %v2574
        %2749 = vmatprep.subr.mxu0 %v2579
        %2750 = vmatpush1.msra.mxu0 %v2578
        %2751 = vmatprep.subr.mxu0 %v2583
        %2752 = vmatpush1.msra.mxu0 %v2582
        %2753 = vmatprep.subr.mxu0 %v2587
        %2754 = vmatpush1.msra.mxu0 %v2586
        %2755 = vmatprep.subr.mxu0 %v2591
        %2756 = vmatpush1.msra.mxu0 %v2590
        %2757 = vmatprep.subr.mxu0 %v2595
        %2758 = vmatpush1.msra.mxu0 %v2594
        %2759 = vmatprep.subr.mxu0 %v2599
        %2760 = vmatpush1.msra.mxu0 %v2598
        %2761 = vmatprep.subr.mxu0 %v2603
        %2762 = vmatpush1.msra.mxu0 %v2602
        %2763 = vmatprep.subr.mxu0 %v2607
        %2764 = vmatpush1.msra.mxu0 %v2606
        %2765 = vmatprep.subr.mxu0 %v2611
        %2766 = vmatpush1.msra.mxu0 %v2610
        %2767 = vmatprep.subr.mxu0 %v2615
        %2768 = vmatpush1.msra.mxu0 %v2614
        %2769 = vmatprep.subr.mxu0 %v2619
        %2770 = vmatpush1.msra.mxu0 %v2618
        %2771 = vmatprep.subr.mxu0 %v2623
        %2772 = vmatpush1.msra.mxu0 %v2622
        %2773 = vmatprep.subr.mxu0 %v2627
        %2774 = vmatpush1.msra.mxu0 %v2626
        %2775 = vmatprep.subr.mxu0 %v2631
        %2776 = vmatpush1.msra.mxu0 %v2630
        %2777 = vmatprep.subr.mxu0 %v2635
        %2778 = vmatpush1.msra.mxu0 %v2634
        %2779 = vmatprep.subr.mxu0 %v2639
        %2780 = vmatpush1.msra.mxu0 %v2638
        %2781 = vmatprep.subr.mxu0 %v2643
        %2782 = vmatpush1.msra.mxu0 %v2642
        %2783 = vmatprep.subr.mxu0 %v2647
        %2784 = vmatpush1.msra.mxu0 %v2646
        %2785 = vmatprep.subr.mxu0 %v2651
        %2786 = vmatpush1.msra.mxu0 %v2650
        %2787 = vmatprep.mubr.f32.mxu0 %v2523
        %2788 = vmatmul.mubr.f32.gmra.mrb[0].mxu0 %v2522
        %v2789 = vpop.f32.mrb[0].mxu0
        %v2790 = vadd.f32 %v368, %v2789
        %v2791 = vpop.f32.mrb[0].mxu0
        %v2792 = vadd.f32 %v372, %v2791
        %2793 = vdwg.mxu0
        %v2794 = vxor.u32 %v2719, 2147483648
        %v2795 = vmul.f32 %v2794, 1.442695
        %v2796 = vpow.pop %v2795
        %v2797 = vadd.f32 %v2796, 1.0
        %v2798 = vrcp.pop %v2797
        %v2799 = vmul.f32 1.0, %v2798
        %v2800 = vxor.u32 %v2721, 2147483648
        %v2801 = vmul.f32 %v2800, 1.442695
        %v2802 = vpow.pop %v2801
        %v2803 = vadd.f32 %v2802, 1.0
        %v2804 = vrcp.pop %v2803
        %v2805 = vmul.f32 1.0, %v2804
        %v2806 = vtanh.pop %v2790
        %v2807 = vxor.u32 %v2792, 2147483648
        %v2808 = vmul.f32 %v2807, 1.442695
        %v2809 = vpow.pop %v2808
        %v2810 = vadd.f32 %v2809, 1.0
        %v2811 = vrcp.pop %v2810
        %v2812 = vmul.f32 1.0, %v2811
        %v2813 = vld [vmem:[#allocation3] sm:$0xff]
        %v2814 = vmul.f32 %v2805, %v2813
        %v2815 = vmul.f32 %v2799, %v2806
        %v2816 = vadd.f32 %v2814, %v2815
        %v2817 = vtanh.pop %v2816
        %v2818 = vmul.f32 %v2812, %v2817
        %2819 = vst [vmem:[#allocation2] sm:$0xff] %v2818
        %2820 = vst [vmem:[#allocation3] sm:$0xff] %v2816
        %s2821 = scalar_lea.vmem %s342, 56 [#allocation13]
        %2822 = vst [vmem:[%s2821] sm:$0xff] %v2818
        %p2823 = scmp.eq.s32.totalorder %s32, 1
        // Predicated region
        $region61: #{tpu_custom_call.1} parent=39 // pred_check
          %p2824 = pneg %p2823
        $region62: #{tpu_custom_call.1} parent=39 // pred_check_branch
          %2826 = sbr.rel (%p2824) target = $region64
        $region63: #{tpu_custom_call.1} parent=39 // pred_region
          %v2827 = vld [vmem:[#allocation2] sm:$0xff]
          %2828 = vst [vmem:[#allocation14] sm:$0xff] %v2827
          %v2829 = vld [vmem:[#allocation3] sm:$0xff]
          %2830 = vst [vmem:[#allocation14 + $0x8] sm:$0xff] %v2829
        $region64: #{tpu_custom_call.1} parent=39 // pred_fallthru
          _
        %s2831 = sand.u32 %s171, 1
        %s2832 = scalar_lea.sflag [#allocation7], %s2831
        %s2833 = sand.u32 %s171, 1
        %s2834 = smul.addr %s2833, 64
        %s2835 = scalar_lea.vmem [#allocation13], %s2834
        // Predicated region
        $region65: #{tpu_custom_call.1} parent=39 // pred_check
          %p2836 = pneg %p181
        $region66: #{tpu_custom_call.1} parent=39 // pred_check_branch
          %2838 = sbr.rel (%p2836) target = $region68
        $region67: #{tpu_custom_call.1} parent=39 // pred_region
          %s2839 = smul.u32 8, %s32
          %s2841 = ssub.s32 1024, 1024
          %2842 = vsyncadd %s2832, %s2841
          %s2843 = sadd.s32 %s31, %s2839
          %s2844 = smul.addr %s2843, 128
          %s2845 = scalar_lea.hbm %s5, %s2844
          %s2846 = sshll.u32 %s2835, 4
          %s2847 = int_to_ptr.vmem [resolvable:$true] %s2846
          %2852 = dma.vmem_to_hbm [thread:$0]  %s2847, 1024, %s2845, %s2832, 128, 128, 8
        $region68: #{tpu_custom_call.1} parent=39 // pred_fallthru
          _
        // Predicated region
        $region69: #{tpu_custom_call.1} parent=39 // pred_check
          %p2853 = pneg %p207
        $region70: #{tpu_custom_call.1} parent=39 // pred_check_branch
          %2855 = sbr.rel (%p2853) target = $region72
        $region71: #{tpu_custom_call.1} parent=39 // pred_region
          %s2857 = ssub.s32 256, 256
          %2858 = vsyncadd [#allocation15], %s2857
          %s2859 = smul.addr %s31, 2
          %s2860 = smul.addr %s2859, 128
          %s2861 = scalar_lea.hbm %s6, %s2860
          %s2863 = sshll.u32 [#allocation14], 4
          %s2864 = int_to_ptr.vmem [resolvable:$true] %s2863
          %2866 = dma.vmem_to_hbm [thread:$0]  %s2864, 256, %s2861, [#allocation15]
        $region72: #{tpu_custom_call.1} parent=39 // pred_fallthru
          _
        // Predicated region
        $region73: #{tpu_custom_call.1} parent=39 // pred_check
          %p2867 = pneg %p207
        $region74: #{tpu_custom_call.1} parent=39 // pred_check_branch
          %2869 = sbr.rel (%p2867) target = $region76
        $region75: #{tpu_custom_call.1} parent=39 // pred_region
          %2870 = dma.done [#allocation15], 256
        $region76: #{tpu_custom_call.1} parent=39 // pred_fallthru
          _
      $region40: #{tpu_custom_call.1} parent=5 // pred_fallthru
        _
      %p2871 = scmp.le.s32.totalorder 2, %s22
      // Predicated region
      $region77: #{tpu_custom_call.1} parent=5 // pred_check
        %p2872 = pneg %p2871
      $region78: #{tpu_custom_call.1} parent=5 // pred_check_branch
        %2874 = sbr.rel (%p2872) target = $region80
      $region79: #{tpu_custom_call.1} parent=5 // pred_region
        %s2875 = ssub.s32 %s22, 2
        // Predicated region
        $region81: #{tpu_custom_call.1} parent=79 // pred_check
          %p2876 = pneg %p187
        $region82: #{tpu_custom_call.1} parent=79 // pred_check_branch
          %2878 = sbr.rel (%p2876) target = $region84
        $region83: #{tpu_custom_call.1} parent=79 // pred_region
          %s2879 = sand.u32 %s172, 1
          %s2880 = scalar_lea.sflag [#allocation7], %s2879
          %s2881 = sand.u32 %s172, 1
          %s2882 = smul.addr %s2881, 64
          %s2883 = scalar_lea.vmem [#allocation13], %s2882
          %2884 = dma.done %s2880, 1024
        $region84: #{tpu_custom_call.1} parent=79 // pred_fallthru
          _
      $region80: #{tpu_custom_call.1} parent=5 // pred_fallthru
        _
    $region6: #{tpu_custom_call.1} parent=1 // loop_footer
      %s26 = sadd.s32 1, %s22
    $region7: #{tpu_custom_call.1} parent=1 // loop_footer_branch
      %21 = sbr.rel target = $region3
    $region8: #{tpu_custom_call.1} parent=1 // loop_exit
      _
    %2885 = vsyncpa [#allocation6], 1
    %s2886 = scalar_lea.sflag [#allocation6], 1
    %2887 = vsyncpa %s2886, 1
    %2888 = vsyncpa [#allocation9], 1
    %2889 = vsyncpa [#allocation12], 1
    %2890 = vsyncpa [#allocation7], 1
    %s2891 = scalar_lea.sflag [#allocation7], 1
    %2892 = vsyncpa %s2891, 1
    %2893 = vsyncpa [#allocation15], 1

</llo_original>
